<compile_context>
chip_gen: v7x
topology: tpu7x:2x2x1
jax: 0.10.0
libtpu: 0.0.40
codegen_flags: <defaults>
</compile_context>

<pallas_src>
import numpy as np
import jax
import jax.numpy as jnp
from jax.experimental import pallas as pl
from jax.experimental.pallas import tpu as pltpu


VMEM_BUDGET_BYTES = 12 * 1024 * 1024    # target for the double-buffered live set
VMEM_LIMIT_BYTES = 32 * 1024 * 1024     # <= v7x scoped default, << v5e/v6e physical


# ---------------------------------------------------------------------------
# Kernels
# ---------------------------------------------------------------------------
def forward_dft_kernel(x_ref, wf_ref, reim_ref):
    """Stage A: reim[:, k-tile] = x @ Wf[:, k-tile].

    x_ref   : (Bp, Np)   bf16  resident waveform rows (Bp = B padded to 8)
    wf_ref  : (Np, tk)   bf16  forward real-DFT columns for this freq tile
    reim_ref: (Bp, tk)   f32   [Re | Im] of rfft(x) for this freq tile
    """
    reim_ref[...] = jnp.dot(x_ref[...], wf_ref[...],
                            preferred_element_type=jnp.float32)


def inverse_dft_kernel(p_ref, wi_ref, o_ref, acc_ref):
    """Stage B: out[:, n-tile] = sum_k P[:, k-tile] @ Wi[k-tile, n-tile].

    p_ref  : (M8, tk)  bf16  gained spectra, one row per (batch, filter)
    wi_ref : (tk, tn)  bf16  inverse real-DFT block
    o_ref  : (M8, tn)  f32   output time tile
    acc_ref: (M8, tn)  f32   VMEM accumulator over the k (innermost) axis
    """
    k = pl.program_id(1)

    @pl.when(k == 0)
    def _():
        acc_ref[...] = jnp.zeros_like(acc_ref)

    acc_ref[...] += jnp.dot(p_ref[...], wi_ref[...],
                            preferred_element_type=jnp.float32)

    @pl.when(k == pl.num_programs(1) - 1)
    def _():
        o_ref[...] = acc_ref[...]


# ---------------------------------------------------------------------------
# Host-side helpers
# ---------------------------------------------------------------------------
def _round_up(x: int, m: int) -> int:
    return ((x + m - 1) // m) * m


def _largest_fitting_tile(dim: int, fits, step: int = 128) -> int:
    """Largest multiple-of-`step` divisor of `dim` for which fits(t) holds."""
    assert dim % step == 0
    for t in range(dim, step - 1, -step):
        if dim % t == 0 and fits(t):
            return t
    return step


def _make_dft_operators(sample_rate: int):
    """Fused real-DFT / inverse real-DFT matrices, zero-padded to lane width.

    Returns (wf, wi, w, Kp, Np):
      wf : (Np, 2*Kp) f32   x @ wf = [Re rfft(x) | Im rfft(x)]  (pads are 0)
      wi : (2*Kp, Np) f32   [Re | Im] @ wi = unweighted inverse real DFT
      w  : (K,)       f64   irfft weights w_k / N (folded into the gains)
      Kp, Np : K and N rounded up to multiples of 128 lanes
    """
    N = sample_rate
    K = N // 2 + 1
    Kp = _round_up(K, 128)
    Np = _round_up(N, 128)
    n = np.arange(N, dtype=np.float64)[:, None]
    k = np.arange(K, dtype=np.float64)[None, :]
    ang = 2.0 * np.pi * n * k / N                       # (N, K)
    cos = np.cos(ang)
    msin = -np.sin(ang)
    wf = np.zeros((Np, 2 * Kp), dtype=np.float32)
    wf[:N, :K] = cos
    wf[:N, Kp:Kp + K] = msin
    wi = np.zeros((2 * Kp, Np), dtype=np.float32)
    wi[:K, :N] = cos.T
    wi[Kp:Kp + K, :N] = msin.T
    # irfft weights: w_0 = w_{N/2} = 1 (N even), else 2; overall 1/N factor.
    w = np.full((K,), 2.0, dtype=np.float64)
    w[0] = 1.0
    if N % 2 == 0:
        w[-1] = 1.0
    return wf, wi, w / N, Kp, Np


def _make_synthetic_fb(n_filter: int, sample_rate: int):
    """Deterministic stand-in for the SPICE AC-response filter bank."""
    n_freqs = sample_rate // 2 + 1
    k = np.arange(n_freqs, dtype=np.float64)[None, :]
    centers = (np.arange(n_filter, dtype=np.float64)[:, None] + 1.0) \
        * n_freqs / (n_filter + 1.0)
    width = n_freqs / (4.0 * n_filter)
    gains = np.exp(-0.5 * ((k - centers) / width) ** 2)
    norm = (gains - gains.min()) / (gains.max() - gains.min())
    return norm.astype(np.float32)                      # (n_filter, n_freqs)


# ---------------------------------------------------------------------------
# Forward pass
# ---------------------------------------------------------------------------
def dsf_spice_ac_forward(waveform: jax.Array, fb: jax.Array, sample_rate: int,
                         *, compute_dtype=jnp.bfloat16) -> jax.Array:
    """waveform: (B, 1, sample_rate) f32 -> (B, n_filter, sample_rate) f32."""
    assert waveform.shape[-1] == sample_rate, \
        'Input waveform should be of length sample rate'
    B = waveform.shape[0]
    N = sample_rate
    F, K = fb.shape
    assert K == N // 2 + 1
    M = B * F

    wf_np, wi_np, w_np, Kp, Np = _make_dft_operators(N)
    K2 = 2 * Kp
    Bp = _round_up(B, 8)       # sublane-aligned waveform rows
    M8 = _round_up(M, 8)       # sublane-aligned (batch, filter) rows
    bpe = 2 if compute_dtype == jnp.bfloat16 else 4

    # --- host-side operands (zero padding keeps the math exact) -------------
    x_np = np.zeros((Bp, Np), dtype=np.float32)
    x_np[:B, :N] = np.asarray(waveform, dtype=np.float32).reshape(B, N)
    x = jnp.asarray(x_np).astype(compute_dtype)                     # (Bp, Np)

    wf_d = jnp.asarray(wf_np).astype(compute_dtype)                 # (Np, K2)
    wi_d = jnp.asarray(wi_np).astype(compute_dtype)                 # (K2, Np)

    # filter-bank gains with the irfft weights w_k/N folded in
    fbw = np.asarray(fb, dtype=np.float64) * w_np[None, :]          # (F, K)
    g_np = np.zeros((F, K2), dtype=np.float32)
    g_np[:, :K] = fbw
    g_np[:, Kp:Kp + K] = fbw
    g = jnp.asarray(g_np)                                           # (F, K2)

    # --- stage A: reim = x @ Wf, tiled only over the frequency axis ---------
    def fits_a(tk):
        live = Bp * Np * bpe + Np * tk * bpe + Bp * tk * 4
        return 2 * live <= VMEM_BUDGET_BYTES
    tk_a = _largest_fitting_tile(K2, fits_a)
    ka_tiles = K2 // tk_a

    cost_a = pl.CostEstimate(
        flops=int(2 * Bp * Np * K2),
        transcendentals=0,
        bytes_accessed=int(Bp * Np * bpe * ka_tiles    # resident x per step
                           + Np * K2 * bpe             # Wf streamed once
                           + Bp * K2 * 4))             # reim out

    reim = pl.pallas_call(
        forward_dft_kernel,
        out_shape=jax.ShapeDtypeStruct((Bp, K2), jnp.float32),
        grid_spec=pltpu.PrefetchScalarGridSpec(
            num_scalar_prefetch=0,
            grid=(ka_tiles,),
            in_specs=[
                pl.BlockSpec((Bp, Np), lambda k: (0, 0)),     # x (resident)
                pl.BlockSpec((Np, tk_a), lambda k: (0, k)),   # Wf columns
            ],
            out_specs=pl.BlockSpec((Bp, tk_a), lambda k: (0, k)),
        ),
        compiler_params=pltpu.CompilerParams(
            dimension_semantics=("parallel",),
            vmem_limit_bytes=VMEM_LIMIT_BYTES),
        cost_estimate=cost_a,
    )(x, wf_d)

    # --- tiny XLA glue (~40 KB): broadcast spectra over filters, apply gains
    p = (reim[:B, None, :] * g[None, :, :]).reshape(M, K2)          # (M, K2)
    if M8 > M:
        p = jnp.pad(p, ((0, M8 - M), (0, 0)))
    p = p.astype(compute_dtype)                                     # (M8, K2)

    # --- stage B: out = P @ Wi, n-tiles parallel, k innermost reduction -----
    def fits_b_tn(tn):
        live = M8 * 128 * bpe + 128 * tn * bpe + M8 * tn * 4
        return 2 * live + M8 * tn * 4 <= VMEM_BUDGET_BYTES
    tn = _largest_fitting_tile(Np, fits_b_tn)

    def fits_b_tk(tk):
        live = M8 * tk * bpe + tk * tn * bpe + M8 * tn * 4
        return 2 * live + M8 * tn * 4 <= VMEM_BUDGET_BYTES
    tk_b = _largest_fitting_tile(K2, fits_b_tk)

    n_tiles = Np // tn
    kb_tiles = K2 // tk_b

    cost_b = pl.CostEstimate(
        flops=int(2 * M8 * K2 * Np),
        transcendentals=0,
        bytes_accessed=int(M8 * K2 * bpe * n_tiles     # P re-read per n tile
                           + K2 * Np * bpe             # Wi streamed once
                           + M8 * Np * 4))             # output

    out = pl.pallas_call(
        inverse_dft_kernel,
        out_shape=jax.ShapeDtypeStruct((M8, Np), jnp.float32),
        grid_spec=pltpu.PrefetchScalarGridSpec(
            num_scalar_prefetch=0,
            grid=(n_tiles, kb_tiles),
            in_specs=[
                pl.BlockSpec((M8, tk_b), lambda i, k: (0, k)),   # gained spectra
                pl.BlockSpec((tk_b, tn), lambda i, k: (k, i)),   # Wi block
            ],
            out_specs=pl.BlockSpec((M8, tn), lambda i, k: (0, i)),
            scratch_shapes=[pltpu.VMEM((M8, tn), jnp.float32)],
        ),
        compiler_params=pltpu.CompilerParams(
            dimension_semantics=("parallel", "arbitrary"),
            vmem_limit_bytes=VMEM_LIMIT_BYTES),
        cost_estimate=cost_b,
    )(p, wi_d)

    # Rows are batch-major (b*F + f); slicing off padding is free at this size.
    return out[:M, :N].reshape(B, F, N)


# ---------------------------------------------------------------------------
if __name__ == "__main__":
    n_filter = 4
    sample_rate = 1024      # even -> n_freqs = 513 (zero-padded to 640 lanes)
    batch = 2

    key = jax.random.PRNGKey(0)
    waveform = jax.random.normal(key, (batch, 1, sample_rate), dtype=jnp.float32)

    fb = jnp.asarray(_make_synthetic_fb(n_filter, sample_rate))   # (4, 513)

    out = dsf_spice_ac_forward(waveform, fb, sample_rate)
    out = jax.block_until_ready(out)

    # reference check against jnp fft (same math as torch.fft.rfft/irfft)
    wf_fft = jnp.fft.rfft(waveform.astype(jnp.float32), axis=-1)      # (B,1,K)
    filt_fft = fb.astype(jnp.complex64)[None, :, :] * wf_fft          # (B,F,K)
    ref = jnp.fft.irfft(filt_fft, n=sample_rate, axis=-1)             # (B,F,N)

    # bf16 DFT matrices with f32 accumulation: measured error ~1e-3 abs here;
    # tolerance set with comfortable margin for the reduced-precision matmuls.
    np.testing.assert_allclose(np.asarray(out), np.asarray(ref),
                               rtol=2e-2, atol=2e-2)

    assert out.shape == (batch, n_filter, sample_rate)
    print("KERNEL_OK")
</pallas_src>

<mosaic_0001>
module attributes {stable_mosaic.version = 11 : i64} {
  func.func @forward_dft_kernel(%arg0: i32, %arg1: memref<8x1024xbf16, #tpu.memory_space<vmem>>, %arg2: memref<1024x1280xbf16, #tpu.memory_space<vmem>>, %arg3: memref<8x1280xf32, #tpu.memory_space<vmem>>) attributes {dimension_semantics = [#tpu.dimension_semantics<parallel>], iteration_bounds = array<i64: 1>, scalar_prefetch = 0 : i64, scratch_operands = 0 : i64, tpu.core_type = #tpu.core_type<tc>, window_params = [{pipeline_mode = #tpu.pipeline_mode<synchronous>, transform_indices = @transform_0, window_bounds = array<i64: 8, 1024>}, {transform_indices = @transform_1, window_bounds = array<i64: 1024, 1280>}, {transform_indices = @transform_2, window_bounds = array<i64: 8, 1280>}]} {
    %c0 = arith.constant 0 : index
    %c0_0 = arith.constant 0 : index
    %0 = vector.load %arg1[%c0, %c0_0] : memref<8x1024xbf16, #tpu.memory_space<vmem>>, vector<8x1024xbf16>
    %c0_1 = arith.constant 0 : index
    %c0_2 = arith.constant 0 : index
    %1 = vector.load %arg2[%c0_1, %c0_2] : memref<1024x1280xbf16, #tpu.memory_space<vmem>>, vector<1024x1280xbf16>
    %cst = arith.constant dense<0.000000e+00> : vector<8x1280xf32>
    %2 = tpu.matmul %0, %1, %cst {dimension_numbers = #tpu.dot_dimension_numbers<[1], [0], [0], [1], [0, 0, 1, 1], [], []>} : vector<8x1024xbf16>, vector<1024x1280xbf16>, vector<8x1280xf32> -> vector<8x1280xf32>
    %c0_3 = arith.constant 0 : index
    %c0_4 = arith.constant 0 : index
    %3 = vector.load %arg3[%c0_3, %c0_4] : memref<8x1280xf32, #tpu.memory_space<vmem>>, vector<8x1280xf32>
    tpu.vector_store %arg3[%c0_3, %c0_4], %2 {strides = array<i32>} : memref<8x1280xf32, #tpu.memory_space<vmem>>, vector<8x1280xf32>,
    return
  }
  func.func @transform_0(%arg0: i32) -> (i32, i32) {
    %c0_i32 = arith.constant 0 : i32
    %c0_i32_0 = arith.constant 0 : i32
    %c0_i32_1 = arith.constant 0 : i32
    return %c0_i32, %c0_i32_0 : i32, i32
  }
  func.func @transform_1(%arg0: i32) -> (i32, i32) {
    %c0_i32 = arith.constant 0 : i32
    %c0_i32_0 = arith.constant 0 : i32
    return %c0_i32, %arg0 : i32, i32
  }
  func.func @transform_2(%arg0: i32) -> (i32, i32) {
    %c0_i32 = arith.constant 0 : i32
    %c0_i32_0 = arith.constant 0 : i32
    return %c0_i32, %arg0 : i32, i32
  }
}

</mosaic_0001>

<llo_original>
// kernel: tpu_custom_call.1
$region0: #{tpu_custom_call.1}
  #allocation0 [shape = 'u32[]', space=smem, size = 0x4, offset = 0x4, fixed_abs, tag = 'smem constant byte address 0x4 - core index']
  #allocation1 [shape = 'u32[144,128]{1,0:T(1,128)}', space=vmem, size = 0x12000, scoped, tag = 'internal scratch']
  %s0 = inlined_call_operand.hbm [shape: bf16[8,1024], index: 0, kind: input, shape index: {}]
  %s1 = inlined_call_operand.hbm [shape: bf16[1024,1280], index: 1, kind: input, shape index: {}]
  %s2 = inlined_call_operand.hbm [shape: f32[8,1280], index: 2, kind: output, shape index: {}]
  %s3 = sld [smem:[#allocation0]]
  $region26: #{tpu_custom_call.1} parent=0
    _
  %s5 = ssub.s32 1, %s3
  %s6 = scalar_select 0, %s5, %s3
  $region1: #{tpu_custom_call.1} parent=0
    #allocation2 [shape = 'u8[16384]{0}', space=vmem, size = 0x4000, scoped, tag = 'input window, operand 0, single buffered']
    #allocation3 [shape = 's32[1]{0}', space=sflag, size = 0x4, scoped, tag = 'scoped memory for tpu_custom_call.1']
    #allocation4 [shape = 's32[1]{0}', space=sflag, size = 0x4, scoped, tag = 'scoped memory for tpu_custom_call.1']
    #allocation5 [shape = 'u8[2621440]{0}', space=vmem, size = 0x280000, scoped, tag = 'input window, operand 1, single buffered']
    #allocation6 [shape = 's32[1]{0}', space=sflag, size = 0x4, scoped, tag = 'scoped memory for tpu_custom_call.1']
    #allocation7 [shape = 'u8[40960]{0}', space=vmem, size = 0xa000, scoped, tag = 'output window, operand 0, single buffered']
    %7 = vsyncpa [#allocation3], 0
    %8 = vsyncpa [#allocation6], 0
    %9 = vsyncpa [#allocation4], 0
    // Predicated region
    $region2: #{tpu_custom_call.1} parent=1 // pred_check
      _
    $region3: #{tpu_custom_call.1} parent=1 // pred_check_branch
      %11 = sbr.rel (0) target = $region5
    $region4: #{tpu_custom_call.1} parent=1 // pred_region
      %s13 = ssub.s32 512, 512
      %14 = vsyncadd [#allocation3], %s13
      %s16 = sshll.u32 [#allocation2], 4
      %s17 = int_to_ptr.vmem [resolvable:$true] %s16
      %19 = dma.hbm_to_vmem [thread:$0]  %s0, 512, %s17, [#allocation3]
    $region5: #{tpu_custom_call.1} parent=1 // pred_fallthru
      _
    // Predicated region
    $region6: #{tpu_custom_call.1} parent=1 // pred_check
      _
    $region7: #{tpu_custom_call.1} parent=1 // pred_check_branch
      %21 = sbr.rel (0) target = $region9
    $region8: #{tpu_custom_call.1} parent=1 // pred_region
      %s23 = ssub.s32 81920, 81920
      %24 = vsyncadd [#allocation6], %s23
      %s25 = sshll.u32 [#allocation5], 4
      %s26 = int_to_ptr.vmem [resolvable:$true] %s25
      %31 = dma.hbm_to_vmem [thread:$0]  %s1, 81920, %s26, [#allocation6], 640, 640, 40
    $region9: #{tpu_custom_call.1} parent=1 // pred_fallthru
      _
    // Predicated region
    $region10: #{tpu_custom_call.1} parent=1 // pred_check
      _
    $region11: #{tpu_custom_call.1} parent=1 // pred_check_branch
      %33 = sbr.rel (0) target = $region13
    $region12: #{tpu_custom_call.1} parent=1 // pred_region
      %34 = dma.done [#allocation3], 512
    $region13: #{tpu_custom_call.1} parent=1 // pred_fallthru
      _
    // Predicated region
    $region14: #{tpu_custom_call.1} parent=1 // pred_check
      _
    $region15: #{tpu_custom_call.1} parent=1 // pred_check_branch
      %36 = sbr.rel (0) target = $region17
    $region16: #{tpu_custom_call.1} parent=1 // pred_region
      %37 = dma.done [#allocation6], 81920
    $region17: #{tpu_custom_call.1} parent=1 // pred_fallthru
      _
    %v38 = vld [vmem:[#allocation2] sm:$0xff]
    %v39 = vld [vmem:[#allocation2 + $0x8] sm:$0xff]
    %v40 = vld [vmem:[#allocation2 + $0x10] sm:$0xff]
    %v41 = vld [vmem:[#allocation2 + $0x18] sm:$0xff]
    %v42 = vld [vmem:[#allocation5] sm:$0xff]
    %v43 = vld [vmem:[#allocation5 + $0x8] sm:$0xff]
    %v44 = vld [vmem:[#allocation5 + $0x10] sm:$0xff]
    %v45 = vld [vmem:[#allocation5 + $0x18] sm:$0xff]
    %v46 = vld [vmem:[#allocation5 + $0x20] sm:$0xff]
    %v47 = vld [vmem:[#allocation5 + $0x28] sm:$0xff]
    %v48 = vld [vmem:[#allocation5 + $0x30] sm:$0xff]
    %v49 = vld [vmem:[#allocation5 + $0x38] sm:$0xff]
    %v50 = vld [vmem:[#allocation5 + $0x40] sm:$0xff]
    %v51 = vld [vmem:[#allocation5 + $0x48] sm:$0xff]
    %v52 = vld [vmem:[#allocation5 + $0x50] sm:$0xff]
    %v53 = vld [vmem:[#allocation5 + $0x58] sm:$0xff]
    %v54 = vld [vmem:[#allocation5 + $0x60] sm:$0xff]
    %v55 = vld [vmem:[#allocation5 + $0x68] sm:$0xff]
    %v56 = vld [vmem:[#allocation5 + $0x70] sm:$0xff]
    %v57 = vld [vmem:[#allocation5 + $0x78] sm:$0xff]
    %v58 = vld [vmem:[#allocation5 + $0x80] sm:$0xff]
    %v59 = vld [vmem:[#allocation5 + $0x88] sm:$0xff]
    %v60 = vld [vmem:[#allocation5 + $0x90] sm:$0xff]
    %v61 = vld [vmem:[#allocation5 + $0x98] sm:$0xff]
    %v62 = vld [vmem:[#allocation5 + $0xa0] sm:$0xff]
    %v63 = vld [vmem:[#allocation5 + $0xa8] sm:$0xff]
    %v64 = vld [vmem:[#allocation5 + $0xb0] sm:$0xff]
    %v65 = vld [vmem:[#allocation5 + $0xb8] sm:$0xff]
    %v66 = vld [vmem:[#allocation5 + $0xc0] sm:$0xff]
    %v67 = vld [vmem:[#allocation5 + $0xc8] sm:$0xff]
    %v68 = vld [vmem:[#allocation5 + $0xd0] sm:$0xff]
    %v69 = vld [vmem:[#allocation5 + $0xd8] sm:$0xff]
    %v70 = vld [vmem:[#allocation5 + $0xe0] sm:$0xff]
    %v71 = vld [vmem:[#allocation5 + $0xe8] sm:$0xff]
    %v72 = vld [vmem:[#allocation5 + $0xf0] sm:$0xff]
    %v73 = vld [vmem:[#allocation5 + $0xf8] sm:$0xff]
    %v74 = vld [vmem:[#allocation5 + $0x100] sm:$0xff]
    %v75 = vld [vmem:[#allocation5 + $0x108] sm:$0xff]
    %v76 = vld [vmem:[#allocation5 + $0x110] sm:$0xff]
    %v77 = vld [vmem:[#allocation5 + $0x118] sm:$0xff]
    %v78 = vld [vmem:[#allocation5 + $0x120] sm:$0xff]
    %v79 = vld [vmem:[#allocation5 + $0x128] sm:$0xff]
    %v80 = vld [vmem:[#allocation5 + $0x130] sm:$0xff]
    %v81 = vld [vmem:[#allocation5 + $0x138] sm:$0xff]
    %v82 = vld [vmem:[#allocation5 + $0x140] sm:$0xff]
    %v83 = vld [vmem:[#allocation5 + $0x148] sm:$0xff]
    %v84 = vld [vmem:[#allocation5 + $0x150] sm:$0xff]
    %v85 = vld [vmem:[#allocation5 + $0x158] sm:$0xff]
    %v86 = vld [vmem:[#allocation5 + $0x160] sm:$0xff]
    %v87 = vld [vmem:[#allocation5 + $0x168] sm:$0xff]
    %v88 = vld [vmem:[#allocation5 + $0x170] sm:$0xff]
    %v89 = vld [vmem:[#allocation5 + $0x178] sm:$0xff]
    %v90 = vld [vmem:[#allocation5 + $0x180] sm:$0xff]
    %v91 = vld [vmem:[#allocation5 + $0x188] sm:$0xff]
    %v92 = vld [vmem:[#allocation5 + $0x190] sm:$0xff]
    %v93 = vld [vmem:[#allocation5 + $0x198] sm:$0xff]
    %v94 = vld [vmem:[#allocation5 + $0x1a0] sm:$0xff]
    %v95 = vld [vmem:[#allocation5 + $0x1a8] sm:$0xff]
    %v96 = vld [vmem:[#allocation5 + $0x1b0] sm:$0xff]
    %v97 = vld [vmem:[#allocation5 + $0x1b8] sm:$0xff]
    %v98 = vld [vmem:[#allocation5 + $0x1c0] sm:$0xff]
    %v99 = vld [vmem:[#allocation5 + $0x1c8] sm:$0xff]
    %v100 = vld [vmem:[#allocation5 + $0x1d0] sm:$0xff]
    %v101 = vld [vmem:[#allocation5 + $0x1d8] sm:$0xff]
    %v102 = vld [vmem:[#allocation5 + $0x1e0] sm:$0xff]
    %v103 = vld [vmem:[#allocation5 + $0x1e8] sm:$0xff]
    %v104 = vld [vmem:[#allocation5 + $0x1f0] sm:$0xff]
    %v105 = vld [vmem:[#allocation5 + $0x1f8] sm:$0xff]
    %v106 = vld [vmem:[#allocation5 + $0x200] sm:$0xff]
    %v107 = vld [vmem:[#allocation5 + $0x208] sm:$0xff]
    %v108 = vld [vmem:[#allocation5 + $0x210] sm:$0xff]
    %v109 = vld [vmem:[#allocation5 + $0x218] sm:$0xff]
    %v110 = vld [vmem:[#allocation5 + $0x220] sm:$0xff]
    %v111 = vld [vmem:[#allocation5 + $0x228] sm:$0xff]
    %v112 = vld [vmem:[#allocation5 + $0x230] sm:$0xff]
    %v113 = vld [vmem:[#allocation5 + $0x238] sm:$0xff]
    %v114 = vld [vmem:[#allocation5 + $0x240] sm:$0xff]
    %v115 = vld [vmem:[#allocation5 + $0x248] sm:$0xff]
    %v116 = vld [vmem:[#allocation5 + $0x250] sm:$0xff]
    %v117 = vld [vmem:[#allocation5 + $0x258] sm:$0xff]
    %v118 = vld [vmem:[#allocation5 + $0x260] sm:$0xff]
    %v119 = vld [vmem:[#allocation5 + $0x268] sm:$0xff]
    %v120 = vld [vmem:[#allocation5 + $0x270] sm:$0xff]
    %v121 = vld [vmem:[#allocation5 + $0x278] sm:$0xff]
    %v122 = vld [vmem:[#allocation5 + $0x280] sm:$0xff]
    %v123 = vld [vmem:[#allocation5 + $0x288] sm:$0xff]
    %v124 = vld [vmem:[#allocation5 + $0x290] sm:$0xff]
    %v125 = vld [vmem:[#allocation5 + $0x298] sm:$0xff]
    %v126 = vld [vmem:[#allocation5 + $0x2a0] sm:$0xff]
    %v127 = vld [vmem:[#allocation5 + $0x2a8] sm:$0xff]
    %v128 = vld [vmem:[#allocation5 + $0x2b0] sm:$0xff]
    %v129 = vld [vmem:[#allocation5 + $0x2b8] sm:$0xff]
    %v130 = vld [vmem:[#allocation5 + $0x2c0] sm:$0xff]
    %v131 = vld [vmem:[#allocation5 + $0x2c8] sm:$0xff]
    %v132 = vld [vmem:[#allocation5 + $0x2d0] sm:$0xff]
    %v133 = vld [vmem:[#allocation5 + $0x2d8] sm:$0xff]
    %v134 = vld [vmem:[#allocation5 + $0x2e0] sm:$0xff]
    %v135 = vld [vmem:[#allocation5 + $0x2e8] sm:$0xff]
    %v136 = vld [vmem:[#allocation5 + $0x2f0] sm:$0xff]
    %v137 = vld [vmem:[#allocation5 + $0x2f8] sm:$0xff]
    %v138 = vld [vmem:[#allocation5 + $0x300] sm:$0xff]
    %v139 = vld [vmem:[#allocation5 + $0x308] sm:$0xff]
    %v140 = vld [vmem:[#allocation5 + $0x310] sm:$0xff]
    %v141 = vld [vmem:[#allocation5 + $0x318] sm:$0xff]
    %v142 = vld [vmem:[#allocation5 + $0x320] sm:$0xff]
    %v143 = vld [vmem:[#allocation5 + $0x328] sm:$0xff]
    %v144 = vld [vmem:[#allocation5 + $0x330] sm:$0xff]
    %v145 = vld [vmem:[#allocation5 + $0x338] sm:$0xff]
    %v146 = vld [vmem:[#allocation5 + $0x340] sm:$0xff]
    %v147 = vld [vmem:[#allocation5 + $0x348] sm:$0xff]
    %v148 = vld [vmem:[#allocation5 + $0x350] sm:$0xff]
    %v149 = vld [vmem:[#allocation5 + $0x358] sm:$0xff]
    %v150 = vld [vmem:[#allocation5 + $0x360] sm:$0xff]
    %v151 = vld [vmem:[#allocation5 + $0x368] sm:$0xff]
    %v152 = vld [vmem:[#allocation5 + $0x370] sm:$0xff]
    %v153 = vld [vmem:[#allocation5 + $0x378] sm:$0xff]
    %v154 = vld [vmem:[#allocation5 + $0x380] sm:$0xff]
    %v155 = vld [vmem:[#allocation5 + $0x388] sm:$0xff]
    %v156 = vld [vmem:[#allocation5 + $0x390] sm:$0xff]
    %v157 = vld [vmem:[#allocation5 + $0x398] sm:$0xff]
    %v158 = vld [vmem:[#allocation5 + $0x3a0] sm:$0xff]
    %v159 = vld [vmem:[#allocation5 + $0x3a8] sm:$0xff]
    %v160 = vld [vmem:[#allocation5 + $0x3b0] sm:$0xff]
    %v161 = vld [vmem:[#allocation5 + $0x3b8] sm:$0xff]
    %v162 = vld [vmem:[#allocation5 + $0x3c0] sm:$0xff]
    %v163 = vld [vmem:[#allocation5 + $0x3c8] sm:$0xff]
    %v164 = vld [vmem:[#allocation5 + $0x3d0] sm:$0xff]
    %v165 = vld [vmem:[#allocation5 + $0x3d8] sm:$0xff]
    %v166 = vld [vmem:[#allocation5 + $0x3e0] sm:$0xff]
    %v167 = vld [vmem:[#allocation5 + $0x3e8] sm:$0xff]
    %v168 = vld [vmem:[#allocation5 + $0x3f0] sm:$0xff]
    %v169 = vld [vmem:[#allocation5 + $0x3f8] sm:$0xff]
    %v170 = vld [vmem:[#allocation5 + $0x400] sm:$0xff]
    %v171 = vld [vmem:[#allocation5 + $0x408] sm:$0xff]
    %v172 = vld [vmem:[#allocation5 + $0x410] sm:$0xff]
    %v173 = vld [vmem:[#allocation5 + $0x418] sm:$0xff]
    %v174 = vld [vmem:[#allocation5 + $0x420] sm:$0xff]
    %v175 = vld [vmem:[#allocation5 + $0x428] sm:$0xff]
    %v176 = vld [vmem:[#allocation5 + $0x430] sm:$0xff]
    %v177 = vld [vmem:[#allocation5 + $0x438] sm:$0xff]
    %v178 = vld [vmem:[#allocation5 + $0x440] sm:$0xff]
    %v179 = vld [vmem:[#allocation5 + $0x448] sm:$0xff]
    %v180 = vld [vmem:[#allocation5 + $0x450] sm:$0xff]
    %v181 = vld [vmem:[#allocation5 + $0x458] sm:$0xff]
    %v182 = vld [vmem:[#allocation5 + $0x460] sm:$0xff]
    %v183 = vld [vmem:[#allocation5 + $0x468] sm:$0xff]
    %v184 = vld [vmem:[#allocation5 + $0x470] sm:$0xff]
    %v185 = vld [vmem:[#allocation5 + $0x478] sm:$0xff]
    %v186 = vld [vmem:[#allocation5 + $0x480] sm:$0xff]
    %v187 = vld [vmem:[#allocation5 + $0x488] sm:$0xff]
    %v188 = vld [vmem:[#allocation5 + $0x490] sm:$0xff]
    %v189 = vld [vmem:[#allocation5 + $0x498] sm:$0xff]
    %v190 = vld [vmem:[#allocation5 + $0x4a0] sm:$0xff]
    %v191 = vld [vmem:[#allocation5 + $0x4a8] sm:$0xff]
    %v192 = vld [vmem:[#allocation5 + $0x4b0] sm:$0xff]
    %v193 = vld [vmem:[#allocation5 + $0x4b8] sm:$0xff]
    %v194 = vld [vmem:[#allocation5 + $0x4c0] sm:$0xff]
    %v195 = vld [vmem:[#allocation5 + $0x4c8] sm:$0xff]
    %v196 = vld [vmem:[#allocation5 + $0x4d0] sm:$0xff]
    %v197 = vld [vmem:[#allocation5 + $0x4d8] sm:$0xff]
    %v198 = vld [vmem:[#allocation5 + $0x4e0] sm:$0xff]
    %v199 = vld [vmem:[#allocation5 + $0x4e8] sm:$0xff]
    %v200 = vld [vmem:[#allocation5 + $0x4f0] sm:$0xff]
    %v201 = vld [vmem:[#allocation5 + $0x4f8] sm:$0xff]
    %v202 = vld [vmem:[#allocation5 + $0x500] sm:$0xff]
    %v203 = vld [vmem:[#allocation5 + $0x508] sm:$0xff]
    %v204 = vld [vmem:[#allocation5 + $0x510] sm:$0xff]
    %v205 = vld [vmem:[#allocation5 + $0x518] sm:$0xff]
    %v206 = vld [vmem:[#allocation5 + $0x520] sm:$0xff]
    %v207 = vld [vmem:[#allocation5 + $0x528] sm:$0xff]
    %v208 = vld [vmem:[#allocation5 + $0x530] sm:$0xff]
    %v209 = vld [vmem:[#allocation5 + $0x538] sm:$0xff]
    %v210 = vld [vmem:[#allocation5 + $0x540] sm:$0xff]
    %v211 = vld [vmem:[#allocation5 + $0x548] sm:$0xff]
    %v212 = vld [vmem:[#allocation5 + $0x550] sm:$0xff]
    %v213 = vld [vmem:[#allocation5 + $0x558] sm:$0xff]
    %v214 = vld [vmem:[#allocation5 + $0x560] sm:$0xff]
    %v215 = vld [vmem:[#allocation5 + $0x568] sm:$0xff]
    %v216 = vld [vmem:[#allocation5 + $0x570] sm:$0xff]
    %v217 = vld [vmem:[#allocation5 + $0x578] sm:$0xff]
    %v218 = vld [vmem:[#allocation5 + $0x580] sm:$0xff]
    %v219 = vld [vmem:[#allocation5 + $0x588] sm:$0xff]
    %v220 = vld [vmem:[#allocation5 + $0x590] sm:$0xff]
    %v221 = vld [vmem:[#allocation5 + $0x598] sm:$0xff]
    %v222 = vld [vmem:[#allocation5 + $0x5a0] sm:$0xff]
    %v223 = vld [vmem:[#allocation5 + $0x5a8] sm:$0xff]
    %v224 = vld [vmem:[#allocation5 + $0x5b0] sm:$0xff]
    %v225 = vld [vmem:[#allocation5 + $0x5b8] sm:$0xff]
    %v226 = vld [vmem:[#allocation5 + $0x5c0] sm:$0xff]
    %v227 = vld [vmem:[#allocation5 + $0x5c8] sm:$0xff]
    %v228 = vld [vmem:[#allocation5 + $0x5d0] sm:$0xff]
    %v229 = vld [vmem:[#allocation5 + $0x5d8] sm:$0xff]
    %v230 = vld [vmem:[#allocation5 + $0x5e0] sm:$0xff]
    %v231 = vld [vmem:[#allocation5 + $0x5e8] sm:$0xff]
    %v232 = vld [vmem:[#allocation5 + $0x5f0] sm:$0xff]
    %v233 = vld [vmem:[#allocation5 + $0x5f8] sm:$0xff]
    %v234 = vld [vmem:[#allocation5 + $0x600] sm:$0xff]
    %v235 = vld [vmem:[#allocation5 + $0x608] sm:$0xff]
    %v236 = vld [vmem:[#allocation5 + $0x610] sm:$0xff]
    %v237 = vld [vmem:[#allocation5 + $0x618] sm:$0xff]
    %v238 = vld [vmem:[#allocation5 + $0x620] sm:$0xff]
    %v239 = vld [vmem:[#allocation5 + $0x628] sm:$0xff]
    %v240 = vld [vmem:[#allocation5 + $0x630] sm:$0xff]
    %v241 = vld [vmem:[#allocation5 + $0x638] sm:$0xff]
    %v242 = vld [vmem:[#allocation5 + $0x640] sm:$0xff]
    %v243 = vld [vmem:[#allocation5 + $0x648] sm:$0xff]
    %v244 = vld [vmem:[#allocation5 + $0x650] sm:$0xff]
    %v245 = vld [vmem:[#allocation5 + $0x658] sm:$0xff]
    %v246 = vld [vmem:[#allocation5 + $0x660] sm:$0xff]
    %v247 = vld [vmem:[#allocation5 + $0x668] sm:$0xff]
    %v248 = vld [vmem:[#allocation5 + $0x670] sm:$0xff]
    %v249 = vld [vmem:[#allocation5 + $0x678] sm:$0xff]
    %v250 = vld [vmem:[#allocation5 + $0x680] sm:$0xff]
    %v251 = vld [vmem:[#allocation5 + $0x688] sm:$0xff]
    %v252 = vld [vmem:[#allocation5 + $0x690] sm:$0xff]
    %v253 = vld [vmem:[#allocation5 + $0x698] sm:$0xff]
    %v254 = vld [vmem:[#allocation5 + $0x6a0] sm:$0xff]
    %v255 = vld [vmem:[#allocation5 + $0x6a8] sm:$0xff]
    %v256 = vld [vmem:[#allocation5 + $0x6b0] sm:$0xff]
    %v257 = vld [vmem:[#allocation5 + $0x6b8] sm:$0xff]
    %v258 = vld [vmem:[#allocation5 + $0x6c0] sm:$0xff]
    %v259 = vld [vmem:[#allocation5 + $0x6c8] sm:$0xff]
    %v260 = vld [vmem:[#allocation5 + $0x6d0] sm:$0xff]
    %v261 = vld [vmem:[#allocation5 + $0x6d8] sm:$0xff]
    %v262 = vld [vmem:[#allocation5 + $0x6e0] sm:$0xff]
    %v263 = vld [vmem:[#allocation5 + $0x6e8] sm:$0xff]
    %v264 = vld [vmem:[#allocation5 + $0x6f0] sm:$0xff]
    %v265 = vld [vmem:[#allocation5 + $0x6f8] sm:$0xff]
    %v266 = vld [vmem:[#allocation5 + $0x700] sm:$0xff]
    %v267 = vld [vmem:[#allocation5 + $0x708] sm:$0xff]
    %v268 = vld [vmem:[#allocation5 + $0x710] sm:$0xff]
    %v269 = vld [vmem:[#allocation5 + $0x718] sm:$0xff]
    %v270 = vld [vmem:[#allocation5 + $0x720] sm:$0xff]
    %v271 = vld [vmem:[#allocation5 + $0x728] sm:$0xff]
    %v272 = vld [vmem:[#allocation5 + $0x730] sm:$0xff]
    %v273 = vld [vmem:[#allocation5 + $0x738] sm:$0xff]
    %v274 = vld [vmem:[#allocation5 + $0x740] sm:$0xff]
    %v275 = vld [vmem:[#allocation5 + $0x748] sm:$0xff]
    %v276 = vld [vmem:[#allocation5 + $0x750] sm:$0xff]
    %v277 = vld [vmem:[#allocation5 + $0x758] sm:$0xff]
    %v278 = vld [vmem:[#allocation5 + $0x760] sm:$0xff]
    %v279 = vld [vmem:[#allocation5 + $0x768] sm:$0xff]
    %v280 = vld [vmem:[#allocation5 + $0x770] sm:$0xff]
    %v281 = vld [vmem:[#allocation5 + $0x778] sm:$0xff]
    %v282 = vld [vmem:[#allocation5 + $0x780] sm:$0xff]
    %v283 = vld [vmem:[#allocation5 + $0x788] sm:$0xff]
    %v284 = vld [vmem:[#allocation5 + $0x790] sm:$0xff]
    %v285 = vld [vmem:[#allocation5 + $0x798] sm:$0xff]
    %v286 = vld [vmem:[#allocation5 + $0x7a0] sm:$0xff]
    %v287 = vld [vmem:[#allocation5 + $0x7a8] sm:$0xff]
    %v288 = vld [vmem:[#allocation5 + $0x7b0] sm:$0xff]
    %v289 = vld [vmem:[#allocation5 + $0x7b8] sm:$0xff]
    %v290 = vld [vmem:[#allocation5 + $0x7c0] sm:$0xff]
    %v291 = vld [vmem:[#allocation5 + $0x7c8] sm:$0xff]
    %v292 = vld [vmem:[#allocation5 + $0x7d0] sm:$0xff]
    %v293 = vld [vmem:[#allocation5 + $0x7d8] sm:$0xff]
    %v294 = vld [vmem:[#allocation5 + $0x7e0] sm:$0xff]
    %v295 = vld [vmem:[#allocation5 + $0x7e8] sm:$0xff]
    %v296 = vld [vmem:[#allocation5 + $0x7f0] sm:$0xff]
    %v297 = vld [vmem:[#allocation5 + $0x7f8] sm:$0xff]
    %v298 = vld [vmem:[#allocation5 + $0x800] sm:$0xff]
    %v299 = vld [vmem:[#allocation5 + $0x808] sm:$0xff]
    %v300 = vld [vmem:[#allocation5 + $0x810] sm:$0xff]
    %v301 = vld [vmem:[#allocation5 + $0x818] sm:$0xff]
    %v302 = vld [vmem:[#allocation5 + $0x820] sm:$0xff]
    %v303 = vld [vmem:[#allocation5 + $0x828] sm:$0xff]
    %v304 = vld [vmem:[#allocation5 + $0x830] sm:$0xff]
    %v305 = vld [vmem:[#allocation5 + $0x838] sm:$0xff]
    %v306 = vld [vmem:[#allocation5 + $0x840] sm:$0xff]
    %v307 = vld [vmem:[#allocation5 + $0x848] sm:$0xff]
    %v308 = vld [vmem:[#allocation5 + $0x850] sm:$0xff]
    %v309 = vld [vmem:[#allocation5 + $0x858] sm:$0xff]
    %v310 = vld [vmem:[#allocation5 + $0x860] sm:$0xff]
    %v311 = vld [vmem:[#allocation5 + $0x868] sm:$0xff]
    %v312 = vld [vmem:[#allocation5 + $0x870] sm:$0xff]
    %v313 = vld [vmem:[#allocation5 + $0x878] sm:$0xff]
    %v314 = vld [vmem:[#allocation5 + $0x880] sm:$0xff]
    %v315 = vld [vmem:[#allocation5 + $0x888] sm:$0xff]
    %v316 = vld [vmem:[#allocation5 + $0x890] sm:$0xff]
    %v317 = vld [vmem:[#allocation5 + $0x898] sm:$0xff]
    %v318 = vld [vmem:[#allocation5 + $0x8a0] sm:$0xff]
    %v319 = vld [vmem:[#allocation5 + $0x8a8] sm:$0xff]
    %v320 = vld [vmem:[#allocation5 + $0x8b0] sm:$0xff]
    %v321 = vld [vmem:[#allocation5 + $0x8b8] sm:$0xff]
    %v322 = vld [vmem:[#allocation5 + $0x8c0] sm:$0xff]
    %v323 = vld [vmem:[#allocation5 + $0x8c8] sm:$0xff]
    %v324 = vld [vmem:[#allocation5 + $0x8d0] sm:$0xff]
    %v325 = vld [vmem:[#allocation5 + $0x8d8] sm:$0xff]
    %v326 = vld [vmem:[#allocation5 + $0x8e0] sm:$0xff]
    %v327 = vld [vmem:[#allocation5 + $0x8e8] sm:$0xff]
    %v328 = vld [vmem:[#allocation5 + $0x8f0] sm:$0xff]
    %v329 = vld [vmem:[#allocation5 + $0x8f8] sm:$0xff]
    %v330 = vld [vmem:[#allocation5 + $0x900] sm:$0xff]
    %v331 = vld [vmem:[#allocation5 + $0x908] sm:$0xff]
    %v332 = vld [vmem:[#allocation5 + $0x910] sm:$0xff]
    %v333 = vld [vmem:[#allocation5 + $0x918] sm:$0xff]
    %v334 = vld [vmem:[#allocation5 + $0x920] sm:$0xff]
    %v335 = vld [vmem:[#allocation5 + $0x928] sm:$0xff]
    %v336 = vld [vmem:[#allocation5 + $0x930] sm:$0xff]
    %v337 = vld [vmem:[#allocation5 + $0x938] sm:$0xff]
    %v338 = vld [vmem:[#allocation5 + $0x940] sm:$0xff]
    %v339 = vld [vmem:[#allocation5 + $0x948] sm:$0xff]
    %v340 = vld [vmem:[#allocation5 + $0x950] sm:$0xff]
    %v341 = vld [vmem:[#allocation5 + $0x958] sm:$0xff]
    %v342 = vld [vmem:[#allocation5 + $0x960] sm:$0xff]
    %v343 = vld [vmem:[#allocation5 + $0x968] sm:$0xff]
    %v344 = vld [vmem:[#allocation5 + $0x970] sm:$0xff]
    %v345 = vld [vmem:[#allocation5 + $0x978] sm:$0xff]
    %v346 = vld [vmem:[#allocation5 + $0x980] sm:$0xff]
    %v347 = vld [vmem:[#allocation5 + $0x988] sm:$0xff]
    %v348 = vld [vmem:[#allocation5 + $0x990] sm:$0xff]
    %v349 = vld [vmem:[#allocation5 + $0x998] sm:$0xff]
    %v350 = vld [vmem:[#allocation5 + $0x9a0] sm:$0xff]
    %v351 = vld [vmem:[#allocation5 + $0x9a8] sm:$0xff]
    %v352 = vld [vmem:[#allocation5 + $0x9b0] sm:$0xff]
    %v353 = vld [vmem:[#allocation5 + $0x9b8] sm:$0xff]
    %v354 = vld [vmem:[#allocation5 + $0x9c0] sm:$0xff]
    %v355 = vld [vmem:[#allocation5 + $0x9c8] sm:$0xff]
    %v356 = vld [vmem:[#allocation5 + $0x9d0] sm:$0xff]
    %v357 = vld [vmem:[#allocation5 + $0x9d8] sm:$0xff]
    %v358 = vld [vmem:[#allocation5 + $0x9e0] sm:$0xff]
    %v359 = vld [vmem:[#allocation5 + $0x9e8] sm:$0xff]
    %v360 = vld [vmem:[#allocation5 + $0x9f0] sm:$0xff]
    %v361 = vld [vmem:[#allocation5 + $0x9f8] sm:$0xff]
    %v362 = vld [vmem:[#allocation5 + $0xa00] sm:$0xff]
    %v363 = vld [vmem:[#allocation5 + $0xa08] sm:$0xff]
    %v364 = vld [vmem:[#allocation5 + $0xa10] sm:$0xff]
    %v365 = vld [vmem:[#allocation5 + $0xa18] sm:$0xff]
    %v366 = vld [vmem:[#allocation5 + $0xa20] sm:$0xff]
    %v367 = vld [vmem:[#allocation5 + $0xa28] sm:$0xff]
    %v368 = vld [vmem:[#allocation5 + $0xa30] sm:$0xff]
    %v369 = vld [vmem:[#allocation5 + $0xa38] sm:$0xff]
    %v370 = vld [vmem:[#allocation5 + $0xa40] sm:$0xff]
    %v371 = vld [vmem:[#allocation5 + $0xa48] sm:$0xff]
    %v372 = vld [vmem:[#allocation5 + $0xa50] sm:$0xff]
    %v373 = vld [vmem:[#allocation5 + $0xa58] sm:$0xff]
    %v374 = vld [vmem:[#allocation5 + $0xa60] sm:$0xff]
    %v375 = vld [vmem:[#allocation5 + $0xa68] sm:$0xff]
    %v376 = vld [vmem:[#allocation5 + $0xa70] sm:$0xff]
    %v377 = vld [vmem:[#allocation5 + $0xa78] sm:$0xff]
    %v378 = vld [vmem:[#allocation5 + $0xa80] sm:$0xff]
    %v379 = vld [vmem:[#allocation5 + $0xa88] sm:$0xff]
    %v380 = vld [vmem:[#allocation5 + $0xa90] sm:$0xff]
    %v381 = vld [vmem:[#allocation5 + $0xa98] sm:$0xff]
    %v382 = vld [vmem:[#allocation5 + $0xaa0] sm:$0xff]
    %v383 = vld [vmem:[#allocation5 + $0xaa8] sm:$0xff]
    %v384 = vld [vmem:[#allocation5 + $0xab0] sm:$0xff]
    %v385 = vld [vmem:[#allocation5 + $0xab8] sm:$0xff]
    %v386 = vld [vmem:[#allocation5 + $0xac0] sm:$0xff]
    %v387 = vld [vmem:[#allocation5 + $0xac8] sm:$0xff]
    %v388 = vld [vmem:[#allocation5 + $0xad0] sm:$0xff]
    %v389 = vld [vmem:[#allocation5 + $0xad8] sm:$0xff]
    %v390 = vld [vmem:[#allocation5 + $0xae0] sm:$0xff]
    %v391 = vld [vmem:[#allocation5 + $0xae8] sm:$0xff]
    %v392 = vld [vmem:[#allocation5 + $0xaf0] sm:$0xff]
    %v393 = vld [vmem:[#allocation5 + $0xaf8] sm:$0xff]
    %v394 = vld [vmem:[#allocation5 + $0xb00] sm:$0xff]
    %v395 = vld [vmem:[#allocation5 + $0xb08] sm:$0xff]
    %v396 = vld [vmem:[#allocation5 + $0xb10] sm:$0xff]
    %v397 = vld [vmem:[#allocation5 + $0xb18] sm:$0xff]
    %v398 = vld [vmem:[#allocation5 + $0xb20] sm:$0xff]
    %v399 = vld [vmem:[#allocation5 + $0xb28] sm:$0xff]
    %v400 = vld [vmem:[#allocation5 + $0xb30] sm:$0xff]
    %v401 = vld [vmem:[#allocation5 + $0xb38] sm:$0xff]
    %v402 = vld [vmem:[#allocation5 + $0xb40] sm:$0xff]
    %v403 = vld [vmem:[#allocation5 + $0xb48] sm:$0xff]
    %v404 = vld [vmem:[#allocation5 + $0xb50] sm:$0xff]
    %v405 = vld [vmem:[#allocation5 + $0xb58] sm:$0xff]
    %v406 = vld [vmem:[#allocation5 + $0xb60] sm:$0xff]
    %v407 = vld [vmem:[#allocation5 + $0xb68] sm:$0xff]
    %v408 = vld [vmem:[#allocation5 + $0xb70] sm:$0xff]
    %v409 = vld [vmem:[#allocation5 + $0xb78] sm:$0xff]
    %v410 = vld [vmem:[#allocation5 + $0xb80] sm:$0xff]
    %v411 = vld [vmem:[#allocation5 + $0xb88] sm:$0xff]
    %v412 = vld [vmem:[#allocation5 + $0xb90] sm:$0xff]
    %v413 = vld [vmem:[#allocation5 + $0xb98] sm:$0xff]
    %v414 = vld [vmem:[#allocation5 + $0xba0] sm:$0xff]
    %v415 = vld [vmem:[#allocation5 + $0xba8] sm:$0xff]
    %v416 = vld [vmem:[#allocation5 + $0xbb0] sm:$0xff]
    %v417 = vld [vmem:[#allocation5 + $0xbb8] sm:$0xff]
    %v418 = vld [vmem:[#allocation5 + $0xbc0] sm:$0xff]
    %v419 = vld [vmem:[#allocation5 + $0xbc8] sm:$0xff]
    %v420 = vld [vmem:[#allocation5 + $0xbd0] sm:$0xff]
    %v421 = vld [vmem:[#allocation5 + $0xbd8] sm:$0xff]
    %v422 = vld [vmem:[#allocation5 + $0xbe0] sm:$0xff]
    %v423 = vld [vmem:[#allocation5 + $0xbe8] sm:$0xff]
    %v424 = vld [vmem:[#allocation5 + $0xbf0] sm:$0xff]
    %v425 = vld [vmem:[#allocation5 + $0xbf8] sm:$0xff]
    %v426 = vld [vmem:[#allocation5 + $0xc00] sm:$0xff]
    %v427 = vld [vmem:[#allocation5 + $0xc08] sm:$0xff]
    %v428 = vld [vmem:[#allocation5 + $0xc10] sm:$0xff]
    %v429 = vld [vmem:[#allocation5 + $0xc18] sm:$0xff]
    %v430 = vld [vmem:[#allocation5 + $0xc20] sm:$0xff]
    %v431 = vld [vmem:[#allocation5 + $0xc28] sm:$0xff]
    %v432 = vld [vmem:[#allocation5 + $0xc30] sm:$0xff]
    %v433 = vld [vmem:[#allocation5 + $0xc38] sm:$0xff]
    %v434 = vld [vmem:[#allocation5 + $0xc40] sm:$0xff]
    %v435 = vld [vmem:[#allocation5 + $0xc48] sm:$0xff]
    %v436 = vld [vmem:[#allocation5 + $0xc50] sm:$0xff]
    %v437 = vld [vmem:[#allocation5 + $0xc58] sm:$0xff]
    %v438 = vld [vmem:[#allocation5 + $0xc60] sm:$0xff]
    %v439 = vld [vmem:[#allocation5 + $0xc68] sm:$0xff]
    %v440 = vld [vmem:[#allocation5 + $0xc70] sm:$0xff]
    %v441 = vld [vmem:[#allocation5 + $0xc78] sm:$0xff]
    %v442 = vld [vmem:[#allocation5 + $0xc80] sm:$0xff]
    %v443 = vld [vmem:[#allocation5 + $0xc88] sm:$0xff]
    %v444 = vld [vmem:[#allocation5 + $0xc90] sm:$0xff]
    %v445 = vld [vmem:[#allocation5 + $0xc98] sm:$0xff]
    %v446 = vld [vmem:[#allocation5 + $0xca0] sm:$0xff]
    %v447 = vld [vmem:[#allocation5 + $0xca8] sm:$0xff]
    %v448 = vld [vmem:[#allocation5 + $0xcb0] sm:$0xff]
    %v449 = vld [vmem:[#allocation5 + $0xcb8] sm:$0xff]
    %v450 = vld [vmem:[#allocation5 + $0xcc0] sm:$0xff]
    %v451 = vld [vmem:[#allocation5 + $0xcc8] sm:$0xff]
    %v452 = vld [vmem:[#allocation5 + $0xcd0] sm:$0xff]
    %v453 = vld [vmem:[#allocation5 + $0xcd8] sm:$0xff]
    %v454 = vld [vmem:[#allocation5 + $0xce0] sm:$0xff]
    %v455 = vld [vmem:[#allocation5 + $0xce8] sm:$0xff]
    %v456 = vld [vmem:[#allocation5 + $0xcf0] sm:$0xff]
    %v457 = vld [vmem:[#allocation5 + $0xcf8] sm:$0xff]
    %v458 = vld [vmem:[#allocation5 + $0xd00] sm:$0xff]
    %v459 = vld [vmem:[#allocation5 + $0xd08] sm:$0xff]
    %v460 = vld [vmem:[#allocation5 + $0xd10] sm:$0xff]
    %v461 = vld [vmem:[#allocation5 + $0xd18] sm:$0xff]
    %v462 = vld [vmem:[#allocation5 + $0xd20] sm:$0xff]
    %v463 = vld [vmem:[#allocation5 + $0xd28] sm:$0xff]
    %v464 = vld [vmem:[#allocation5 + $0xd30] sm:$0xff]
    %v465 = vld [vmem:[#allocation5 + $0xd38] sm:$0xff]
    %v466 = vld [vmem:[#allocation5 + $0xd40] sm:$0xff]
    %v467 = vld [vmem:[#allocation5 + $0xd48] sm:$0xff]
    %v468 = vld [vmem:[#allocation5 + $0xd50] sm:$0xff]
    %v469 = vld [vmem:[#allocation5 + $0xd58] sm:$0xff]
    %v470 = vld [vmem:[#allocation5 + $0xd60] sm:$0xff]
    %v471 = vld [vmem:[#allocation5 + $0xd68] sm:$0xff]
    %v472 = vld [vmem:[#allocation5 + $0xd70] sm:$0xff]
    %v473 = vld [vmem:[#allocation5 + $0xd78] sm:$0xff]
    %v474 = vld [vmem:[#allocation5 + $0xd80] sm:$0xff]
    %v475 = vld [vmem:[#allocation5 + $0xd88] sm:$0xff]
    %v476 = vld [vmem:[#allocation5 + $0xd90] sm:$0xff]
    %v477 = vld [vmem:[#allocation5 + $0xd98] sm:$0xff]
    %v478 = vld [vmem:[#allocation5 + $0xda0] sm:$0xff]
    %v479 = vld [vmem:[#allocation5 + $0xda8] sm:$0xff]
    %v480 = vld [vmem:[#allocation5 + $0xdb0] sm:$0xff]
    %v481 = vld [vmem:[#allocation5 + $0xdb8] sm:$0xff]
    %v482 = vld [vmem:[#allocation5 + $0xdc0] sm:$0xff]
    %v483 = vld [vmem:[#allocation5 + $0xdc8] sm:$0xff]
    %v484 = vld [vmem:[#allocation5 + $0xdd0] sm:$0xff]
    %v485 = vld [vmem:[#allocation5 + $0xdd8] sm:$0xff]
    %v486 = vld [vmem:[#allocation5 + $0xde0] sm:$0xff]
    %v487 = vld [vmem:[#allocation5 + $0xde8] sm:$0xff]
    %v488 = vld [vmem:[#allocation5 + $0xdf0] sm:$0xff]
    %v489 = vld [vmem:[#allocation5 + $0xdf8] sm:$0xff]
    %v490 = vld [vmem:[#allocation5 + $0xe00] sm:$0xff]
    %v491 = vld [vmem:[#allocation5 + $0xe08] sm:$0xff]
    %v492 = vld [vmem:[#allocation5 + $0xe10] sm:$0xff]
    %v493 = vld [vmem:[#allocation5 + $0xe18] sm:$0xff]
    %v494 = vld [vmem:[#allocation5 + $0xe20] sm:$0xff]
    %v495 = vld [vmem:[#allocation5 + $0xe28] sm:$0xff]
    %v496 = vld [vmem:[#allocation5 + $0xe30] sm:$0xff]
    %v497 = vld [vmem:[#allocation5 + $0xe38] sm:$0xff]
    %v498 = vld [vmem:[#allocation5 + $0xe40] sm:$0xff]
    %v499 = vld [vmem:[#allocation5 + $0xe48] sm:$0xff]
    %v500 = vld [vmem:[#allocation5 + $0xe50] sm:$0xff]
    %v501 = vld [vmem:[#allocation5 + $0xe58] sm:$0xff]
    %v502 = vld [vmem:[#allocation5 + $0xe60] sm:$0xff]
    %v503 = vld [vmem:[#allocation5 + $0xe68] sm:$0xff]
    %v504 = vld [vmem:[#allocation5 + $0xe70] sm:$0xff]
    %v505 = vld [vmem:[#allocation5 + $0xe78] sm:$0xff]
    %v506 = vld [vmem:[#allocation5 + $0xe80] sm:$0xff]
    %v507 = vld [vmem:[#allocation5 + $0xe88] sm:$0xff]
    %v508 = vld [vmem:[#allocation5 + $0xe90] sm:$0xff]
    %v509 = vld [vmem:[#allocation5 + $0xe98] sm:$0xff]
    %v510 = vld [vmem:[#allocation5 + $0xea0] sm:$0xff]
    %v511 = vld [vmem:[#allocation5 + $0xea8] sm:$0xff]
    %v512 = vld [vmem:[#allocation5 + $0xeb0] sm:$0xff]
    %v513 = vld [vmem:[#allocation5 + $0xeb8] sm:$0xff]
    %v514 = vld [vmem:[#allocation5 + $0xec0] sm:$0xff]
    %v515 = vld [vmem:[#allocation5 + $0xec8] sm:$0xff]
    %v516 = vld [vmem:[#allocation5 + $0xed0] sm:$0xff]
    %v517 = vld [vmem:[#allocation5 + $0xed8] sm:$0xff]
    %v518 = vld [vmem:[#allocation5 + $0xee0] sm:$0xff]
    %v519 = vld [vmem:[#allocation5 + $0xee8] sm:$0xff]
    %v520 = vld [vmem:[#allocation5 + $0xef0] sm:$0xff]
    %v521 = vld [vmem:[#allocation5 + $0xef8] sm:$0xff]
    %v522 = vld [vmem:[#allocation5 + $0xf00] sm:$0xff]
    %v523 = vld [vmem:[#allocation5 + $0xf08] sm:$0xff]
    %v524 = vld [vmem:[#allocation5 + $0xf10] sm:$0xff]
    %v525 = vld [vmem:[#allocation5 + $0xf18] sm:$0xff]
    %v526 = vld [vmem:[#allocation5 + $0xf20] sm:$0xff]
    %v527 = vld [vmem:[#allocation5 + $0xf28] sm:$0xff]
    %v528 = vld [vmem:[#allocation5 + $0xf30] sm:$0xff]
    %v529 = vld [vmem:[#allocation5 + $0xf38] sm:$0xff]
    %v530 = vld [vmem:[#allocation5 + $0xf40] sm:$0xff]
    %v531 = vld [vmem:[#allocation5 + $0xf48] sm:$0xff]
    %v532 = vld [vmem:[#allocation5 + $0xf50] sm:$0xff]
    %v533 = vld [vmem:[#allocation5 + $0xf58] sm:$0xff]
    %v534 = vld [vmem:[#allocation5 + $0xf60] sm:$0xff]
    %v535 = vld [vmem:[#allocation5 + $0xf68] sm:$0xff]
    %v536 = vld [vmem:[#allocation5 + $0xf70] sm:$0xff]
    %v537 = vld [vmem:[#allocation5 + $0xf78] sm:$0xff]
    %v538 = vld [vmem:[#allocation5 + $0xf80] sm:$0xff]
    %v539 = vld [vmem:[#allocation5 + $0xf88] sm:$0xff]
    %v540 = vld [vmem:[#allocation5 + $0xf90] sm:$0xff]
    %v541 = vld [vmem:[#allocation5 + $0xf98] sm:$0xff]
    %v542 = vld [vmem:[#allocation5 + $0xfa0] sm:$0xff]
    %v543 = vld [vmem:[#allocation5 + $0xfa8] sm:$0xff]
    %v544 = vld [vmem:[#allocation5 + $0xfb0] sm:$0xff]
    %v545 = vld [vmem:[#allocation5 + $0xfb8] sm:$0xff]
    %v546 = vld [vmem:[#allocation5 + $0xfc0] sm:$0xff]
    %v547 = vld [vmem:[#allocation5 + $0xfc8] sm:$0xff]
    %v548 = vld [vmem:[#allocation5 + $0xfd0] sm:$0xff]
    %v549 = vld [vmem:[#allocation5 + $0xfd8] sm:$0xff]
    %v550 = vld [vmem:[#allocation5 + $0xfe0] sm:$0xff]
    %v551 = vld [vmem:[#allocation5 + $0xfe8] sm:$0xff]
    %v552 = vld [vmem:[#allocation5 + $0xff0] sm:$0xff]
    %v553 = vld [vmem:[#allocation5 + $0xff8] sm:$0xff]
    %v554 = vld [vmem:[#allocation5 + $0x1000] sm:$0xff]
    %v555 = vld [vmem:[#allocation5 + $0x1008] sm:$0xff]
    %v556 = vld [vmem:[#allocation5 + $0x1010] sm:$0xff]
    %v557 = vld [vmem:[#allocation5 + $0x1018] sm:$0xff]
    %v558 = vld [vmem:[#allocation5 + $0x1020] sm:$0xff]
    %v559 = vld [vmem:[#allocation5 + $0x1028] sm:$0xff]
    %v560 = vld [vmem:[#allocation5 + $0x1030] sm:$0xff]
    %v561 = vld [vmem:[#allocation5 + $0x1038] sm:$0xff]
    %v562 = vld [vmem:[#allocation5 + $0x1040] sm:$0xff]
    %v563 = vld [vmem:[#allocation5 + $0x1048] sm:$0xff]
    %v564 = vld [vmem:[#allocation5 + $0x1050] sm:$0xff]
    %v565 = vld [vmem:[#allocation5 + $0x1058] sm:$0xff]
    %v566 = vld [vmem:[#allocation5 + $0x1060] sm:$0xff]
    %v567 = vld [vmem:[#allocation5 + $0x1068] sm:$0xff]
    %v568 = vld [vmem:[#allocation5 + $0x1070] sm:$0xff]
    %v569 = vld [vmem:[#allocation5 + $0x1078] sm:$0xff]
    %v570 = vld [vmem:[#allocation5 + $0x1080] sm:$0xff]
    %v571 = vld [vmem:[#allocation5 + $0x1088] sm:$0xff]
    %v572 = vld [vmem:[#allocation5 + $0x1090] sm:$0xff]
    %v573 = vld [vmem:[#allocation5 + $0x1098] sm:$0xff]
    %v574 = vld [vmem:[#allocation5 + $0x10a0] sm:$0xff]
    %v575 = vld [vmem:[#allocation5 + $0x10a8] sm:$0xff]
    %v576 = vld [vmem:[#allocation5 + $0x10b0] sm:$0xff]
    %v577 = vld [vmem:[#allocation5 + $0x10b8] sm:$0xff]
    %v578 = vld [vmem:[#allocation5 + $0x10c0] sm:$0xff]
    %v579 = vld [vmem:[#allocation5 + $0x10c8] sm:$0xff]
    %v580 = vld [vmem:[#allocation5 + $0x10d0] sm:$0xff]
    %v581 = vld [vmem:[#allocation5 + $0x10d8] sm:$0xff]
    %v582 = vld [vmem:[#allocation5 + $0x10e0] sm:$0xff]
    %v583 = vld [vmem:[#allocation5 + $0x10e8] sm:$0xff]
    %v584 = vld [vmem:[#allocation5 + $0x10f0] sm:$0xff]
    %v585 = vld [vmem:[#allocation5 + $0x10f8] sm:$0xff]
    %v586 = vld [vmem:[#allocation5 + $0x1100] sm:$0xff]
    %v587 = vld [vmem:[#allocation5 + $0x1108] sm:$0xff]
    %v588 = vld [vmem:[#allocation5 + $0x1110] sm:$0xff]
    %v589 = vld [vmem:[#allocation5 + $0x1118] sm:$0xff]
    %v590 = vld [vmem:[#allocation5 + $0x1120] sm:$0xff]
    %v591 = vld [vmem:[#allocation5 + $0x1128] sm:$0xff]
    %v592 = vld [vmem:[#allocation5 + $0x1130] sm:$0xff]
    %v593 = vld [vmem:[#allocation5 + $0x1138] sm:$0xff]
    %v594 = vld [vmem:[#allocation5 + $0x1140] sm:$0xff]
    %v595 = vld [vmem:[#allocation5 + $0x1148] sm:$0xff]
    %v596 = vld [vmem:[#allocation5 + $0x1150] sm:$0xff]
    %v597 = vld [vmem:[#allocation5 + $0x1158] sm:$0xff]
    %v598 = vld [vmem:[#allocation5 + $0x1160] sm:$0xff]
    %v599 = vld [vmem:[#allocation5 + $0x1168] sm:$0xff]
    %v600 = vld [vmem:[#allocation5 + $0x1170] sm:$0xff]
    %v601 = vld [vmem:[#allocation5 + $0x1178] sm:$0xff]
    %v602 = vld [vmem:[#allocation5 + $0x1180] sm:$0xff]
    %v603 = vld [vmem:[#allocation5 + $0x1188] sm:$0xff]
    %v604 = vld [vmem:[#allocation5 + $0x1190] sm:$0xff]
    %v605 = vld [vmem:[#allocation5 + $0x1198] sm:$0xff]
    %v606 = vld [vmem:[#allocation5 + $0x11a0] sm:$0xff]
    %v607 = vld [vmem:[#allocation5 + $0x11a8] sm:$0xff]
    %v608 = vld [vmem:[#allocation5 + $0x11b0] sm:$0xff]
    %v609 = vld [vmem:[#allocation5 + $0x11b8] sm:$0xff]
    %v610 = vld [vmem:[#allocation5 + $0x11c0] sm:$0xff]
    %v611 = vld [vmem:[#allocation5 + $0x11c8] sm:$0xff]
    %v612 = vld [vmem:[#allocation5 + $0x11d0] sm:$0xff]
    %v613 = vld [vmem:[#allocation5 + $0x11d8] sm:$0xff]
    %v614 = vld [vmem:[#allocation5 + $0x11e0] sm:$0xff]
    %v615 = vld [vmem:[#allocation5 + $0x11e8] sm:$0xff]
    %v616 = vld [vmem:[#allocation5 + $0x11f0] sm:$0xff]
    %v617 = vld [vmem:[#allocation5 + $0x11f8] sm:$0xff]
    %v618 = vld [vmem:[#allocation5 + $0x1200] sm:$0xff]
    %v619 = vld [vmem:[#allocation5 + $0x1208] sm:$0xff]
    %v620 = vld [vmem:[#allocation5 + $0x1210] sm:$0xff]
    %v621 = vld [vmem:[#allocation5 + $0x1218] sm:$0xff]
    %v622 = vld [vmem:[#allocation5 + $0x1220] sm:$0xff]
    %v623 = vld [vmem:[#allocation5 + $0x1228] sm:$0xff]
    %v624 = vld [vmem:[#allocation5 + $0x1230] sm:$0xff]
    %v625 = vld [vmem:[#allocation5 + $0x1238] sm:$0xff]
    %v626 = vld [vmem:[#allocation5 + $0x1240] sm:$0xff]
    %v627 = vld [vmem:[#allocation5 + $0x1248] sm:$0xff]
    %v628 = vld [vmem:[#allocation5 + $0x1250] sm:$0xff]
    %v629 = vld [vmem:[#allocation5 + $0x1258] sm:$0xff]
    %v630 = vld [vmem:[#allocation5 + $0x1260] sm:$0xff]
    %v631 = vld [vmem:[#allocation5 + $0x1268] sm:$0xff]
    %v632 = vld [vmem:[#allocation5 + $0x1270] sm:$0xff]
    %v633 = vld [vmem:[#allocation5 + $0x1278] sm:$0xff]
    %v634 = vld [vmem:[#allocation5 + $0x1280] sm:$0xff]
    %v635 = vld [vmem:[#allocation5 + $0x1288] sm:$0xff]
    %v636 = vld [vmem:[#allocation5 + $0x1290] sm:$0xff]
    %v637 = vld [vmem:[#allocation5 + $0x1298] sm:$0xff]
    %v638 = vld [vmem:[#allocation5 + $0x12a0] sm:$0xff]
    %v639 = vld [vmem:[#allocation5 + $0x12a8] sm:$0xff]
    %v640 = vld [vmem:[#allocation5 + $0x12b0] sm:$0xff]
    %v641 = vld [vmem:[#allocation5 + $0x12b8] sm:$0xff]
    %v642 = vld [vmem:[#allocation5 + $0x12c0] sm:$0xff]
    %v643 = vld [vmem:[#allocation5 + $0x12c8] sm:$0xff]
    %v644 = vld [vmem:[#allocation5 + $0x12d0] sm:$0xff]
    %v645 = vld [vmem:[#allocation5 + $0x12d8] sm:$0xff]
    %v646 = vld [vmem:[#allocation5 + $0x12e0] sm:$0xff]
    %v647 = vld [vmem:[#allocation5 + $0x12e8] sm:$0xff]
    %v648 = vld [vmem:[#allocation5 + $0x12f0] sm:$0xff]
    %v649 = vld [vmem:[#allocation5 + $0x12f8] sm:$0xff]
    %v650 = vld [vmem:[#allocation5 + $0x1300] sm:$0xff]
    %v651 = vld [vmem:[#allocation5 + $0x1308] sm:$0xff]
    %v652 = vld [vmem:[#allocation5 + $0x1310] sm:$0xff]
    %v653 = vld [vmem:[#allocation5 + $0x1318] sm:$0xff]
    %v654 = vld [vmem:[#allocation5 + $0x1320] sm:$0xff]
    %v655 = vld [vmem:[#allocation5 + $0x1328] sm:$0xff]
    %v656 = vld [vmem:[#allocation5 + $0x1330] sm:$0xff]
    %v657 = vld [vmem:[#allocation5 + $0x1338] sm:$0xff]
    %v658 = vld [vmem:[#allocation5 + $0x1340] sm:$0xff]
    %v659 = vld [vmem:[#allocation5 + $0x1348] sm:$0xff]
    %v660 = vld [vmem:[#allocation5 + $0x1350] sm:$0xff]
    %v661 = vld [vmem:[#allocation5 + $0x1358] sm:$0xff]
    %v662 = vld [vmem:[#allocation5 + $0x1360] sm:$0xff]
    %v663 = vld [vmem:[#allocation5 + $0x1368] sm:$0xff]
    %v664 = vld [vmem:[#allocation5 + $0x1370] sm:$0xff]
    %v665 = vld [vmem:[#allocation5 + $0x1378] sm:$0xff]
    %v666 = vld [vmem:[#allocation5 + $0x1380] sm:$0xff]
    %v667 = vld [vmem:[#allocation5 + $0x1388] sm:$0xff]
    %v668 = vld [vmem:[#allocation5 + $0x1390] sm:$0xff]
    %v669 = vld [vmem:[#allocation5 + $0x1398] sm:$0xff]
    %v670 = vld [vmem:[#allocation5 + $0x13a0] sm:$0xff]
    %v671 = vld [vmem:[#allocation5 + $0x13a8] sm:$0xff]
    %v672 = vld [vmem:[#allocation5 + $0x13b0] sm:$0xff]
    %v673 = vld [vmem:[#allocation5 + $0x13b8] sm:$0xff]
    %v674 = vld [vmem:[#allocation5 + $0x13c0] sm:$0xff]
    %v675 = vld [vmem:[#allocation5 + $0x13c8] sm:$0xff]
    %v676 = vld [vmem:[#allocation5 + $0x13d0] sm:$0xff]
    %v677 = vld [vmem:[#allocation5 + $0x13d8] sm:$0xff]
    %v678 = vld [vmem:[#allocation5 + $0x13e0] sm:$0xff]
    %v679 = vld [vmem:[#allocation5 + $0x13e8] sm:$0xff]
    %v680 = vld [vmem:[#allocation5 + $0x13f0] sm:$0xff]
    %v681 = vld [vmem:[#allocation5 + $0x13f8] sm:$0xff]
    %v686 = vunpack.c.l.b16 %v38
    %v687 = vunpack.c.h.b16 %v38
    %v688 = vunpack.c.l.b16 %v39
    %v689 = vunpack.c.h.b16 %v39
    %v690 = vunpack.c.l.b16 %v40
    %v691 = vunpack.c.h.b16 %v40
    %v692 = vunpack.c.l.b16 %v41
    %v693 = vunpack.c.h.b16 %v41
    %v694 = vpack.c.b16 %v686, %v686
    %v695 = vpack.c.b16 %v687, %v687
    %v696 = vpack.c.b16 %v688, %v688
    %v697 = vpack.c.b16 %v689, %v689
    %v698 = vpack.c.b16 %v690, %v690
    %v699 = vpack.c.b16 %v691, %v691
    %v700 = vpack.c.b16 %v692, %v692
    %v701 = vpack.c.b16 %v693, %v693
    %v1350 = vunpack.c.l.b16 %v42
    %v1351 = vunpack.c.h.b16 %v42
    %v1352 = vunpack.c.l.b16 %v43
    %v1353 = vunpack.c.h.b16 %v43
    %v1354 = vunpack.c.l.b16 %v44
    %v1355 = vunpack.c.h.b16 %v44
    %v1356 = vunpack.c.l.b16 %v45
    %v1357 = vunpack.c.h.b16 %v45
    %v1358 = vunpack.c.l.b16 %v46
    %v1359 = vunpack.c.h.b16 %v46
    %v1360 = vunpack.c.l.b16 %v47
    %v1361 = vunpack.c.h.b16 %v47
    %v1362 = vunpack.c.l.b16 %v48
    %v1363 = vunpack.c.h.b16 %v48
    %v1364 = vunpack.c.l.b16 %v49
    %v1365 = vunpack.c.h.b16 %v49
    %v1366 = vunpack.c.l.b16 %v50
    %v1367 = vunpack.c.h.b16 %v50
    %v1368 = vunpack.c.l.b16 %v51
    %v1369 = vunpack.c.h.b16 %v51
    %v1370 = vunpack.c.l.b16 %v52
    %v1371 = vunpack.c.h.b16 %v52
    %v1372 = vunpack.c.l.b16 %v53
    %v1373 = vunpack.c.h.b16 %v53
    %v1374 = vunpack.c.l.b16 %v54
    %v1375 = vunpack.c.h.b16 %v54
    %v1376 = vunpack.c.l.b16 %v55
    %v1377 = vunpack.c.h.b16 %v55
    %v1378 = vunpack.c.l.b16 %v56
    %v1379 = vunpack.c.h.b16 %v56
    %v1380 = vunpack.c.l.b16 %v57
    %v1381 = vunpack.c.h.b16 %v57
    %v1382 = vunpack.c.l.b16 %v58
    %v1383 = vunpack.c.h.b16 %v58
    %v1384 = vunpack.c.l.b16 %v59
    %v1385 = vunpack.c.h.b16 %v59
    %v1386 = vunpack.c.l.b16 %v60
    %v1387 = vunpack.c.h.b16 %v60
    %v1388 = vunpack.c.l.b16 %v61
    %v1389 = vunpack.c.h.b16 %v61
    %v1390 = vunpack.c.l.b16 %v62
    %v1391 = vunpack.c.h.b16 %v62
    %v1392 = vunpack.c.l.b16 %v63
    %v1393 = vunpack.c.h.b16 %v63
    %v1394 = vunpack.c.l.b16 %v64
    %v1395 = vunpack.c.h.b16 %v64
    %v1396 = vunpack.c.l.b16 %v65
    %v1397 = vunpack.c.h.b16 %v65
    %v1398 = vunpack.c.l.b16 %v66
    %v1399 = vunpack.c.h.b16 %v66
    %v1400 = vunpack.c.l.b16 %v67
    %v1401 = vunpack.c.h.b16 %v67
    %v1402 = vunpack.c.l.b16 %v68
    %v1403 = vunpack.c.h.b16 %v68
    %v1404 = vunpack.c.l.b16 %v69
    %v1405 = vunpack.c.h.b16 %v69
    %v1406 = vunpack.c.l.b16 %v70
    %v1407 = vunpack.c.h.b16 %v70
    %v1408 = vunpack.c.l.b16 %v71
    %v1409 = vunpack.c.h.b16 %v71
    %v1410 = vunpack.c.l.b16 %v72
    %v1411 = vunpack.c.h.b16 %v72
    %v1412 = vunpack.c.l.b16 %v73
    %v1413 = vunpack.c.h.b16 %v73
    %v1414 = vunpack.c.l.b16 %v74
    %v1415 = vunpack.c.h.b16 %v74
    %v1416 = vunpack.c.l.b16 %v75
    %v1417 = vunpack.c.h.b16 %v75
    %v1418 = vunpack.c.l.b16 %v76
    %v1419 = vunpack.c.h.b16 %v76
    %v1420 = vunpack.c.l.b16 %v77
    %v1421 = vunpack.c.h.b16 %v77
    %v1422 = vunpack.c.l.b16 %v78
    %v1423 = vunpack.c.h.b16 %v78
    %v1424 = vunpack.c.l.b16 %v79
    %v1425 = vunpack.c.h.b16 %v79
    %v1426 = vunpack.c.l.b16 %v80
    %v1427 = vunpack.c.h.b16 %v80
    %v1428 = vunpack.c.l.b16 %v81
    %v1429 = vunpack.c.h.b16 %v81
    %v1430 = vunpack.c.l.b16 %v82
    %v1431 = vunpack.c.h.b16 %v82
    %v1432 = vunpack.c.l.b16 %v83
    %v1433 = vunpack.c.h.b16 %v83
    %v1434 = vunpack.c.l.b16 %v84
    %v1435 = vunpack.c.h.b16 %v84
    %v1436 = vunpack.c.l.b16 %v85
    %v1437 = vunpack.c.h.b16 %v85
    %v1438 = vunpack.c.l.b16 %v86
    %v1439 = vunpack.c.h.b16 %v86
    %v1440 = vunpack.c.l.b16 %v87
    %v1441 = vunpack.c.h.b16 %v87
    %v1442 = vunpack.c.l.b16 %v88
    %v1443 = vunpack.c.h.b16 %v88
    %v1444 = vunpack.c.l.b16 %v89
    %v1445 = vunpack.c.h.b16 %v89
    %v1446 = vunpack.c.l.b16 %v90
    %v1447 = vunpack.c.h.b16 %v90
    %v1448 = vunpack.c.l.b16 %v91
    %v1449 = vunpack.c.h.b16 %v91
    %v1450 = vunpack.c.l.b16 %v92
    %v1451 = vunpack.c.h.b16 %v92
    %v1452 = vunpack.c.l.b16 %v93
    %v1453 = vunpack.c.h.b16 %v93
    %v1454 = vunpack.c.l.b16 %v94
    %v1455 = vunpack.c.h.b16 %v94
    %v1456 = vunpack.c.l.b16 %v95
    %v1457 = vunpack.c.h.b16 %v95
    %v1458 = vunpack.c.l.b16 %v96
    %v1459 = vunpack.c.h.b16 %v96
    %v1460 = vunpack.c.l.b16 %v97
    %v1461 = vunpack.c.h.b16 %v97
    %v1462 = vunpack.c.l.b16 %v98
    %v1463 = vunpack.c.h.b16 %v98
    %v1464 = vunpack.c.l.b16 %v99
    %v1465 = vunpack.c.h.b16 %v99
    %v1466 = vunpack.c.l.b16 %v100
    %v1467 = vunpack.c.h.b16 %v100
    %v1468 = vunpack.c.l.b16 %v101
    %v1469 = vunpack.c.h.b16 %v101
    %v1470 = vunpack.c.l.b16 %v102
    %v1471 = vunpack.c.h.b16 %v102
    %v1472 = vunpack.c.l.b16 %v103
    %v1473 = vunpack.c.h.b16 %v103
    %v1474 = vunpack.c.l.b16 %v104
    %v1475 = vunpack.c.h.b16 %v104
    %v1476 = vunpack.c.l.b16 %v105
    %v1477 = vunpack.c.h.b16 %v105
    %v1478 = vunpack.c.l.b16 %v106
    %v1479 = vunpack.c.h.b16 %v106
    %v1480 = vunpack.c.l.b16 %v107
    %v1481 = vunpack.c.h.b16 %v107
    %v1482 = vunpack.c.l.b16 %v108
    %v1483 = vunpack.c.h.b16 %v108
    %v1484 = vunpack.c.l.b16 %v109
    %v1485 = vunpack.c.h.b16 %v109
    %v1486 = vunpack.c.l.b16 %v110
    %v1487 = vunpack.c.h.b16 %v110
    %v1488 = vunpack.c.l.b16 %v111
    %v1489 = vunpack.c.h.b16 %v111
    %v1490 = vunpack.c.l.b16 %v112
    %v1491 = vunpack.c.h.b16 %v112
    %v1492 = vunpack.c.l.b16 %v113
    %v1493 = vunpack.c.h.b16 %v113
    %v1494 = vunpack.c.l.b16 %v114
    %v1495 = vunpack.c.h.b16 %v114
    %v1496 = vunpack.c.l.b16 %v115
    %v1497 = vunpack.c.h.b16 %v115
    %v1498 = vunpack.c.l.b16 %v116
    %v1499 = vunpack.c.h.b16 %v116
    %v1500 = vunpack.c.l.b16 %v117
    %v1501 = vunpack.c.h.b16 %v117
    %v1502 = vunpack.c.l.b16 %v118
    %v1503 = vunpack.c.h.b16 %v118
    %v1504 = vunpack.c.l.b16 %v119
    %v1505 = vunpack.c.h.b16 %v119
    %v1506 = vunpack.c.l.b16 %v120
    %v1507 = vunpack.c.h.b16 %v120
    %v1508 = vunpack.c.l.b16 %v121
    %v1509 = vunpack.c.h.b16 %v121
    %v1510 = vunpack.c.l.b16 %v122
    %v1511 = vunpack.c.h.b16 %v122
    %v1512 = vunpack.c.l.b16 %v123
    %v1513 = vunpack.c.h.b16 %v123
    %v1514 = vunpack.c.l.b16 %v124
    %v1515 = vunpack.c.h.b16 %v124
    %v1516 = vunpack.c.l.b16 %v125
    %v1517 = vunpack.c.h.b16 %v125
    %v1518 = vunpack.c.l.b16 %v126
    %v1519 = vunpack.c.h.b16 %v126
    %v1520 = vunpack.c.l.b16 %v127
    %v1521 = vunpack.c.h.b16 %v127
    %v1522 = vunpack.c.l.b16 %v128
    %v1523 = vunpack.c.h.b16 %v128
    %v1524 = vunpack.c.l.b16 %v129
    %v1525 = vunpack.c.h.b16 %v129
    %v1526 = vunpack.c.l.b16 %v130
    %v1527 = vunpack.c.h.b16 %v130
    %v1528 = vunpack.c.l.b16 %v131
    %v1529 = vunpack.c.h.b16 %v131
    %v1530 = vunpack.c.l.b16 %v132
    %v1531 = vunpack.c.h.b16 %v132
    %v1532 = vunpack.c.l.b16 %v133
    %v1533 = vunpack.c.h.b16 %v133
    %v1534 = vunpack.c.l.b16 %v134
    %v1535 = vunpack.c.h.b16 %v134
    %v1536 = vunpack.c.l.b16 %v135
    %v1537 = vunpack.c.h.b16 %v135
    %v1538 = vunpack.c.l.b16 %v136
    %v1539 = vunpack.c.h.b16 %v136
    %v1540 = vunpack.c.l.b16 %v137
    %v1541 = vunpack.c.h.b16 %v137
    %v1542 = vunpack.c.l.b16 %v138
    %v1543 = vunpack.c.h.b16 %v138
    %v1544 = vunpack.c.l.b16 %v139
    %v1545 = vunpack.c.h.b16 %v139
    %v1546 = vunpack.c.l.b16 %v140
    %v1547 = vunpack.c.h.b16 %v140
    %v1548 = vunpack.c.l.b16 %v141
    %v1549 = vunpack.c.h.b16 %v141
    %v1550 = vunpack.c.l.b16 %v142
    %v1551 = vunpack.c.h.b16 %v142
    %v1552 = vunpack.c.l.b16 %v143
    %v1553 = vunpack.c.h.b16 %v143
    %v1554 = vunpack.c.l.b16 %v144
    %v1555 = vunpack.c.h.b16 %v144
    %v1556 = vunpack.c.l.b16 %v145
    %v1557 = vunpack.c.h.b16 %v145
    %v1558 = vunpack.c.l.b16 %v146
    %v1559 = vunpack.c.h.b16 %v146
    %v1560 = vunpack.c.l.b16 %v147
    %v1561 = vunpack.c.h.b16 %v147
    %v1562 = vunpack.c.l.b16 %v148
    %v1563 = vunpack.c.h.b16 %v148
    %v1564 = vunpack.c.l.b16 %v149
    %v1565 = vunpack.c.h.b16 %v149
    %v1566 = vunpack.c.l.b16 %v150
    %v1567 = vunpack.c.h.b16 %v150
    %v1568 = vunpack.c.l.b16 %v151
    %v1569 = vunpack.c.h.b16 %v151
    %v1570 = vunpack.c.l.b16 %v152
    %v1571 = vunpack.c.h.b16 %v152
    %v1572 = vunpack.c.l.b16 %v153
    %v1573 = vunpack.c.h.b16 %v153
    %v1574 = vunpack.c.l.b16 %v154
    %v1575 = vunpack.c.h.b16 %v154
    %v1576 = vunpack.c.l.b16 %v155
    %v1577 = vunpack.c.h.b16 %v155
    %v1578 = vunpack.c.l.b16 %v156
    %v1579 = vunpack.c.h.b16 %v156
    %v1580 = vunpack.c.l.b16 %v157
    %v1581 = vunpack.c.h.b16 %v157
    %v1582 = vunpack.c.l.b16 %v158
    %v1583 = vunpack.c.h.b16 %v158
    %v1584 = vunpack.c.l.b16 %v159
    %v1585 = vunpack.c.h.b16 %v159
    %v1586 = vunpack.c.l.b16 %v160
    %v1587 = vunpack.c.h.b16 %v160
    %v1588 = vunpack.c.l.b16 %v161
    %v1589 = vunpack.c.h.b16 %v161
    %v1590 = vunpack.c.l.b16 %v162
    %v1591 = vunpack.c.h.b16 %v162
    %v1592 = vunpack.c.l.b16 %v163
    %v1593 = vunpack.c.h.b16 %v163
    %v1594 = vunpack.c.l.b16 %v164
    %v1595 = vunpack.c.h.b16 %v164
    %v1596 = vunpack.c.l.b16 %v165
    %v1597 = vunpack.c.h.b16 %v165
    %v1598 = vunpack.c.l.b16 %v166
    %v1599 = vunpack.c.h.b16 %v166
    %v1600 = vunpack.c.l.b16 %v167
    %v1601 = vunpack.c.h.b16 %v167
    %v1602 = vunpack.c.l.b16 %v168
    %v1603 = vunpack.c.h.b16 %v168
    %v1604 = vunpack.c.l.b16 %v169
    %v1605 = vunpack.c.h.b16 %v169
    %v1606 = vunpack.c.l.b16 %v170
    %v1607 = vunpack.c.h.b16 %v170
    %v1608 = vunpack.c.l.b16 %v171
    %v1609 = vunpack.c.h.b16 %v171
    %v1610 = vunpack.c.l.b16 %v172
    %v1611 = vunpack.c.h.b16 %v172
    %v1612 = vunpack.c.l.b16 %v173
    %v1613 = vunpack.c.h.b16 %v173
    %v1614 = vunpack.c.l.b16 %v174
    %v1615 = vunpack.c.h.b16 %v174
    %v1616 = vunpack.c.l.b16 %v175
    %v1617 = vunpack.c.h.b16 %v175
    %v1618 = vunpack.c.l.b16 %v176
    %v1619 = vunpack.c.h.b16 %v176
    %v1620 = vunpack.c.l.b16 %v177
    %v1621 = vunpack.c.h.b16 %v177
    %v1622 = vunpack.c.l.b16 %v178
    %v1623 = vunpack.c.h.b16 %v178
    %v1624 = vunpack.c.l.b16 %v179
    %v1625 = vunpack.c.h.b16 %v179
    %v1626 = vunpack.c.l.b16 %v180
    %v1627 = vunpack.c.h.b16 %v180
    %v1628 = vunpack.c.l.b16 %v181
    %v1629 = vunpack.c.h.b16 %v181
    %v1630 = vunpack.c.l.b16 %v182
    %v1631 = vunpack.c.h.b16 %v182
    %v1632 = vunpack.c.l.b16 %v183
    %v1633 = vunpack.c.h.b16 %v183
    %v1634 = vunpack.c.l.b16 %v184
    %v1635 = vunpack.c.h.b16 %v184
    %v1636 = vunpack.c.l.b16 %v185
    %v1637 = vunpack.c.h.b16 %v185
    %v1638 = vunpack.c.l.b16 %v186
    %v1639 = vunpack.c.h.b16 %v186
    %v1640 = vunpack.c.l.b16 %v187
    %v1641 = vunpack.c.h.b16 %v187
    %v1642 = vunpack.c.l.b16 %v188
    %v1643 = vunpack.c.h.b16 %v188
    %v1644 = vunpack.c.l.b16 %v189
    %v1645 = vunpack.c.h.b16 %v189
    %v1646 = vunpack.c.l.b16 %v190
    %v1647 = vunpack.c.h.b16 %v190
    %v1648 = vunpack.c.l.b16 %v191
    %v1649 = vunpack.c.h.b16 %v191
    %v1650 = vunpack.c.l.b16 %v192
    %v1651 = vunpack.c.h.b16 %v192
    %v1652 = vunpack.c.l.b16 %v193
    %v1653 = vunpack.c.h.b16 %v193
    %v1654 = vunpack.c.l.b16 %v194
    %v1655 = vunpack.c.h.b16 %v194
    %v1656 = vunpack.c.l.b16 %v195
    %v1657 = vunpack.c.h.b16 %v195
    %v1658 = vunpack.c.l.b16 %v196
    %v1659 = vunpack.c.h.b16 %v196
    %v1660 = vunpack.c.l.b16 %v197
    %v1661 = vunpack.c.h.b16 %v197
    %v1662 = vunpack.c.l.b16 %v198
    %v1663 = vunpack.c.h.b16 %v198
    %v1664 = vunpack.c.l.b16 %v199
    %v1665 = vunpack.c.h.b16 %v199
    %v1666 = vunpack.c.l.b16 %v200
    %v1667 = vunpack.c.h.b16 %v200
    %v1668 = vunpack.c.l.b16 %v201
    %v1669 = vunpack.c.h.b16 %v201
    %v1670 = vunpack.c.l.b16 %v202
    %v1671 = vunpack.c.h.b16 %v202
    %v1672 = vunpack.c.l.b16 %v203
    %v1673 = vunpack.c.h.b16 %v203
    %v1674 = vunpack.c.l.b16 %v204
    %v1675 = vunpack.c.h.b16 %v204
    %v1676 = vunpack.c.l.b16 %v205
    %v1677 = vunpack.c.h.b16 %v205
    %v1678 = vunpack.c.l.b16 %v206
    %v1679 = vunpack.c.h.b16 %v206
    %v1680 = vunpack.c.l.b16 %v207
    %v1681 = vunpack.c.h.b16 %v207
    %v1682 = vunpack.c.l.b16 %v208
    %v1683 = vunpack.c.h.b16 %v208
    %v1684 = vunpack.c.l.b16 %v209
    %v1685 = vunpack.c.h.b16 %v209
    %v1686 = vunpack.c.l.b16 %v210
    %v1687 = vunpack.c.h.b16 %v210
    %v1688 = vunpack.c.l.b16 %v211
    %v1689 = vunpack.c.h.b16 %v211
    %v1690 = vunpack.c.l.b16 %v212
    %v1691 = vunpack.c.h.b16 %v212
    %v1692 = vunpack.c.l.b16 %v213
    %v1693 = vunpack.c.h.b16 %v213
    %v1694 = vunpack.c.l.b16 %v214
    %v1695 = vunpack.c.h.b16 %v214
    %v1696 = vunpack.c.l.b16 %v215
    %v1697 = vunpack.c.h.b16 %v215
    %v1698 = vunpack.c.l.b16 %v216
    %v1699 = vunpack.c.h.b16 %v216
    %v1700 = vunpack.c.l.b16 %v217
    %v1701 = vunpack.c.h.b16 %v217
    %v1702 = vunpack.c.l.b16 %v218
    %v1703 = vunpack.c.h.b16 %v218
    %v1704 = vunpack.c.l.b16 %v219
    %v1705 = vunpack.c.h.b16 %v219
    %v1706 = vunpack.c.l.b16 %v220
    %v1707 = vunpack.c.h.b16 %v220
    %v1708 = vunpack.c.l.b16 %v221
    %v1709 = vunpack.c.h.b16 %v221
    %v1710 = vunpack.c.l.b16 %v222
    %v1711 = vunpack.c.h.b16 %v222
    %v1712 = vunpack.c.l.b16 %v223
    %v1713 = vunpack.c.h.b16 %v223
    %v1714 = vunpack.c.l.b16 %v224
    %v1715 = vunpack.c.h.b16 %v224
    %v1716 = vunpack.c.l.b16 %v225
    %v1717 = vunpack.c.h.b16 %v225
    %v1718 = vunpack.c.l.b16 %v226
    %v1719 = vunpack.c.h.b16 %v226
    %v1720 = vunpack.c.l.b16 %v227
    %v1721 = vunpack.c.h.b16 %v227
    %v1722 = vunpack.c.l.b16 %v228
    %v1723 = vunpack.c.h.b16 %v228
    %v1724 = vunpack.c.l.b16 %v229
    %v1725 = vunpack.c.h.b16 %v229
    %v1726 = vunpack.c.l.b16 %v230
    %v1727 = vunpack.c.h.b16 %v230
    %v1728 = vunpack.c.l.b16 %v231
    %v1729 = vunpack.c.h.b16 %v231
    %v1730 = vunpack.c.l.b16 %v232
    %v1731 = vunpack.c.h.b16 %v232
    %v1732 = vunpack.c.l.b16 %v233
    %v1733 = vunpack.c.h.b16 %v233
    %v1734 = vunpack.c.l.b16 %v234
    %v1735 = vunpack.c.h.b16 %v234
    %v1736 = vunpack.c.l.b16 %v235
    %v1737 = vunpack.c.h.b16 %v235
    %v1738 = vunpack.c.l.b16 %v236
    %v1739 = vunpack.c.h.b16 %v236
    %v1740 = vunpack.c.l.b16 %v237
    %v1741 = vunpack.c.h.b16 %v237
    %v1742 = vunpack.c.l.b16 %v238
    %v1743 = vunpack.c.h.b16 %v238
    %v1744 = vunpack.c.l.b16 %v239
    %v1745 = vunpack.c.h.b16 %v239
    %v1746 = vunpack.c.l.b16 %v240
    %v1747 = vunpack.c.h.b16 %v240
    %v1748 = vunpack.c.l.b16 %v241
    %v1749 = vunpack.c.h.b16 %v241
    %v1750 = vunpack.c.l.b16 %v242
    %v1751 = vunpack.c.h.b16 %v242
    %v1752 = vunpack.c.l.b16 %v243
    %v1753 = vunpack.c.h.b16 %v243
    %v1754 = vunpack.c.l.b16 %v244
    %v1755 = vunpack.c.h.b16 %v244
    %v1756 = vunpack.c.l.b16 %v245
    %v1757 = vunpack.c.h.b16 %v245
    %v1758 = vunpack.c.l.b16 %v246
    %v1759 = vunpack.c.h.b16 %v246
    %v1760 = vunpack.c.l.b16 %v247
    %v1761 = vunpack.c.h.b16 %v247
    %v1762 = vunpack.c.l.b16 %v248
    %v1763 = vunpack.c.h.b16 %v248
    %v1764 = vunpack.c.l.b16 %v249
    %v1765 = vunpack.c.h.b16 %v249
    %v1766 = vunpack.c.l.b16 %v250
    %v1767 = vunpack.c.h.b16 %v250
    %v1768 = vunpack.c.l.b16 %v251
    %v1769 = vunpack.c.h.b16 %v251
    %v1770 = vunpack.c.l.b16 %v252
    %v1771 = vunpack.c.h.b16 %v252
    %v1772 = vunpack.c.l.b16 %v253
    %v1773 = vunpack.c.h.b16 %v253
    %v1774 = vunpack.c.l.b16 %v254
    %v1775 = vunpack.c.h.b16 %v254
    %v1776 = vunpack.c.l.b16 %v255
    %v1777 = vunpack.c.h.b16 %v255
    %v1778 = vunpack.c.l.b16 %v256
    %v1779 = vunpack.c.h.b16 %v256
    %v1780 = vunpack.c.l.b16 %v257
    %v1781 = vunpack.c.h.b16 %v257
    %v1782 = vunpack.c.l.b16 %v258
    %v1783 = vunpack.c.h.b16 %v258
    %v1784 = vunpack.c.l.b16 %v259
    %v1785 = vunpack.c.h.b16 %v259
    %v1786 = vunpack.c.l.b16 %v260
    %v1787 = vunpack.c.h.b16 %v260
    %v1788 = vunpack.c.l.b16 %v261
    %v1789 = vunpack.c.h.b16 %v261
    %v1790 = vunpack.c.l.b16 %v262
    %v1791 = vunpack.c.h.b16 %v262
    %v1792 = vunpack.c.l.b16 %v263
    %v1793 = vunpack.c.h.b16 %v263
    %v1794 = vunpack.c.l.b16 %v264
    %v1795 = vunpack.c.h.b16 %v264
    %v1796 = vunpack.c.l.b16 %v265
    %v1797 = vunpack.c.h.b16 %v265
    %v1798 = vunpack.c.l.b16 %v266
    %v1799 = vunpack.c.h.b16 %v266
    %v1800 = vunpack.c.l.b16 %v267
    %v1801 = vunpack.c.h.b16 %v267
    %v1802 = vunpack.c.l.b16 %v268
    %v1803 = vunpack.c.h.b16 %v268
    %v1804 = vunpack.c.l.b16 %v269
    %v1805 = vunpack.c.h.b16 %v269
    %v1806 = vunpack.c.l.b16 %v270
    %v1807 = vunpack.c.h.b16 %v270
    %v1808 = vunpack.c.l.b16 %v271
    %v1809 = vunpack.c.h.b16 %v271
    %v1810 = vunpack.c.l.b16 %v272
    %v1811 = vunpack.c.h.b16 %v272
    %v1812 = vunpack.c.l.b16 %v273
    %v1813 = vunpack.c.h.b16 %v273
    %v1814 = vunpack.c.l.b16 %v274
    %v1815 = vunpack.c.h.b16 %v274
    %v1816 = vunpack.c.l.b16 %v275
    %v1817 = vunpack.c.h.b16 %v275
    %v1818 = vunpack.c.l.b16 %v276
    %v1819 = vunpack.c.h.b16 %v276
    %v1820 = vunpack.c.l.b16 %v277
    %v1821 = vunpack.c.h.b16 %v277
    %v1822 = vunpack.c.l.b16 %v278
    %v1823 = vunpack.c.h.b16 %v278
    %v1824 = vunpack.c.l.b16 %v279
    %v1825 = vunpack.c.h.b16 %v279
    %v1826 = vunpack.c.l.b16 %v280
    %v1827 = vunpack.c.h.b16 %v280
    %v1828 = vunpack.c.l.b16 %v281
    %v1829 = vunpack.c.h.b16 %v281
    %v1830 = vunpack.c.l.b16 %v282
    %v1831 = vunpack.c.h.b16 %v282
    %v1832 = vunpack.c.l.b16 %v283
    %v1833 = vunpack.c.h.b16 %v283
    %v1834 = vunpack.c.l.b16 %v284
    %v1835 = vunpack.c.h.b16 %v284
    %v1836 = vunpack.c.l.b16 %v285
    %v1837 = vunpack.c.h.b16 %v285
    %v1838 = vunpack.c.l.b16 %v286
    %v1839 = vunpack.c.h.b16 %v286
    %v1840 = vunpack.c.l.b16 %v287
    %v1841 = vunpack.c.h.b16 %v287
    %v1842 = vunpack.c.l.b16 %v288
    %v1843 = vunpack.c.h.b16 %v288
    %v1844 = vunpack.c.l.b16 %v289
    %v1845 = vunpack.c.h.b16 %v289
    %v1846 = vunpack.c.l.b16 %v290
    %v1847 = vunpack.c.h.b16 %v290
    %v1848 = vunpack.c.l.b16 %v291
    %v1849 = vunpack.c.h.b16 %v291
    %v1850 = vunpack.c.l.b16 %v292
    %v1851 = vunpack.c.h.b16 %v292
    %v1852 = vunpack.c.l.b16 %v293
    %v1853 = vunpack.c.h.b16 %v293
    %v1854 = vunpack.c.l.b16 %v294
    %v1855 = vunpack.c.h.b16 %v294
    %v1856 = vunpack.c.l.b16 %v295
    %v1857 = vunpack.c.h.b16 %v295
    %v1858 = vunpack.c.l.b16 %v296
    %v1859 = vunpack.c.h.b16 %v296
    %v1860 = vunpack.c.l.b16 %v297
    %v1861 = vunpack.c.h.b16 %v297
    %v1862 = vunpack.c.l.b16 %v298
    %v1863 = vunpack.c.h.b16 %v298
    %v1864 = vunpack.c.l.b16 %v299
    %v1865 = vunpack.c.h.b16 %v299
    %v1866 = vunpack.c.l.b16 %v300
    %v1867 = vunpack.c.h.b16 %v300
    %v1868 = vunpack.c.l.b16 %v301
    %v1869 = vunpack.c.h.b16 %v301
    %v1870 = vunpack.c.l.b16 %v302
    %v1871 = vunpack.c.h.b16 %v302
    %v1872 = vunpack.c.l.b16 %v303
    %v1873 = vunpack.c.h.b16 %v303
    %v1874 = vunpack.c.l.b16 %v304
    %v1875 = vunpack.c.h.b16 %v304
    %v1876 = vunpack.c.l.b16 %v305
    %v1877 = vunpack.c.h.b16 %v305
    %v1878 = vunpack.c.l.b16 %v306
    %v1879 = vunpack.c.h.b16 %v306
    %v1880 = vunpack.c.l.b16 %v307
    %v1881 = vunpack.c.h.b16 %v307
    %v1882 = vunpack.c.l.b16 %v308
    %v1883 = vunpack.c.h.b16 %v308
    %v1884 = vunpack.c.l.b16 %v309
    %v1885 = vunpack.c.h.b16 %v309
    %v1886 = vunpack.c.l.b16 %v310
    %v1887 = vunpack.c.h.b16 %v310
    %v1888 = vunpack.c.l.b16 %v311
    %v1889 = vunpack.c.h.b16 %v311
    %v1890 = vunpack.c.l.b16 %v312
    %v1891 = vunpack.c.h.b16 %v312
    %v1892 = vunpack.c.l.b16 %v313
    %v1893 = vunpack.c.h.b16 %v313
    %v1894 = vunpack.c.l.b16 %v314
    %v1895 = vunpack.c.h.b16 %v314
    %v1896 = vunpack.c.l.b16 %v315
    %v1897 = vunpack.c.h.b16 %v315
    %v1898 = vunpack.c.l.b16 %v316
    %v1899 = vunpack.c.h.b16 %v316
    %v1900 = vunpack.c.l.b16 %v317
    %v1901 = vunpack.c.h.b16 %v317
    %v1902 = vunpack.c.l.b16 %v318
    %v1903 = vunpack.c.h.b16 %v318
    %v1904 = vunpack.c.l.b16 %v319
    %v1905 = vunpack.c.h.b16 %v319
    %v1906 = vunpack.c.l.b16 %v320
    %v1907 = vunpack.c.h.b16 %v320
    %v1908 = vunpack.c.l.b16 %v321
    %v1909 = vunpack.c.h.b16 %v321
    %v1910 = vunpack.c.l.b16 %v322
    %v1911 = vunpack.c.h.b16 %v322
    %v1912 = vunpack.c.l.b16 %v323
    %v1913 = vunpack.c.h.b16 %v323
    %v1914 = vunpack.c.l.b16 %v324
    %v1915 = vunpack.c.h.b16 %v324
    %v1916 = vunpack.c.l.b16 %v325
    %v1917 = vunpack.c.h.b16 %v325
    %v1918 = vunpack.c.l.b16 %v326
    %v1919 = vunpack.c.h.b16 %v326
    %v1920 = vunpack.c.l.b16 %v327
    %v1921 = vunpack.c.h.b16 %v327
    %v1922 = vunpack.c.l.b16 %v328
    %v1923 = vunpack.c.h.b16 %v328
    %v1924 = vunpack.c.l.b16 %v329
    %v1925 = vunpack.c.h.b16 %v329
    %v1926 = vunpack.c.l.b16 %v330
    %v1927 = vunpack.c.h.b16 %v330
    %v1928 = vunpack.c.l.b16 %v331
    %v1929 = vunpack.c.h.b16 %v331
    %v1930 = vunpack.c.l.b16 %v332
    %v1931 = vunpack.c.h.b16 %v332
    %v1932 = vunpack.c.l.b16 %v333
    %v1933 = vunpack.c.h.b16 %v333
    %v1934 = vunpack.c.l.b16 %v334
    %v1935 = vunpack.c.h.b16 %v334
    %v1936 = vunpack.c.l.b16 %v335
    %v1937 = vunpack.c.h.b16 %v335
    %v1938 = vunpack.c.l.b16 %v336
    %v1939 = vunpack.c.h.b16 %v336
    %v1940 = vunpack.c.l.b16 %v337
    %v1941 = vunpack.c.h.b16 %v337
    %v1942 = vunpack.c.l.b16 %v338
    %v1943 = vunpack.c.h.b16 %v338
    %v1944 = vunpack.c.l.b16 %v339
    %v1945 = vunpack.c.h.b16 %v339
    %v1946 = vunpack.c.l.b16 %v340
    %v1947 = vunpack.c.h.b16 %v340
    %v1948 = vunpack.c.l.b16 %v341
    %v1949 = vunpack.c.h.b16 %v341
    %v1950 = vunpack.c.l.b16 %v342
    %v1951 = vunpack.c.h.b16 %v342
    %v1952 = vunpack.c.l.b16 %v343
    %v1953 = vunpack.c.h.b16 %v343
    %v1954 = vunpack.c.l.b16 %v344
    %v1955 = vunpack.c.h.b16 %v344
    %v1956 = vunpack.c.l.b16 %v345
    %v1957 = vunpack.c.h.b16 %v345
    %v1958 = vunpack.c.l.b16 %v346
    %v1959 = vunpack.c.h.b16 %v346
    %v1960 = vunpack.c.l.b16 %v347
    %v1961 = vunpack.c.h.b16 %v347
    %v1962 = vunpack.c.l.b16 %v348
    %v1963 = vunpack.c.h.b16 %v348
    %v1964 = vunpack.c.l.b16 %v349
    %v1965 = vunpack.c.h.b16 %v349
    %v1966 = vunpack.c.l.b16 %v350
    %v1967 = vunpack.c.h.b16 %v350
    %v1968 = vunpack.c.l.b16 %v351
    %v1969 = vunpack.c.h.b16 %v351
    %v1970 = vunpack.c.l.b16 %v352
    %v1971 = vunpack.c.h.b16 %v352
    %v1972 = vunpack.c.l.b16 %v353
    %v1973 = vunpack.c.h.b16 %v353
    %v1974 = vunpack.c.l.b16 %v354
    %v1975 = vunpack.c.h.b16 %v354
    %v1976 = vunpack.c.l.b16 %v355
    %v1977 = vunpack.c.h.b16 %v355
    %v1978 = vunpack.c.l.b16 %v356
    %v1979 = vunpack.c.h.b16 %v356
    %v1980 = vunpack.c.l.b16 %v357
    %v1981 = vunpack.c.h.b16 %v357
    %v1982 = vunpack.c.l.b16 %v358
    %v1983 = vunpack.c.h.b16 %v358
    %v1984 = vunpack.c.l.b16 %v359
    %v1985 = vunpack.c.h.b16 %v359
    %v1986 = vunpack.c.l.b16 %v360
    %v1987 = vunpack.c.h.b16 %v360
    %v1988 = vunpack.c.l.b16 %v361
    %v1989 = vunpack.c.h.b16 %v361
    %v1990 = vunpack.c.l.b16 %v362
    %v1991 = vunpack.c.h.b16 %v362
    %v1992 = vunpack.c.l.b16 %v363
    %v1993 = vunpack.c.h.b16 %v363
    %v1994 = vunpack.c.l.b16 %v364
    %v1995 = vunpack.c.h.b16 %v364
    %v1996 = vunpack.c.l.b16 %v365
    %v1997 = vunpack.c.h.b16 %v365
    %v1998 = vunpack.c.l.b16 %v366
    %v1999 = vunpack.c.h.b16 %v366
    %v2000 = vunpack.c.l.b16 %v367
    %v2001 = vunpack.c.h.b16 %v367
    %v2002 = vunpack.c.l.b16 %v368
    %v2003 = vunpack.c.h.b16 %v368
    %v2004 = vunpack.c.l.b16 %v369
    %v2005 = vunpack.c.h.b16 %v369
    %v2006 = vunpack.c.l.b16 %v370
    %v2007 = vunpack.c.h.b16 %v370
    %v2008 = vunpack.c.l.b16 %v371
    %v2009 = vunpack.c.h.b16 %v371
    %v2010 = vunpack.c.l.b16 %v372
    %v2011 = vunpack.c.h.b16 %v372
    %v2012 = vunpack.c.l.b16 %v373
    %v2013 = vunpack.c.h.b16 %v373
    %v2014 = vunpack.c.l.b16 %v374
    %v2015 = vunpack.c.h.b16 %v374
    %v2016 = vunpack.c.l.b16 %v375
    %v2017 = vunpack.c.h.b16 %v375
    %v2018 = vunpack.c.l.b16 %v376
    %v2019 = vunpack.c.h.b16 %v376
    %v2020 = vunpack.c.l.b16 %v377
    %v2021 = vunpack.c.h.b16 %v377
    %v2022 = vunpack.c.l.b16 %v378
    %v2023 = vunpack.c.h.b16 %v378
    %v2024 = vunpack.c.l.b16 %v379
    %v2025 = vunpack.c.h.b16 %v379
    %v2026 = vunpack.c.l.b16 %v380
    %v2027 = vunpack.c.h.b16 %v380
    %v2028 = vunpack.c.l.b16 %v381
    %v2029 = vunpack.c.h.b16 %v381
    %v2030 = vunpack.c.l.b16 %v382
    %v2031 = vunpack.c.h.b16 %v382
    %v2032 = vunpack.c.l.b16 %v383
    %v2033 = vunpack.c.h.b16 %v383
    %v2034 = vunpack.c.l.b16 %v384
    %v2035 = vunpack.c.h.b16 %v384
    %v2036 = vunpack.c.l.b16 %v385
    %v2037 = vunpack.c.h.b16 %v385
    %v2038 = vunpack.c.l.b16 %v386
    %v2039 = vunpack.c.h.b16 %v386
    %v2040 = vunpack.c.l.b16 %v387
    %v2041 = vunpack.c.h.b16 %v387
    %v2042 = vunpack.c.l.b16 %v388
    %v2043 = vunpack.c.h.b16 %v388
    %v2044 = vunpack.c.l.b16 %v389
    %v2045 = vunpack.c.h.b16 %v389
    %v2046 = vunpack.c.l.b16 %v390
    %v2047 = vunpack.c.h.b16 %v390
    %v2048 = vunpack.c.l.b16 %v391
    %v2049 = vunpack.c.h.b16 %v391
    %v2050 = vunpack.c.l.b16 %v392
    %v2051 = vunpack.c.h.b16 %v392
    %v2052 = vunpack.c.l.b16 %v393
    %v2053 = vunpack.c.h.b16 %v393
    %v2054 = vunpack.c.l.b16 %v394
    %v2055 = vunpack.c.h.b16 %v394
    %v2056 = vunpack.c.l.b16 %v395
    %v2057 = vunpack.c.h.b16 %v395
    %v2058 = vunpack.c.l.b16 %v396
    %v2059 = vunpack.c.h.b16 %v396
    %v2060 = vunpack.c.l.b16 %v397
    %v2061 = vunpack.c.h.b16 %v397
    %v2062 = vunpack.c.l.b16 %v398
    %v2063 = vunpack.c.h.b16 %v398
    %v2064 = vunpack.c.l.b16 %v399
    %v2065 = vunpack.c.h.b16 %v399
    %v2066 = vunpack.c.l.b16 %v400
    %v2067 = vunpack.c.h.b16 %v400
    %v2068 = vunpack.c.l.b16 %v401
    %v2069 = vunpack.c.h.b16 %v401
    %v2070 = vunpack.c.l.b16 %v402
    %v2071 = vunpack.c.h.b16 %v402
    %v2072 = vunpack.c.l.b16 %v403
    %v2073 = vunpack.c.h.b16 %v403
    %v2074 = vunpack.c.l.b16 %v404
    %v2075 = vunpack.c.h.b16 %v404
    %v2076 = vunpack.c.l.b16 %v405
    %v2077 = vunpack.c.h.b16 %v405
    %v2078 = vunpack.c.l.b16 %v406
    %v2079 = vunpack.c.h.b16 %v406
    %v2080 = vunpack.c.l.b16 %v407
    %v2081 = vunpack.c.h.b16 %v407
    %v2082 = vunpack.c.l.b16 %v408
    %v2083 = vunpack.c.h.b16 %v408
    %v2084 = vunpack.c.l.b16 %v409
    %v2085 = vunpack.c.h.b16 %v409
    %v2086 = vunpack.c.l.b16 %v410
    %v2087 = vunpack.c.h.b16 %v410
    %v2088 = vunpack.c.l.b16 %v411
    %v2089 = vunpack.c.h.b16 %v411
    %v2090 = vunpack.c.l.b16 %v412
    %v2091 = vunpack.c.h.b16 %v412
    %v2092 = vunpack.c.l.b16 %v413
    %v2093 = vunpack.c.h.b16 %v413
    %v2094 = vunpack.c.l.b16 %v414
    %v2095 = vunpack.c.h.b16 %v414
    %v2096 = vunpack.c.l.b16 %v415
    %v2097 = vunpack.c.h.b16 %v415
    %v2098 = vunpack.c.l.b16 %v416
    %v2099 = vunpack.c.h.b16 %v416
    %v2100 = vunpack.c.l.b16 %v417
    %v2101 = vunpack.c.h.b16 %v417
    %v2102 = vunpack.c.l.b16 %v418
    %v2103 = vunpack.c.h.b16 %v418
    %v2104 = vunpack.c.l.b16 %v419
    %v2105 = vunpack.c.h.b16 %v419
    %v2106 = vunpack.c.l.b16 %v420
    %v2107 = vunpack.c.h.b16 %v420
    %v2108 = vunpack.c.l.b16 %v421
    %v2109 = vunpack.c.h.b16 %v421
    %v2110 = vunpack.c.l.b16 %v422
    %v2111 = vunpack.c.h.b16 %v422
    %v2112 = vunpack.c.l.b16 %v423
    %v2113 = vunpack.c.h.b16 %v423
    %v2114 = vunpack.c.l.b16 %v424
    %v2115 = vunpack.c.h.b16 %v424
    %v2116 = vunpack.c.l.b16 %v425
    %v2117 = vunpack.c.h.b16 %v425
    %v2118 = vunpack.c.l.b16 %v426
    %v2119 = vunpack.c.h.b16 %v426
    %v2120 = vunpack.c.l.b16 %v427
    %v2121 = vunpack.c.h.b16 %v427
    %v2122 = vunpack.c.l.b16 %v428
    %v2123 = vunpack.c.h.b16 %v428
    %v2124 = vunpack.c.l.b16 %v429
    %v2125 = vunpack.c.h.b16 %v429
    %v2126 = vunpack.c.l.b16 %v430
    %v2127 = vunpack.c.h.b16 %v430
    %v2128 = vunpack.c.l.b16 %v431
    %v2129 = vunpack.c.h.b16 %v431
    %v2130 = vunpack.c.l.b16 %v432
    %v2131 = vunpack.c.h.b16 %v432
    %v2132 = vunpack.c.l.b16 %v433
    %v2133 = vunpack.c.h.b16 %v433
    %v2134 = vunpack.c.l.b16 %v434
    %v2135 = vunpack.c.h.b16 %v434
    %v2136 = vunpack.c.l.b16 %v435
    %v2137 = vunpack.c.h.b16 %v435
    %v2138 = vunpack.c.l.b16 %v436
    %v2139 = vunpack.c.h.b16 %v436
    %v2140 = vunpack.c.l.b16 %v437
    %v2141 = vunpack.c.h.b16 %v437
    %v2142 = vunpack.c.l.b16 %v438
    %v2143 = vunpack.c.h.b16 %v438
    %v2144 = vunpack.c.l.b16 %v439
    %v2145 = vunpack.c.h.b16 %v439
    %v2146 = vunpack.c.l.b16 %v440
    %v2147 = vunpack.c.h.b16 %v440
    %v2148 = vunpack.c.l.b16 %v441
    %v2149 = vunpack.c.h.b16 %v441
    %v2150 = vunpack.c.l.b16 %v442
    %v2151 = vunpack.c.h.b16 %v442
    %v2152 = vunpack.c.l.b16 %v443
    %v2153 = vunpack.c.h.b16 %v443
    %v2154 = vunpack.c.l.b16 %v444
    %v2155 = vunpack.c.h.b16 %v444
    %v2156 = vunpack.c.l.b16 %v445
    %v2157 = vunpack.c.h.b16 %v445
    %v2158 = vunpack.c.l.b16 %v446
    %v2159 = vunpack.c.h.b16 %v446
    %v2160 = vunpack.c.l.b16 %v447
    %v2161 = vunpack.c.h.b16 %v447
    %v2162 = vunpack.c.l.b16 %v448
    %v2163 = vunpack.c.h.b16 %v448
    %v2164 = vunpack.c.l.b16 %v449
    %v2165 = vunpack.c.h.b16 %v449
    %v2166 = vunpack.c.l.b16 %v450
    %v2167 = vunpack.c.h.b16 %v450
    %v2168 = vunpack.c.l.b16 %v451
    %v2169 = vunpack.c.h.b16 %v451
    %v2170 = vunpack.c.l.b16 %v452
    %v2171 = vunpack.c.h.b16 %v452
    %v2172 = vunpack.c.l.b16 %v453
    %v2173 = vunpack.c.h.b16 %v453
    %v2174 = vunpack.c.l.b16 %v454
    %v2175 = vunpack.c.h.b16 %v454
    %v2176 = vunpack.c.l.b16 %v455
    %v2177 = vunpack.c.h.b16 %v455
    %v2178 = vunpack.c.l.b16 %v456
    %v2179 = vunpack.c.h.b16 %v456
    %v2180 = vunpack.c.l.b16 %v457
    %v2181 = vunpack.c.h.b16 %v457
    %v2182 = vunpack.c.l.b16 %v458
    %v2183 = vunpack.c.h.b16 %v458
    %v2184 = vunpack.c.l.b16 %v459
    %v2185 = vunpack.c.h.b16 %v459
    %v2186 = vunpack.c.l.b16 %v460
    %v2187 = vunpack.c.h.b16 %v460
    %v2188 = vunpack.c.l.b16 %v461
    %v2189 = vunpack.c.h.b16 %v461
    %v2190 = vunpack.c.l.b16 %v462
    %v2191 = vunpack.c.h.b16 %v462
    %v2192 = vunpack.c.l.b16 %v463
    %v2193 = vunpack.c.h.b16 %v463
    %v2194 = vunpack.c.l.b16 %v464
    %v2195 = vunpack.c.h.b16 %v464
    %v2196 = vunpack.c.l.b16 %v465
    %v2197 = vunpack.c.h.b16 %v465
    %v2198 = vunpack.c.l.b16 %v466
    %v2199 = vunpack.c.h.b16 %v466
    %v2200 = vunpack.c.l.b16 %v467
    %v2201 = vunpack.c.h.b16 %v467
    %v2202 = vunpack.c.l.b16 %v468
    %v2203 = vunpack.c.h.b16 %v468
    %v2204 = vunpack.c.l.b16 %v469
    %v2205 = vunpack.c.h.b16 %v469
    %v2206 = vunpack.c.l.b16 %v470
    %v2207 = vunpack.c.h.b16 %v470
    %v2208 = vunpack.c.l.b16 %v471
    %v2209 = vunpack.c.h.b16 %v471
    %v2210 = vunpack.c.l.b16 %v472
    %v2211 = vunpack.c.h.b16 %v472
    %v2212 = vunpack.c.l.b16 %v473
    %v2213 = vunpack.c.h.b16 %v473
    %v2214 = vunpack.c.l.b16 %v474
    %v2215 = vunpack.c.h.b16 %v474
    %v2216 = vunpack.c.l.b16 %v475
    %v2217 = vunpack.c.h.b16 %v475
    %v2218 = vunpack.c.l.b16 %v476
    %v2219 = vunpack.c.h.b16 %v476
    %v2220 = vunpack.c.l.b16 %v477
    %v2221 = vunpack.c.h.b16 %v477
    %v2222 = vunpack.c.l.b16 %v478
    %v2223 = vunpack.c.h.b16 %v478
    %v2224 = vunpack.c.l.b16 %v479
    %v2225 = vunpack.c.h.b16 %v479
    %v2226 = vunpack.c.l.b16 %v480
    %v2227 = vunpack.c.h.b16 %v480
    %v2228 = vunpack.c.l.b16 %v481
    %v2229 = vunpack.c.h.b16 %v481
    %v2230 = vunpack.c.l.b16 %v482
    %v2231 = vunpack.c.h.b16 %v482
    %v2232 = vunpack.c.l.b16 %v483
    %v2233 = vunpack.c.h.b16 %v483
    %v2234 = vunpack.c.l.b16 %v484
    %v2235 = vunpack.c.h.b16 %v484
    %v2236 = vunpack.c.l.b16 %v485
    %v2237 = vunpack.c.h.b16 %v485
    %v2238 = vunpack.c.l.b16 %v486
    %v2239 = vunpack.c.h.b16 %v486
    %v2240 = vunpack.c.l.b16 %v487
    %v2241 = vunpack.c.h.b16 %v487
    %v2242 = vunpack.c.l.b16 %v488
    %v2243 = vunpack.c.h.b16 %v488
    %v2244 = vunpack.c.l.b16 %v489
    %v2245 = vunpack.c.h.b16 %v489
    %v2246 = vunpack.c.l.b16 %v490
    %v2247 = vunpack.c.h.b16 %v490
    %v2248 = vunpack.c.l.b16 %v491
    %v2249 = vunpack.c.h.b16 %v491
    %v2250 = vunpack.c.l.b16 %v492
    %v2251 = vunpack.c.h.b16 %v492
    %v2252 = vunpack.c.l.b16 %v493
    %v2253 = vunpack.c.h.b16 %v493
    %v2254 = vunpack.c.l.b16 %v494
    %v2255 = vunpack.c.h.b16 %v494
    %v2256 = vunpack.c.l.b16 %v495
    %v2257 = vunpack.c.h.b16 %v495
    %v2258 = vunpack.c.l.b16 %v496
    %v2259 = vunpack.c.h.b16 %v496
    %v2260 = vunpack.c.l.b16 %v497
    %v2261 = vunpack.c.h.b16 %v497
    %v2262 = vunpack.c.l.b16 %v498
    %v2263 = vunpack.c.h.b16 %v498
    %v2264 = vunpack.c.l.b16 %v499
    %v2265 = vunpack.c.h.b16 %v499
    %v2266 = vunpack.c.l.b16 %v500
    %v2267 = vunpack.c.h.b16 %v500
    %v2268 = vunpack.c.l.b16 %v501
    %v2269 = vunpack.c.h.b16 %v501
    %v2270 = vunpack.c.l.b16 %v502
    %v2271 = vunpack.c.h.b16 %v502
    %v2272 = vunpack.c.l.b16 %v503
    %v2273 = vunpack.c.h.b16 %v503
    %v2274 = vunpack.c.l.b16 %v504
    %v2275 = vunpack.c.h.b16 %v504
    %v2276 = vunpack.c.l.b16 %v505
    %v2277 = vunpack.c.h.b16 %v505
    %v2278 = vunpack.c.l.b16 %v506
    %v2279 = vunpack.c.h.b16 %v506
    %v2280 = vunpack.c.l.b16 %v507
    %v2281 = vunpack.c.h.b16 %v507
    %v2282 = vunpack.c.l.b16 %v508
    %v2283 = vunpack.c.h.b16 %v508
    %v2284 = vunpack.c.l.b16 %v509
    %v2285 = vunpack.c.h.b16 %v509
    %v2286 = vunpack.c.l.b16 %v510
    %v2287 = vunpack.c.h.b16 %v510
    %v2288 = vunpack.c.l.b16 %v511
    %v2289 = vunpack.c.h.b16 %v511
    %v2290 = vunpack.c.l.b16 %v512
    %v2291 = vunpack.c.h.b16 %v512
    %v2292 = vunpack.c.l.b16 %v513
    %v2293 = vunpack.c.h.b16 %v513
    %v2294 = vunpack.c.l.b16 %v514
    %v2295 = vunpack.c.h.b16 %v514
    %v2296 = vunpack.c.l.b16 %v515
    %v2297 = vunpack.c.h.b16 %v515
    %v2298 = vunpack.c.l.b16 %v516
    %v2299 = vunpack.c.h.b16 %v516
    %v2300 = vunpack.c.l.b16 %v517
    %v2301 = vunpack.c.h.b16 %v517
    %v2302 = vunpack.c.l.b16 %v518
    %v2303 = vunpack.c.h.b16 %v518
    %v2304 = vunpack.c.l.b16 %v519
    %v2305 = vunpack.c.h.b16 %v519
    %v2306 = vunpack.c.l.b16 %v520
    %v2307 = vunpack.c.h.b16 %v520
    %v2308 = vunpack.c.l.b16 %v521
    %v2309 = vunpack.c.h.b16 %v521
    %v2310 = vunpack.c.l.b16 %v522
    %v2311 = vunpack.c.h.b16 %v522
    %v2312 = vunpack.c.l.b16 %v523
    %v2313 = vunpack.c.h.b16 %v523
    %v2314 = vunpack.c.l.b16 %v524
    %v2315 = vunpack.c.h.b16 %v524
    %v2316 = vunpack.c.l.b16 %v525
    %v2317 = vunpack.c.h.b16 %v525
    %v2318 = vunpack.c.l.b16 %v526
    %v2319 = vunpack.c.h.b16 %v526
    %v2320 = vunpack.c.l.b16 %v527
    %v2321 = vunpack.c.h.b16 %v527
    %v2322 = vunpack.c.l.b16 %v528
    %v2323 = vunpack.c.h.b16 %v528
    %v2324 = vunpack.c.l.b16 %v529
    %v2325 = vunpack.c.h.b16 %v529
    %v2326 = vunpack.c.l.b16 %v530
    %v2327 = vunpack.c.h.b16 %v530
    %v2328 = vunpack.c.l.b16 %v531
    %v2329 = vunpack.c.h.b16 %v531
    %v2330 = vunpack.c.l.b16 %v532
    %v2331 = vunpack.c.h.b16 %v532
    %v2332 = vunpack.c.l.b16 %v533
    %v2333 = vunpack.c.h.b16 %v533
    %v2334 = vunpack.c.l.b16 %v534
    %v2335 = vunpack.c.h.b16 %v534
    %v2336 = vunpack.c.l.b16 %v535
    %v2337 = vunpack.c.h.b16 %v535
    %v2338 = vunpack.c.l.b16 %v536
    %v2339 = vunpack.c.h.b16 %v536
    %v2340 = vunpack.c.l.b16 %v537
    %v2341 = vunpack.c.h.b16 %v537
    %v2342 = vunpack.c.l.b16 %v538
    %v2343 = vunpack.c.h.b16 %v538
    %v2344 = vunpack.c.l.b16 %v539
    %v2345 = vunpack.c.h.b16 %v539
    %v2346 = vunpack.c.l.b16 %v540
    %v2347 = vunpack.c.h.b16 %v540
    %v2348 = vunpack.c.l.b16 %v541
    %v2349 = vunpack.c.h.b16 %v541
    %v2350 = vunpack.c.l.b16 %v542
    %v2351 = vunpack.c.h.b16 %v542
    %v2352 = vunpack.c.l.b16 %v543
    %v2353 = vunpack.c.h.b16 %v543
    %v2354 = vunpack.c.l.b16 %v544
    %v2355 = vunpack.c.h.b16 %v544
    %v2356 = vunpack.c.l.b16 %v545
    %v2357 = vunpack.c.h.b16 %v545
    %v2358 = vunpack.c.l.b16 %v546
    %v2359 = vunpack.c.h.b16 %v546
    %v2360 = vunpack.c.l.b16 %v547
    %v2361 = vunpack.c.h.b16 %v547
    %v2362 = vunpack.c.l.b16 %v548
    %v2363 = vunpack.c.h.b16 %v548
    %v2364 = vunpack.c.l.b16 %v549
    %v2365 = vunpack.c.h.b16 %v549
    %v2366 = vunpack.c.l.b16 %v550
    %v2367 = vunpack.c.h.b16 %v550
    %v2368 = vunpack.c.l.b16 %v551
    %v2369 = vunpack.c.h.b16 %v551
    %v2370 = vunpack.c.l.b16 %v552
    %v2371 = vunpack.c.h.b16 %v552
    %v2372 = vunpack.c.l.b16 %v553
    %v2373 = vunpack.c.h.b16 %v553
    %v2374 = vunpack.c.l.b16 %v554
    %v2375 = vunpack.c.h.b16 %v554
    %v2376 = vunpack.c.l.b16 %v555
    %v2377 = vunpack.c.h.b16 %v555
    %v2378 = vunpack.c.l.b16 %v556
    %v2379 = vunpack.c.h.b16 %v556
    %v2380 = vunpack.c.l.b16 %v557
    %v2381 = vunpack.c.h.b16 %v557
    %v2382 = vunpack.c.l.b16 %v558
    %v2383 = vunpack.c.h.b16 %v558
    %v2384 = vunpack.c.l.b16 %v559
    %v2385 = vunpack.c.h.b16 %v559
    %v2386 = vunpack.c.l.b16 %v560
    %v2387 = vunpack.c.h.b16 %v560
    %v2388 = vunpack.c.l.b16 %v561
    %v2389 = vunpack.c.h.b16 %v561
    %v2390 = vunpack.c.l.b16 %v562
    %v2391 = vunpack.c.h.b16 %v562
    %v2392 = vunpack.c.l.b16 %v563
    %v2393 = vunpack.c.h.b16 %v563
    %v2394 = vunpack.c.l.b16 %v564
    %v2395 = vunpack.c.h.b16 %v564
    %v2396 = vunpack.c.l.b16 %v565
    %v2397 = vunpack.c.h.b16 %v565
    %v2398 = vunpack.c.l.b16 %v566
    %v2399 = vunpack.c.h.b16 %v566
    %v2400 = vunpack.c.l.b16 %v567
    %v2401 = vunpack.c.h.b16 %v567
    %v2402 = vunpack.c.l.b16 %v568
    %v2403 = vunpack.c.h.b16 %v568
    %v2404 = vunpack.c.l.b16 %v569
    %v2405 = vunpack.c.h.b16 %v569
    %v2406 = vunpack.c.l.b16 %v570
    %v2407 = vunpack.c.h.b16 %v570
    %v2408 = vunpack.c.l.b16 %v571
    %v2409 = vunpack.c.h.b16 %v571
    %v2410 = vunpack.c.l.b16 %v572
    %v2411 = vunpack.c.h.b16 %v572
    %v2412 = vunpack.c.l.b16 %v573
    %v2413 = vunpack.c.h.b16 %v573
    %v2414 = vunpack.c.l.b16 %v574
    %v2415 = vunpack.c.h.b16 %v574
    %v2416 = vunpack.c.l.b16 %v575
    %v2417 = vunpack.c.h.b16 %v575
    %v2418 = vunpack.c.l.b16 %v576
    %v2419 = vunpack.c.h.b16 %v576
    %v2420 = vunpack.c.l.b16 %v577
    %v2421 = vunpack.c.h.b16 %v577
    %v2422 = vunpack.c.l.b16 %v578
    %v2423 = vunpack.c.h.b16 %v578
    %v2424 = vunpack.c.l.b16 %v579
    %v2425 = vunpack.c.h.b16 %v579
    %v2426 = vunpack.c.l.b16 %v580
    %v2427 = vunpack.c.h.b16 %v580
    %v2428 = vunpack.c.l.b16 %v581
    %v2429 = vunpack.c.h.b16 %v581
    %v2430 = vunpack.c.l.b16 %v582
    %v2431 = vunpack.c.h.b16 %v582
    %v2432 = vunpack.c.l.b16 %v583
    %v2433 = vunpack.c.h.b16 %v583
    %v2434 = vunpack.c.l.b16 %v584
    %v2435 = vunpack.c.h.b16 %v584
    %v2436 = vunpack.c.l.b16 %v585
    %v2437 = vunpack.c.h.b16 %v585
    %v2438 = vunpack.c.l.b16 %v586
    %v2439 = vunpack.c.h.b16 %v586
    %v2440 = vunpack.c.l.b16 %v587
    %v2441 = vunpack.c.h.b16 %v587
    %v2442 = vunpack.c.l.b16 %v588
    %v2443 = vunpack.c.h.b16 %v588
    %v2444 = vunpack.c.l.b16 %v589
    %v2445 = vunpack.c.h.b16 %v589
    %v2446 = vunpack.c.l.b16 %v590
    %v2447 = vunpack.c.h.b16 %v590
    %v2448 = vunpack.c.l.b16 %v591
    %v2449 = vunpack.c.h.b16 %v591
    %v2450 = vunpack.c.l.b16 %v592
    %v2451 = vunpack.c.h.b16 %v592
    %v2452 = vunpack.c.l.b16 %v593
    %v2453 = vunpack.c.h.b16 %v593
    %v2454 = vunpack.c.l.b16 %v594
    %v2455 = vunpack.c.h.b16 %v594
    %v2456 = vunpack.c.l.b16 %v595
    %v2457 = vunpack.c.h.b16 %v595
    %v2458 = vunpack.c.l.b16 %v596
    %v2459 = vunpack.c.h.b16 %v596
    %v2460 = vunpack.c.l.b16 %v597
    %v2461 = vunpack.c.h.b16 %v597
    %v2462 = vunpack.c.l.b16 %v598
    %v2463 = vunpack.c.h.b16 %v598
    %v2464 = vunpack.c.l.b16 %v599
    %v2465 = vunpack.c.h.b16 %v599
    %v2466 = vunpack.c.l.b16 %v600
    %v2467 = vunpack.c.h.b16 %v600
    %v2468 = vunpack.c.l.b16 %v601
    %v2469 = vunpack.c.h.b16 %v601
    %v2470 = vunpack.c.l.b16 %v602
    %v2471 = vunpack.c.h.b16 %v602
    %v2472 = vunpack.c.l.b16 %v603
    %v2473 = vunpack.c.h.b16 %v603
    %v2474 = vunpack.c.l.b16 %v604
    %v2475 = vunpack.c.h.b16 %v604
    %v2476 = vunpack.c.l.b16 %v605
    %v2477 = vunpack.c.h.b16 %v605
    %v2478 = vunpack.c.l.b16 %v606
    %v2479 = vunpack.c.h.b16 %v606
    %v2480 = vunpack.c.l.b16 %v607
    %v2481 = vunpack.c.h.b16 %v607
    %v2482 = vunpack.c.l.b16 %v608
    %v2483 = vunpack.c.h.b16 %v608
    %v2484 = vunpack.c.l.b16 %v609
    %v2485 = vunpack.c.h.b16 %v609
    %v2486 = vunpack.c.l.b16 %v610
    %v2487 = vunpack.c.h.b16 %v610
    %v2488 = vunpack.c.l.b16 %v611
    %v2489 = vunpack.c.h.b16 %v611
    %v2490 = vunpack.c.l.b16 %v612
    %v2491 = vunpack.c.h.b16 %v612
    %v2492 = vunpack.c.l.b16 %v613
    %v2493 = vunpack.c.h.b16 %v613
    %v2494 = vunpack.c.l.b16 %v614
    %v2495 = vunpack.c.h.b16 %v614
    %v2496 = vunpack.c.l.b16 %v615
    %v2497 = vunpack.c.h.b16 %v615
    %v2498 = vunpack.c.l.b16 %v616
    %v2499 = vunpack.c.h.b16 %v616
    %v2500 = vunpack.c.l.b16 %v617
    %v2501 = vunpack.c.h.b16 %v617
    %v2502 = vunpack.c.l.b16 %v618
    %v2503 = vunpack.c.h.b16 %v618
    %v2504 = vunpack.c.l.b16 %v619
    %v2505 = vunpack.c.h.b16 %v619
    %v2506 = vunpack.c.l.b16 %v620
    %v2507 = vunpack.c.h.b16 %v620
    %v2508 = vunpack.c.l.b16 %v621
    %v2509 = vunpack.c.h.b16 %v621
    %v2510 = vunpack.c.l.b16 %v622
    %v2511 = vunpack.c.h.b16 %v622
    %v2512 = vunpack.c.l.b16 %v623
    %v2513 = vunpack.c.h.b16 %v623
    %v2514 = vunpack.c.l.b16 %v624
    %v2515 = vunpack.c.h.b16 %v624
    %v2516 = vunpack.c.l.b16 %v625
    %v2517 = vunpack.c.h.b16 %v625
    %v2518 = vunpack.c.l.b16 %v626
    %v2519 = vunpack.c.h.b16 %v626
    %v2520 = vunpack.c.l.b16 %v627
    %v2521 = vunpack.c.h.b16 %v627
    %v2522 = vunpack.c.l.b16 %v628
    %v2523 = vunpack.c.h.b16 %v628
    %v2524 = vunpack.c.l.b16 %v629
    %v2525 = vunpack.c.h.b16 %v629
    %v2526 = vunpack.c.l.b16 %v630
    %v2527 = vunpack.c.h.b16 %v630
    %v2528 = vunpack.c.l.b16 %v631
    %v2529 = vunpack.c.h.b16 %v631
    %v2530 = vunpack.c.l.b16 %v632
    %v2531 = vunpack.c.h.b16 %v632
    %v2532 = vunpack.c.l.b16 %v633
    %v2533 = vunpack.c.h.b16 %v633
    %v2534 = vunpack.c.l.b16 %v634
    %v2535 = vunpack.c.h.b16 %v634
    %v2536 = vunpack.c.l.b16 %v635
    %v2537 = vunpack.c.h.b16 %v635
    %v2538 = vunpack.c.l.b16 %v636
    %v2539 = vunpack.c.h.b16 %v636
    %v2540 = vunpack.c.l.b16 %v637
    %v2541 = vunpack.c.h.b16 %v637
    %v2542 = vunpack.c.l.b16 %v638
    %v2543 = vunpack.c.h.b16 %v638
    %v2544 = vunpack.c.l.b16 %v639
    %v2545 = vunpack.c.h.b16 %v639
    %v2546 = vunpack.c.l.b16 %v640
    %v2547 = vunpack.c.h.b16 %v640
    %v2548 = vunpack.c.l.b16 %v641
    %v2549 = vunpack.c.h.b16 %v641
    %v2550 = vunpack.c.l.b16 %v642
    %v2551 = vunpack.c.h.b16 %v642
    %v2552 = vunpack.c.l.b16 %v643
    %v2553 = vunpack.c.h.b16 %v643
    %v2554 = vunpack.c.l.b16 %v644
    %v2555 = vunpack.c.h.b16 %v644
    %v2556 = vunpack.c.l.b16 %v645
    %v2557 = vunpack.c.h.b16 %v645
    %v2558 = vunpack.c.l.b16 %v646
    %v2559 = vunpack.c.h.b16 %v646
    %v2560 = vunpack.c.l.b16 %v647
    %v2561 = vunpack.c.h.b16 %v647
    %v2562 = vunpack.c.l.b16 %v648
    %v2563 = vunpack.c.h.b16 %v648
    %v2564 = vunpack.c.l.b16 %v649
    %v2565 = vunpack.c.h.b16 %v649
    %v2566 = vunpack.c.l.b16 %v650
    %v2567 = vunpack.c.h.b16 %v650
    %v2568 = vunpack.c.l.b16 %v651
    %v2569 = vunpack.c.h.b16 %v651
    %v2570 = vunpack.c.l.b16 %v652
    %v2571 = vunpack.c.h.b16 %v652
    %v2572 = vunpack.c.l.b16 %v653
    %v2573 = vunpack.c.h.b16 %v653
    %v2574 = vunpack.c.l.b16 %v654
    %v2575 = vunpack.c.h.b16 %v654
    %v2576 = vunpack.c.l.b16 %v655
    %v2577 = vunpack.c.h.b16 %v655
    %v2578 = vunpack.c.l.b16 %v656
    %v2579 = vunpack.c.h.b16 %v656
    %v2580 = vunpack.c.l.b16 %v657
    %v2581 = vunpack.c.h.b16 %v657
    %v2582 = vunpack.c.l.b16 %v658
    %v2583 = vunpack.c.h.b16 %v658
    %v2584 = vunpack.c.l.b16 %v659
    %v2585 = vunpack.c.h.b16 %v659
    %v2586 = vunpack.c.l.b16 %v660
    %v2587 = vunpack.c.h.b16 %v660
    %v2588 = vunpack.c.l.b16 %v661
    %v2589 = vunpack.c.h.b16 %v661
    %v2590 = vunpack.c.l.b16 %v662
    %v2591 = vunpack.c.h.b16 %v662
    %v2592 = vunpack.c.l.b16 %v663
    %v2593 = vunpack.c.h.b16 %v663
    %v2594 = vunpack.c.l.b16 %v664
    %v2595 = vunpack.c.h.b16 %v664
    %v2596 = vunpack.c.l.b16 %v665
    %v2597 = vunpack.c.h.b16 %v665
    %v2598 = vunpack.c.l.b16 %v666
    %v2599 = vunpack.c.h.b16 %v666
    %v2600 = vunpack.c.l.b16 %v667
    %v2601 = vunpack.c.h.b16 %v667
    %v2602 = vunpack.c.l.b16 %v668
    %v2603 = vunpack.c.h.b16 %v668
    %v2604 = vunpack.c.l.b16 %v669
    %v2605 = vunpack.c.h.b16 %v669
    %v2606 = vunpack.c.l.b16 %v670
    %v2607 = vunpack.c.h.b16 %v670
    %v2608 = vunpack.c.l.b16 %v671
    %v2609 = vunpack.c.h.b16 %v671
    %v2610 = vunpack.c.l.b16 %v672
    %v2611 = vunpack.c.h.b16 %v672
    %v2612 = vunpack.c.l.b16 %v673
    %v2613 = vunpack.c.h.b16 %v673
    %v2614 = vunpack.c.l.b16 %v674
    %v2615 = vunpack.c.h.b16 %v674
    %v2616 = vunpack.c.l.b16 %v675
    %v2617 = vunpack.c.h.b16 %v675
    %v2618 = vunpack.c.l.b16 %v676
    %v2619 = vunpack.c.h.b16 %v676
    %v2620 = vunpack.c.l.b16 %v677
    %v2621 = vunpack.c.h.b16 %v677
    %v2622 = vunpack.c.l.b16 %v678
    %v2623 = vunpack.c.h.b16 %v678
    %v2624 = vunpack.c.l.b16 %v679
    %v2625 = vunpack.c.h.b16 %v679
    %v2626 = vunpack.c.l.b16 %v680
    %v2627 = vunpack.c.h.b16 %v680
    %v2628 = vunpack.c.l.b16 %v681
    %v2629 = vunpack.c.h.b16 %v681
    %v2630 = vpack.c.b16 %v1360, %v1350
    %v2631 = vpack.c.b16 %v1361, %v1351
    %v2632 = vpack.c.b16 %v1362, %v1352
    %v2633 = vpack.c.b16 %v1363, %v1353
    %v2634 = vpack.c.b16 %v1364, %v1354
    %v2635 = vpack.c.b16 %v1365, %v1355
    %v2636 = vpack.c.b16 %v1366, %v1356
    %v2637 = vpack.c.b16 %v1367, %v1357
    %v2638 = vpack.c.b16 %v1368, %v1358
    %v2639 = vpack.c.b16 %v1369, %v1359
    %v2640 = vpack.c.b16 %v1380, %v1370
    %v2641 = vpack.c.b16 %v1381, %v1371
    %v2642 = vpack.c.b16 %v1382, %v1372
    %v2643 = vpack.c.b16 %v1383, %v1373
    %v2644 = vpack.c.b16 %v1384, %v1374
    %v2645 = vpack.c.b16 %v1385, %v1375
    %v2646 = vpack.c.b16 %v1386, %v1376
    %v2647 = vpack.c.b16 %v1387, %v1377
    %v2648 = vpack.c.b16 %v1388, %v1378
    %v2649 = vpack.c.b16 %v1389, %v1379
    %v2650 = vpack.c.b16 %v1400, %v1390
    %v2651 = vpack.c.b16 %v1401, %v1391
    %v2652 = vpack.c.b16 %v1402, %v1392
    %v2653 = vpack.c.b16 %v1403, %v1393
    %v2654 = vpack.c.b16 %v1404, %v1394
    %v2655 = vpack.c.b16 %v1405, %v1395
    %v2656 = vpack.c.b16 %v1406, %v1396
    %v2657 = vpack.c.b16 %v1407, %v1397
    %v2658 = vpack.c.b16 %v1408, %v1398
    %v2659 = vpack.c.b16 %v1409, %v1399
    %v2660 = vpack.c.b16 %v1420, %v1410
    %v2661 = vpack.c.b16 %v1421, %v1411
    %v2662 = vpack.c.b16 %v1422, %v1412
    %v2663 = vpack.c.b16 %v1423, %v1413
    %v2664 = vpack.c.b16 %v1424, %v1414
    %v2665 = vpack.c.b16 %v1425, %v1415
    %v2666 = vpack.c.b16 %v1426, %v1416
    %v2667 = vpack.c.b16 %v1427, %v1417
    %v2668 = vpack.c.b16 %v1428, %v1418
    %v2669 = vpack.c.b16 %v1429, %v1419
    %v2670 = vpack.c.b16 %v1440, %v1430
    %v2671 = vpack.c.b16 %v1441, %v1431
    %v2672 = vpack.c.b16 %v1442, %v1432
    %v2673 = vpack.c.b16 %v1443, %v1433
    %v2674 = vpack.c.b16 %v1444, %v1434
    %v2675 = vpack.c.b16 %v1445, %v1435
    %v2676 = vpack.c.b16 %v1446, %v1436
    %v2677 = vpack.c.b16 %v1447, %v1437
    %v2678 = vpack.c.b16 %v1448, %v1438
    %v2679 = vpack.c.b16 %v1449, %v1439
    %v2680 = vpack.c.b16 %v1460, %v1450
    %v2681 = vpack.c.b16 %v1461, %v1451
    %v2682 = vpack.c.b16 %v1462, %v1452
    %v2683 = vpack.c.b16 %v1463, %v1453
    %v2684 = vpack.c.b16 %v1464, %v1454
    %v2685 = vpack.c.b16 %v1465, %v1455
    %v2686 = vpack.c.b16 %v1466, %v1456
    %v2687 = vpack.c.b16 %v1467, %v1457
    %v2688 = vpack.c.b16 %v1468, %v1458
    %v2689 = vpack.c.b16 %v1469, %v1459
    %v2690 = vpack.c.b16 %v1480, %v1470
    %v2691 = vpack.c.b16 %v1481, %v1471
    %v2692 = vpack.c.b16 %v1482, %v1472
    %v2693 = vpack.c.b16 %v1483, %v1473
    %v2694 = vpack.c.b16 %v1484, %v1474
    %v2695 = vpack.c.b16 %v1485, %v1475
    %v2696 = vpack.c.b16 %v1486, %v1476
    %v2697 = vpack.c.b16 %v1487, %v1477
    %v2698 = vpack.c.b16 %v1488, %v1478
    %v2699 = vpack.c.b16 %v1489, %v1479
    %v2700 = vpack.c.b16 %v1500, %v1490
    %v2701 = vpack.c.b16 %v1501, %v1491
    %v2702 = vpack.c.b16 %v1502, %v1492
    %v2703 = vpack.c.b16 %v1503, %v1493
    %v2704 = vpack.c.b16 %v1504, %v1494
    %v2705 = vpack.c.b16 %v1505, %v1495
    %v2706 = vpack.c.b16 %v1506, %v1496
    %v2707 = vpack.c.b16 %v1507, %v1497
    %v2708 = vpack.c.b16 %v1508, %v1498
    %v2709 = vpack.c.b16 %v1509, %v1499
    %v2710 = vpack.c.b16 %v1520, %v1510
    %v2711 = vpack.c.b16 %v1521, %v1511
    %v2712 = vpack.c.b16 %v1522, %v1512
    %v2713 = vpack.c.b16 %v1523, %v1513
    %v2714 = vpack.c.b16 %v1524, %v1514
    %v2715 = vpack.c.b16 %v1525, %v1515
    %v2716 = vpack.c.b16 %v1526, %v1516
    %v2717 = vpack.c.b16 %v1527, %v1517
    %v2718 = vpack.c.b16 %v1528, %v1518
    %v2719 = vpack.c.b16 %v1529, %v1519
    %v2720 = vpack.c.b16 %v1540, %v1530
    %v2721 = vpack.c.b16 %v1541, %v1531
    %v2722 = vpack.c.b16 %v1542, %v1532
    %v2723 = vpack.c.b16 %v1543, %v1533
    %v2724 = vpack.c.b16 %v1544, %v1534
    %v2725 = vpack.c.b16 %v1545, %v1535
    %v2726 = vpack.c.b16 %v1546, %v1536
    %v2727 = vpack.c.b16 %v1547, %v1537
    %v2728 = vpack.c.b16 %v1548, %v1538
    %v2729 = vpack.c.b16 %v1549, %v1539
    %v2730 = vpack.c.b16 %v1560, %v1550
    %v2731 = vpack.c.b16 %v1561, %v1551
    %v2732 = vpack.c.b16 %v1562, %v1552
    %v2733 = vpack.c.b16 %v1563, %v1553
    %v2734 = vpack.c.b16 %v1564, %v1554
    %v2735 = vpack.c.b16 %v1565, %v1555
    %v2736 = vpack.c.b16 %v1566, %v1556
    %v2737 = vpack.c.b16 %v1567, %v1557
    %v2738 = vpack.c.b16 %v1568, %v1558
    %v2739 = vpack.c.b16 %v1569, %v1559
    %v2740 = vpack.c.b16 %v1580, %v1570
    %v2741 = vpack.c.b16 %v1581, %v1571
    %v2742 = vpack.c.b16 %v1582, %v1572
    %v2743 = vpack.c.b16 %v1583, %v1573
    %v2744 = vpack.c.b16 %v1584, %v1574
    %v2745 = vpack.c.b16 %v1585, %v1575
    %v2746 = vpack.c.b16 %v1586, %v1576
    %v2747 = vpack.c.b16 %v1587, %v1577
    %v2748 = vpack.c.b16 %v1588, %v1578
    %v2749 = vpack.c.b16 %v1589, %v1579
    %v2750 = vpack.c.b16 %v1600, %v1590
    %v2751 = vpack.c.b16 %v1601, %v1591
    %v2752 = vpack.c.b16 %v1602, %v1592
    %v2753 = vpack.c.b16 %v1603, %v1593
    %v2754 = vpack.c.b16 %v1604, %v1594
    %v2755 = vpack.c.b16 %v1605, %v1595
    %v2756 = vpack.c.b16 %v1606, %v1596
    %v2757 = vpack.c.b16 %v1607, %v1597
    %v2758 = vpack.c.b16 %v1608, %v1598
    %v2759 = vpack.c.b16 %v1609, %v1599
    %v2760 = vpack.c.b16 %v1620, %v1610
    %v2761 = vpack.c.b16 %v1621, %v1611
    %v2762 = vpack.c.b16 %v1622, %v1612
    %v2763 = vpack.c.b16 %v1623, %v1613
    %v2764 = vpack.c.b16 %v1624, %v1614
    %v2765 = vpack.c.b16 %v1625, %v1615
    %v2766 = vpack.c.b16 %v1626, %v1616
    %v2767 = vpack.c.b16 %v1627, %v1617
    %v2768 = vpack.c.b16 %v1628, %v1618
    %v2769 = vpack.c.b16 %v1629, %v1619
    %v2770 = vpack.c.b16 %v1640, %v1630
    %v2771 = vpack.c.b16 %v1641, %v1631
    %v2772 = vpack.c.b16 %v1642, %v1632
    %v2773 = vpack.c.b16 %v1643, %v1633
    %v2774 = vpack.c.b16 %v1644, %v1634
    %v2775 = vpack.c.b16 %v1645, %v1635
    %v2776 = vpack.c.b16 %v1646, %v1636
    %v2777 = vpack.c.b16 %v1647, %v1637
    %v2778 = vpack.c.b16 %v1648, %v1638
    %v2779 = vpack.c.b16 %v1649, %v1639
    %v2780 = vpack.c.b16 %v1660, %v1650
    %v2781 = vpack.c.b16 %v1661, %v1651
    %v2782 = vpack.c.b16 %v1662, %v1652
    %v2783 = vpack.c.b16 %v1663, %v1653
    %v2784 = vpack.c.b16 %v1664, %v1654
    %v2785 = vpack.c.b16 %v1665, %v1655
    %v2786 = vpack.c.b16 %v1666, %v1656
    %v2787 = vpack.c.b16 %v1667, %v1657
    %v2788 = vpack.c.b16 %v1668, %v1658
    %v2789 = vpack.c.b16 %v1669, %v1659
    %v2790 = vpack.c.b16 %v1680, %v1670
    %v2791 = vpack.c.b16 %v1681, %v1671
    %v2792 = vpack.c.b16 %v1682, %v1672
    %v2793 = vpack.c.b16 %v1683, %v1673
    %v2794 = vpack.c.b16 %v1684, %v1674
    %v2795 = vpack.c.b16 %v1685, %v1675
    %v2796 = vpack.c.b16 %v1686, %v1676
    %v2797 = vpack.c.b16 %v1687, %v1677
    %v2798 = vpack.c.b16 %v1688, %v1678
    %v2799 = vpack.c.b16 %v1689, %v1679
    %v2800 = vpack.c.b16 %v1700, %v1690
    %v2801 = vpack.c.b16 %v1701, %v1691
    %v2802 = vpack.c.b16 %v1702, %v1692
    %v2803 = vpack.c.b16 %v1703, %v1693
    %v2804 = vpack.c.b16 %v1704, %v1694
    %v2805 = vpack.c.b16 %v1705, %v1695
    %v2806 = vpack.c.b16 %v1706, %v1696
    %v2807 = vpack.c.b16 %v1707, %v1697
    %v2808 = vpack.c.b16 %v1708, %v1698
    %v2809 = vpack.c.b16 %v1709, %v1699
    %v2810 = vpack.c.b16 %v1720, %v1710
    %v2811 = vpack.c.b16 %v1721, %v1711
    %v2812 = vpack.c.b16 %v1722, %v1712
    %v2813 = vpack.c.b16 %v1723, %v1713
    %v2814 = vpack.c.b16 %v1724, %v1714
    %v2815 = vpack.c.b16 %v1725, %v1715
    %v2816 = vpack.c.b16 %v1726, %v1716
    %v2817 = vpack.c.b16 %v1727, %v1717
    %v2818 = vpack.c.b16 %v1728, %v1718
    %v2819 = vpack.c.b16 %v1729, %v1719
    %v2820 = vpack.c.b16 %v1740, %v1730
    %v2821 = vpack.c.b16 %v1741, %v1731
    %v2822 = vpack.c.b16 %v1742, %v1732
    %v2823 = vpack.c.b16 %v1743, %v1733
    %v2824 = vpack.c.b16 %v1744, %v1734
    %v2825 = vpack.c.b16 %v1745, %v1735
    %v2826 = vpack.c.b16 %v1746, %v1736
    %v2827 = vpack.c.b16 %v1747, %v1737
    %v2828 = vpack.c.b16 %v1748, %v1738
    %v2829 = vpack.c.b16 %v1749, %v1739
    %v2830 = vpack.c.b16 %v1760, %v1750
    %v2831 = vpack.c.b16 %v1761, %v1751
    %v2832 = vpack.c.b16 %v1762, %v1752
    %v2833 = vpack.c.b16 %v1763, %v1753
    %v2834 = vpack.c.b16 %v1764, %v1754
    %v2835 = vpack.c.b16 %v1765, %v1755
    %v2836 = vpack.c.b16 %v1766, %v1756
    %v2837 = vpack.c.b16 %v1767, %v1757
    %v2838 = vpack.c.b16 %v1768, %v1758
    %v2839 = vpack.c.b16 %v1769, %v1759
    %v2840 = vpack.c.b16 %v1780, %v1770
    %v2841 = vpack.c.b16 %v1781, %v1771
    %v2842 = vpack.c.b16 %v1782, %v1772
    %v2843 = vpack.c.b16 %v1783, %v1773
    %v2844 = vpack.c.b16 %v1784, %v1774
    %v2845 = vpack.c.b16 %v1785, %v1775
    %v2846 = vpack.c.b16 %v1786, %v1776
    %v2847 = vpack.c.b16 %v1787, %v1777
    %v2848 = vpack.c.b16 %v1788, %v1778
    %v2849 = vpack.c.b16 %v1789, %v1779
    %v2850 = vpack.c.b16 %v1800, %v1790
    %v2851 = vpack.c.b16 %v1801, %v1791
    %v2852 = vpack.c.b16 %v1802, %v1792
    %v2853 = vpack.c.b16 %v1803, %v1793
    %v2854 = vpack.c.b16 %v1804, %v1794
    %v2855 = vpack.c.b16 %v1805, %v1795
    %v2856 = vpack.c.b16 %v1806, %v1796
    %v2857 = vpack.c.b16 %v1807, %v1797
    %v2858 = vpack.c.b16 %v1808, %v1798
    %v2859 = vpack.c.b16 %v1809, %v1799
    %v2860 = vpack.c.b16 %v1820, %v1810
    %v2861 = vpack.c.b16 %v1821, %v1811
    %v2862 = vpack.c.b16 %v1822, %v1812
    %v2863 = vpack.c.b16 %v1823, %v1813
    %v2864 = vpack.c.b16 %v1824, %v1814
    %v2865 = vpack.c.b16 %v1825, %v1815
    %v2866 = vpack.c.b16 %v1826, %v1816
    %v2867 = vpack.c.b16 %v1827, %v1817
    %v2868 = vpack.c.b16 %v1828, %v1818
    %v2869 = vpack.c.b16 %v1829, %v1819
    %v2870 = vpack.c.b16 %v1840, %v1830
    %v2871 = vpack.c.b16 %v1841, %v1831
    %v2872 = vpack.c.b16 %v1842, %v1832
    %v2873 = vpack.c.b16 %v1843, %v1833
    %v2874 = vpack.c.b16 %v1844, %v1834
    %v2875 = vpack.c.b16 %v1845, %v1835
    %v2876 = vpack.c.b16 %v1846, %v1836
    %v2877 = vpack.c.b16 %v1847, %v1837
    %v2878 = vpack.c.b16 %v1848, %v1838
    %v2879 = vpack.c.b16 %v1849, %v1839
    %v2880 = vpack.c.b16 %v1860, %v1850
    %v2881 = vpack.c.b16 %v1861, %v1851
    %v2882 = vpack.c.b16 %v1862, %v1852
    %v2883 = vpack.c.b16 %v1863, %v1853
    %v2884 = vpack.c.b16 %v1864, %v1854
    %v2885 = vpack.c.b16 %v1865, %v1855
    %v2886 = vpack.c.b16 %v1866, %v1856
    %v2887 = vpack.c.b16 %v1867, %v1857
    %v2888 = vpack.c.b16 %v1868, %v1858
    %v2889 = vpack.c.b16 %v1869, %v1859
    %v2890 = vpack.c.b16 %v1880, %v1870
    %v2891 = vpack.c.b16 %v1881, %v1871
    %v2892 = vpack.c.b16 %v1882, %v1872
    %v2893 = vpack.c.b16 %v1883, %v1873
    %v2894 = vpack.c.b16 %v1884, %v1874
    %v2895 = vpack.c.b16 %v1885, %v1875
    %v2896 = vpack.c.b16 %v1886, %v1876
    %v2897 = vpack.c.b16 %v1887, %v1877
    %v2898 = vpack.c.b16 %v1888, %v1878
    %v2899 = vpack.c.b16 %v1889, %v1879
    %v2900 = vpack.c.b16 %v1900, %v1890
    %v2901 = vpack.c.b16 %v1901, %v1891
    %v2902 = vpack.c.b16 %v1902, %v1892
    %v2903 = vpack.c.b16 %v1903, %v1893
    %v2904 = vpack.c.b16 %v1904, %v1894
    %v2905 = vpack.c.b16 %v1905, %v1895
    %v2906 = vpack.c.b16 %v1906, %v1896
    %v2907 = vpack.c.b16 %v1907, %v1897
    %v2908 = vpack.c.b16 %v1908, %v1898
    %v2909 = vpack.c.b16 %v1909, %v1899
    %v2910 = vpack.c.b16 %v1920, %v1910
    %v2911 = vpack.c.b16 %v1921, %v1911
    %v2912 = vpack.c.b16 %v1922, %v1912
    %v2913 = vpack.c.b16 %v1923, %v1913
    %v2914 = vpack.c.b16 %v1924, %v1914
    %v2915 = vpack.c.b16 %v1925, %v1915
    %v2916 = vpack.c.b16 %v1926, %v1916
    %v2917 = vpack.c.b16 %v1927, %v1917
    %v2918 = vpack.c.b16 %v1928, %v1918
    %v2919 = vpack.c.b16 %v1929, %v1919
    %v2920 = vpack.c.b16 %v1940, %v1930
    %v2921 = vpack.c.b16 %v1941, %v1931
    %v2922 = vpack.c.b16 %v1942, %v1932
    %v2923 = vpack.c.b16 %v1943, %v1933
    %v2924 = vpack.c.b16 %v1944, %v1934
    %v2925 = vpack.c.b16 %v1945, %v1935
    %v2926 = vpack.c.b16 %v1946, %v1936
    %v2927 = vpack.c.b16 %v1947, %v1937
    %v2928 = vpack.c.b16 %v1948, %v1938
    %v2929 = vpack.c.b16 %v1949, %v1939
    %v2930 = vpack.c.b16 %v1960, %v1950
    %v2931 = vpack.c.b16 %v1961, %v1951
    %v2932 = vpack.c.b16 %v1962, %v1952
    %v2933 = vpack.c.b16 %v1963, %v1953
    %v2934 = vpack.c.b16 %v1964, %v1954
    %v2935 = vpack.c.b16 %v1965, %v1955
    %v2936 = vpack.c.b16 %v1966, %v1956
    %v2937 = vpack.c.b16 %v1967, %v1957
    %v2938 = vpack.c.b16 %v1968, %v1958
    %v2939 = vpack.c.b16 %v1969, %v1959
    %v2940 = vpack.c.b16 %v1980, %v1970
    %v2941 = vpack.c.b16 %v1981, %v1971
    %v2942 = vpack.c.b16 %v1982, %v1972
    %v2943 = vpack.c.b16 %v1983, %v1973
    %v2944 = vpack.c.b16 %v1984, %v1974
    %v2945 = vpack.c.b16 %v1985, %v1975
    %v2946 = vpack.c.b16 %v1986, %v1976
    %v2947 = vpack.c.b16 %v1987, %v1977
    %v2948 = vpack.c.b16 %v1988, %v1978
    %v2949 = vpack.c.b16 %v1989, %v1979
    %v2950 = vpack.c.b16 %v2000, %v1990
    %v2951 = vpack.c.b16 %v2001, %v1991
    %v2952 = vpack.c.b16 %v2002, %v1992
    %v2953 = vpack.c.b16 %v2003, %v1993
    %v2954 = vpack.c.b16 %v2004, %v1994
    %v2955 = vpack.c.b16 %v2005, %v1995
    %v2956 = vpack.c.b16 %v2006, %v1996
    %v2957 = vpack.c.b16 %v2007, %v1997
    %v2958 = vpack.c.b16 %v2008, %v1998
    %v2959 = vpack.c.b16 %v2009, %v1999
    %v2960 = vpack.c.b16 %v2020, %v2010
    %v2961 = vpack.c.b16 %v2021, %v2011
    %v2962 = vpack.c.b16 %v2022, %v2012
    %v2963 = vpack.c.b16 %v2023, %v2013
    %v2964 = vpack.c.b16 %v2024, %v2014
    %v2965 = vpack.c.b16 %v2025, %v2015
    %v2966 = vpack.c.b16 %v2026, %v2016
    %v2967 = vpack.c.b16 %v2027, %v2017
    %v2968 = vpack.c.b16 %v2028, %v2018
    %v2969 = vpack.c.b16 %v2029, %v2019
    %v2970 = vpack.c.b16 %v2040, %v2030
    %v2971 = vpack.c.b16 %v2041, %v2031
    %v2972 = vpack.c.b16 %v2042, %v2032
    %v2973 = vpack.c.b16 %v2043, %v2033
    %v2974 = vpack.c.b16 %v2044, %v2034
    %v2975 = vpack.c.b16 %v2045, %v2035
    %v2976 = vpack.c.b16 %v2046, %v2036
    %v2977 = vpack.c.b16 %v2047, %v2037
    %v2978 = vpack.c.b16 %v2048, %v2038
    %v2979 = vpack.c.b16 %v2049, %v2039
    %v2980 = vpack.c.b16 %v2060, %v2050
    %v2981 = vpack.c.b16 %v2061, %v2051
    %v2982 = vpack.c.b16 %v2062, %v2052
    %v2983 = vpack.c.b16 %v2063, %v2053
    %v2984 = vpack.c.b16 %v2064, %v2054
    %v2985 = vpack.c.b16 %v2065, %v2055
    %v2986 = vpack.c.b16 %v2066, %v2056
    %v2987 = vpack.c.b16 %v2067, %v2057
    %v2988 = vpack.c.b16 %v2068, %v2058
    %v2989 = vpack.c.b16 %v2069, %v2059
    %v2990 = vpack.c.b16 %v2080, %v2070
    %v2991 = vpack.c.b16 %v2081, %v2071
    %v2992 = vpack.c.b16 %v2082, %v2072
    %v2993 = vpack.c.b16 %v2083, %v2073
    %v2994 = vpack.c.b16 %v2084, %v2074
    %v2995 = vpack.c.b16 %v2085, %v2075
    %v2996 = vpack.c.b16 %v2086, %v2076
    %v2997 = vpack.c.b16 %v2087, %v2077
    %v2998 = vpack.c.b16 %v2088, %v2078
    %v2999 = vpack.c.b16 %v2089, %v2079
    %v3000 = vpack.c.b16 %v2100, %v2090
    %v3001 = vpack.c.b16 %v2101, %v2091
    %v3002 = vpack.c.b16 %v2102, %v2092
    %v3003 = vpack.c.b16 %v2103, %v2093
    %v3004 = vpack.c.b16 %v2104, %v2094
    %v3005 = vpack.c.b16 %v2105, %v2095
    %v3006 = vpack.c.b16 %v2106, %v2096
    %v3007 = vpack.c.b16 %v2107, %v2097
    %v3008 = vpack.c.b16 %v2108, %v2098
    %v3009 = vpack.c.b16 %v2109, %v2099
    %v3010 = vpack.c.b16 %v2120, %v2110
    %v3011 = vpack.c.b16 %v2121, %v2111
    %v3012 = vpack.c.b16 %v2122, %v2112
    %v3013 = vpack.c.b16 %v2123, %v2113
    %v3014 = vpack.c.b16 %v2124, %v2114
    %v3015 = vpack.c.b16 %v2125, %v2115
    %v3016 = vpack.c.b16 %v2126, %v2116
    %v3017 = vpack.c.b16 %v2127, %v2117
    %v3018 = vpack.c.b16 %v2128, %v2118
    %v3019 = vpack.c.b16 %v2129, %v2119
    %v3020 = vpack.c.b16 %v2140, %v2130
    %v3021 = vpack.c.b16 %v2141, %v2131
    %v3022 = vpack.c.b16 %v2142, %v2132
    %v3023 = vpack.c.b16 %v2143, %v2133
    %v3024 = vpack.c.b16 %v2144, %v2134
    %v3025 = vpack.c.b16 %v2145, %v2135
    %v3026 = vpack.c.b16 %v2146, %v2136
    %v3027 = vpack.c.b16 %v2147, %v2137
    %v3028 = vpack.c.b16 %v2148, %v2138
    %v3029 = vpack.c.b16 %v2149, %v2139
    %v3030 = vpack.c.b16 %v2160, %v2150
    %v3031 = vpack.c.b16 %v2161, %v2151
    %v3032 = vpack.c.b16 %v2162, %v2152
    %v3033 = vpack.c.b16 %v2163, %v2153
    %v3034 = vpack.c.b16 %v2164, %v2154
    %v3035 = vpack.c.b16 %v2165, %v2155
    %v3036 = vpack.c.b16 %v2166, %v2156
    %v3037 = vpack.c.b16 %v2167, %v2157
    %v3038 = vpack.c.b16 %v2168, %v2158
    %v3039 = vpack.c.b16 %v2169, %v2159
    %v3040 = vpack.c.b16 %v2180, %v2170
    %v3041 = vpack.c.b16 %v2181, %v2171
    %v3042 = vpack.c.b16 %v2182, %v2172
    %v3043 = vpack.c.b16 %v2183, %v2173
    %v3044 = vpack.c.b16 %v2184, %v2174
    %v3045 = vpack.c.b16 %v2185, %v2175
    %v3046 = vpack.c.b16 %v2186, %v2176
    %v3047 = vpack.c.b16 %v2187, %v2177
    %v3048 = vpack.c.b16 %v2188, %v2178
    %v3049 = vpack.c.b16 %v2189, %v2179
    %v3050 = vpack.c.b16 %v2200, %v2190
    %v3051 = vpack.c.b16 %v2201, %v2191
    %v3052 = vpack.c.b16 %v2202, %v2192
    %v3053 = vpack.c.b16 %v2203, %v2193
    %v3054 = vpack.c.b16 %v2204, %v2194
    %v3055 = vpack.c.b16 %v2205, %v2195
    %v3056 = vpack.c.b16 %v2206, %v2196
    %v3057 = vpack.c.b16 %v2207, %v2197
    %v3058 = vpack.c.b16 %v2208, %v2198
    %v3059 = vpack.c.b16 %v2209, %v2199
    %v3060 = vpack.c.b16 %v2220, %v2210
    %v3061 = vpack.c.b16 %v2221, %v2211
    %v3062 = vpack.c.b16 %v2222, %v2212
    %v3063 = vpack.c.b16 %v2223, %v2213
    %v3064 = vpack.c.b16 %v2224, %v2214
    %v3065 = vpack.c.b16 %v2225, %v2215
    %v3066 = vpack.c.b16 %v2226, %v2216
    %v3067 = vpack.c.b16 %v2227, %v2217
    %v3068 = vpack.c.b16 %v2228, %v2218
    %v3069 = vpack.c.b16 %v2229, %v2219
    %v3070 = vpack.c.b16 %v2240, %v2230
    %v3071 = vpack.c.b16 %v2241, %v2231
    %v3072 = vpack.c.b16 %v2242, %v2232
    %v3073 = vpack.c.b16 %v2243, %v2233
    %v3074 = vpack.c.b16 %v2244, %v2234
    %v3075 = vpack.c.b16 %v2245, %v2235
    %v3076 = vpack.c.b16 %v2246, %v2236
    %v3077 = vpack.c.b16 %v2247, %v2237
    %v3078 = vpack.c.b16 %v2248, %v2238
    %v3079 = vpack.c.b16 %v2249, %v2239
    %v3080 = vpack.c.b16 %v2260, %v2250
    %v3081 = vpack.c.b16 %v2261, %v2251
    %v3082 = vpack.c.b16 %v2262, %v2252
    %v3083 = vpack.c.b16 %v2263, %v2253
    %v3084 = vpack.c.b16 %v2264, %v2254
    %v3085 = vpack.c.b16 %v2265, %v2255
    %v3086 = vpack.c.b16 %v2266, %v2256
    %v3087 = vpack.c.b16 %v2267, %v2257
    %v3088 = vpack.c.b16 %v2268, %v2258
    %v3089 = vpack.c.b16 %v2269, %v2259
    %v3090 = vpack.c.b16 %v2280, %v2270
    %v3091 = vpack.c.b16 %v2281, %v2271
    %v3092 = vpack.c.b16 %v2282, %v2272
    %v3093 = vpack.c.b16 %v2283, %v2273
    %v3094 = vpack.c.b16 %v2284, %v2274
    %v3095 = vpack.c.b16 %v2285, %v2275
    %v3096 = vpack.c.b16 %v2286, %v2276
    %v3097 = vpack.c.b16 %v2287, %v2277
    %v3098 = vpack.c.b16 %v2288, %v2278
    %v3099 = vpack.c.b16 %v2289, %v2279
    %v3100 = vpack.c.b16 %v2300, %v2290
    %v3101 = vpack.c.b16 %v2301, %v2291
    %v3102 = vpack.c.b16 %v2302, %v2292
    %v3103 = vpack.c.b16 %v2303, %v2293
    %v3104 = vpack.c.b16 %v2304, %v2294
    %v3105 = vpack.c.b16 %v2305, %v2295
    %v3106 = vpack.c.b16 %v2306, %v2296
    %v3107 = vpack.c.b16 %v2307, %v2297
    %v3108 = vpack.c.b16 %v2308, %v2298
    %v3109 = vpack.c.b16 %v2309, %v2299
    %v3110 = vpack.c.b16 %v2320, %v2310
    %v3111 = vpack.c.b16 %v2321, %v2311
    %v3112 = vpack.c.b16 %v2322, %v2312
    %v3113 = vpack.c.b16 %v2323, %v2313
    %v3114 = vpack.c.b16 %v2324, %v2314
    %v3115 = vpack.c.b16 %v2325, %v2315
    %v3116 = vpack.c.b16 %v2326, %v2316
    %v3117 = vpack.c.b16 %v2327, %v2317
    %v3118 = vpack.c.b16 %v2328, %v2318
    %v3119 = vpack.c.b16 %v2329, %v2319
    %v3120 = vpack.c.b16 %v2340, %v2330
    %v3121 = vpack.c.b16 %v2341, %v2331
    %v3122 = vpack.c.b16 %v2342, %v2332
    %v3123 = vpack.c.b16 %v2343, %v2333
    %v3124 = vpack.c.b16 %v2344, %v2334
    %v3125 = vpack.c.b16 %v2345, %v2335
    %v3126 = vpack.c.b16 %v2346, %v2336
    %v3127 = vpack.c.b16 %v2347, %v2337
    %v3128 = vpack.c.b16 %v2348, %v2338
    %v3129 = vpack.c.b16 %v2349, %v2339
    %v3130 = vpack.c.b16 %v2360, %v2350
    %v3131 = vpack.c.b16 %v2361, %v2351
    %v3132 = vpack.c.b16 %v2362, %v2352
    %v3133 = vpack.c.b16 %v2363, %v2353
    %v3134 = vpack.c.b16 %v2364, %v2354
    %v3135 = vpack.c.b16 %v2365, %v2355
    %v3136 = vpack.c.b16 %v2366, %v2356
    %v3137 = vpack.c.b16 %v2367, %v2357
    %v3138 = vpack.c.b16 %v2368, %v2358
    %v3139 = vpack.c.b16 %v2369, %v2359
    %v3140 = vpack.c.b16 %v2380, %v2370
    %v3141 = vpack.c.b16 %v2381, %v2371
    %v3142 = vpack.c.b16 %v2382, %v2372
    %v3143 = vpack.c.b16 %v2383, %v2373
    %v3144 = vpack.c.b16 %v2384, %v2374
    %v3145 = vpack.c.b16 %v2385, %v2375
    %v3146 = vpack.c.b16 %v2386, %v2376
    %v3147 = vpack.c.b16 %v2387, %v2377
    %v3148 = vpack.c.b16 %v2388, %v2378
    %v3149 = vpack.c.b16 %v2389, %v2379
    %v3150 = vpack.c.b16 %v2400, %v2390
    %v3151 = vpack.c.b16 %v2401, %v2391
    %v3152 = vpack.c.b16 %v2402, %v2392
    %v3153 = vpack.c.b16 %v2403, %v2393
    %v3154 = vpack.c.b16 %v2404, %v2394
    %v3155 = vpack.c.b16 %v2405, %v2395
    %v3156 = vpack.c.b16 %v2406, %v2396
    %v3157 = vpack.c.b16 %v2407, %v2397
    %v3158 = vpack.c.b16 %v2408, %v2398
    %v3159 = vpack.c.b16 %v2409, %v2399
    %v3160 = vpack.c.b16 %v2420, %v2410
    %v3161 = vpack.c.b16 %v2421, %v2411
    %v3162 = vpack.c.b16 %v2422, %v2412
    %v3163 = vpack.c.b16 %v2423, %v2413
    %v3164 = vpack.c.b16 %v2424, %v2414
    %v3165 = vpack.c.b16 %v2425, %v2415
    %v3166 = vpack.c.b16 %v2426, %v2416
    %v3167 = vpack.c.b16 %v2427, %v2417
    %v3168 = vpack.c.b16 %v2428, %v2418
    %v3169 = vpack.c.b16 %v2429, %v2419
    %v3170 = vpack.c.b16 %v2440, %v2430
    %v3171 = vpack.c.b16 %v2441, %v2431
    %v3172 = vpack.c.b16 %v2442, %v2432
    %v3173 = vpack.c.b16 %v2443, %v2433
    %v3174 = vpack.c.b16 %v2444, %v2434
    %v3175 = vpack.c.b16 %v2445, %v2435
    %v3176 = vpack.c.b16 %v2446, %v2436
    %v3177 = vpack.c.b16 %v2447, %v2437
    %v3178 = vpack.c.b16 %v2448, %v2438
    %v3179 = vpack.c.b16 %v2449, %v2439
    %v3180 = vpack.c.b16 %v2460, %v2450
    %v3181 = vpack.c.b16 %v2461, %v2451
    %v3182 = vpack.c.b16 %v2462, %v2452
    %v3183 = vpack.c.b16 %v2463, %v2453
    %v3184 = vpack.c.b16 %v2464, %v2454
    %v3185 = vpack.c.b16 %v2465, %v2455
    %v3186 = vpack.c.b16 %v2466, %v2456
    %v3187 = vpack.c.b16 %v2467, %v2457
    %v3188 = vpack.c.b16 %v2468, %v2458
    %v3189 = vpack.c.b16 %v2469, %v2459
    %v3190 = vpack.c.b16 %v2480, %v2470
    %v3191 = vpack.c.b16 %v2481, %v2471
    %v3192 = vpack.c.b16 %v2482, %v2472
    %v3193 = vpack.c.b16 %v2483, %v2473
    %v3194 = vpack.c.b16 %v2484, %v2474
    %v3195 = vpack.c.b16 %v2485, %v2475
    %v3196 = vpack.c.b16 %v2486, %v2476
    %v3197 = vpack.c.b16 %v2487, %v2477
    %v3198 = vpack.c.b16 %v2488, %v2478
    %v3199 = vpack.c.b16 %v2489, %v2479
    %v3200 = vpack.c.b16 %v2500, %v2490
    %v3201 = vpack.c.b16 %v2501, %v2491
    %v3202 = vpack.c.b16 %v2502, %v2492
    %v3203 = vpack.c.b16 %v2503, %v2493
    %v3204 = vpack.c.b16 %v2504, %v2494
    %v3205 = vpack.c.b16 %v2505, %v2495
    %v3206 = vpack.c.b16 %v2506, %v2496
    %v3207 = vpack.c.b16 %v2507, %v2497
    %v3208 = vpack.c.b16 %v2508, %v2498
    %v3209 = vpack.c.b16 %v2509, %v2499
    %v3210 = vpack.c.b16 %v2520, %v2510
    %v3211 = vpack.c.b16 %v2521, %v2511
    %v3212 = vpack.c.b16 %v2522, %v2512
    %v3213 = vpack.c.b16 %v2523, %v2513
    %v3214 = vpack.c.b16 %v2524, %v2514
    %v3215 = vpack.c.b16 %v2525, %v2515
    %v3216 = vpack.c.b16 %v2526, %v2516
    %v3217 = vpack.c.b16 %v2527, %v2517
    %v3218 = vpack.c.b16 %v2528, %v2518
    %v3219 = vpack.c.b16 %v2529, %v2519
    %v3220 = vpack.c.b16 %v2540, %v2530
    %v3221 = vpack.c.b16 %v2541, %v2531
    %v3222 = vpack.c.b16 %v2542, %v2532
    %v3223 = vpack.c.b16 %v2543, %v2533
    %v3224 = vpack.c.b16 %v2544, %v2534
    %v3225 = vpack.c.b16 %v2545, %v2535
    %v3226 = vpack.c.b16 %v2546, %v2536
    %v3227 = vpack.c.b16 %v2547, %v2537
    %v3228 = vpack.c.b16 %v2548, %v2538
    %v3229 = vpack.c.b16 %v2549, %v2539
    %v3230 = vpack.c.b16 %v2560, %v2550
    %v3231 = vpack.c.b16 %v2561, %v2551
    %v3232 = vpack.c.b16 %v2562, %v2552
    %v3233 = vpack.c.b16 %v2563, %v2553
    %v3234 = vpack.c.b16 %v2564, %v2554
    %v3235 = vpack.c.b16 %v2565, %v2555
    %v3236 = vpack.c.b16 %v2566, %v2556
    %v3237 = vpack.c.b16 %v2567, %v2557
    %v3238 = vpack.c.b16 %v2568, %v2558
    %v3239 = vpack.c.b16 %v2569, %v2559
    %v3240 = vpack.c.b16 %v2580, %v2570
    %v3241 = vpack.c.b16 %v2581, %v2571
    %v3242 = vpack.c.b16 %v2582, %v2572
    %v3243 = vpack.c.b16 %v2583, %v2573
    %v3244 = vpack.c.b16 %v2584, %v2574
    %v3245 = vpack.c.b16 %v2585, %v2575
    %v3246 = vpack.c.b16 %v2586, %v2576
    %v3247 = vpack.c.b16 %v2587, %v2577
    %v3248 = vpack.c.b16 %v2588, %v2578
    %v3249 = vpack.c.b16 %v2589, %v2579
    %v3250 = vpack.c.b16 %v2600, %v2590
    %v3251 = vpack.c.b16 %v2601, %v2591
    %v3252 = vpack.c.b16 %v2602, %v2592
    %v3253 = vpack.c.b16 %v2603, %v2593
    %v3254 = vpack.c.b16 %v2604, %v2594
    %v3255 = vpack.c.b16 %v2605, %v2595
    %v3256 = vpack.c.b16 %v2606, %v2596
    %v3257 = vpack.c.b16 %v2607, %v2597
    %v3258 = vpack.c.b16 %v2608, %v2598
    %v3259 = vpack.c.b16 %v2609, %v2599
    %v3260 = vpack.c.b16 %v2620, %v2610
    %v3261 = vpack.c.b16 %v2621, %v2611
    %v3262 = vpack.c.b16 %v2622, %v2612
    %v3263 = vpack.c.b16 %v2623, %v2613
    %v3264 = vpack.c.b16 %v2624, %v2614
    %v3265 = vpack.c.b16 %v2625, %v2615
    %v3266 = vpack.c.b16 %v2626, %v2616
    %v3267 = vpack.c.b16 %v2627, %v2617
    %v3268 = vpack.c.b16 %v2628, %v2618
    %v3269 = vpack.c.b16 %v2629, %v2619
    %3910 = vmatprep.subr.bf16.mxu0 %v2631
    %3911 = vmatpush1.bf16.msra.mxu0 %v2630
    %3912 = vmatprep.subr.bf16.mxu0 %v2641
    %3913 = vmatpush1.bf16.msra.mxu0 %v2640
    %3914 = vmatprep.subr.bf16.mxu0 %v2651
    %3915 = vmatpush1.bf16.msra.mxu0 %v2650
    %3916 = vmatprep.subr.bf16.mxu0 %v2661
    %3917 = vmatpush1.bf16.msra.mxu0 %v2660
    %3918 = vmatprep.subr.bf16.mxu0 %v2671
    %3919 = vmatpush1.bf16.msra.mxu0 %v2670
    %3920 = vmatprep.subr.bf16.mxu0 %v2681
    %3921 = vmatpush1.bf16.msra.mxu0 %v2680
    %3922 = vmatprep.subr.bf16.mxu0 %v2691
    %3923 = vmatpush1.bf16.msra.mxu0 %v2690
    %3924 = vmatprep.subr.bf16.mxu0 %v2701
    %3925 = vmatpush1.bf16.msra.mxu0 %v2700
    %3926 = vmatprep.subr.bf16.mxu0 %v2711
    %3927 = vmatpush1.bf16.msra.mxu0 %v2710
    %3928 = vmatprep.subr.bf16.mxu0 %v2721
    %3929 = vmatpush1.bf16.msra.mxu0 %v2720
    %3930 = vmatprep.subr.bf16.mxu0 %v2731
    %3931 = vmatpush1.bf16.msra.mxu0 %v2730
    %3932 = vmatprep.subr.bf16.mxu0 %v2741
    %3933 = vmatpush1.bf16.msra.mxu0 %v2740
    %3934 = vmatprep.subr.bf16.mxu0 %v2751
    %3935 = vmatpush1.bf16.msra.mxu0 %v2750
    %3936 = vmatprep.subr.bf16.mxu0 %v2761
    %3937 = vmatpush1.bf16.msra.mxu0 %v2760
    %3938 = vmatprep.subr.bf16.mxu0 %v2771
    %3939 = vmatpush1.bf16.msra.mxu0 %v2770
    %3940 = vmatprep.subr.bf16.mxu0 %v2781
    %3941 = vmatpush1.bf16.msra.mxu0 %v2780
    %3942 = vmatprep.mubr.bf16.mxu0 %v695
    %3943 = vmatmul.mubr.bf16.gmra.mrb[0].mxu0 %v694
    %v3944 = vpop.f32.mrb[0].mxu0
    %v3945 = vadd.f32 0.0, %v3944
    %v3946 = vpop.f32.mrb[0].mxu0
    %v3947 = vadd.f32 0.0, %v3946
    %v3948 = vpop.f32.mrb[0].mxu0
    %v3949 = vpop.f32.mrb[0].mxu0
    %3950 = vdwg.mxu0
    %3951 = vmatprep.subr.bf16.mxu0 %v2791
    %3952 = vmatpush1.bf16.msra.mxu0 %v2790
    %3953 = vmatprep.subr.bf16.mxu0 %v2801
    %3954 = vmatpush1.bf16.msra.mxu0 %v2800
    %3955 = vmatprep.subr.bf16.mxu0 %v2811
    %3956 = vmatpush1.bf16.msra.mxu0 %v2810
    %3957 = vmatprep.subr.bf16.mxu0 %v2821
    %3958 = vmatpush1.bf16.msra.mxu0 %v2820
    %3959 = vmatprep.subr.bf16.mxu0 %v2831
    %3960 = vmatpush1.bf16.msra.mxu0 %v2830
    %3961 = vmatprep.subr.bf16.mxu0 %v2841
    %3962 = vmatpush1.bf16.msra.mxu0 %v2840
    %3963 = vmatprep.subr.bf16.mxu0 %v2851
    %3964 = vmatpush1.bf16.msra.mxu0 %v2850
    %3965 = vmatprep.subr.bf16.mxu0 %v2861
    %3966 = vmatpush1.bf16.msra.mxu0 %v2860
    %3967 = vmatprep.subr.bf16.mxu0 %v2871
    %3968 = vmatpush1.bf16.msra.mxu0 %v2870
    %3969 = vmatprep.subr.bf16.mxu0 %v2881
    %3970 = vmatpush1.bf16.msra.mxu0 %v2880
    %3971 = vmatprep.subr.bf16.mxu0 %v2891
    %3972 = vmatpush1.bf16.msra.mxu0 %v2890
    %3973 = vmatprep.subr.bf16.mxu0 %v2901
    %3974 = vmatpush1.bf16.msra.mxu0 %v2900
    %3975 = vmatprep.subr.bf16.mxu0 %v2911
    %3976 = vmatpush1.bf16.msra.mxu0 %v2910
    %3977 = vmatprep.subr.bf16.mxu0 %v2921
    %3978 = vmatpush1.bf16.msra.mxu0 %v2920
    %3979 = vmatprep.subr.bf16.mxu0 %v2931
    %3980 = vmatpush1.bf16.msra.mxu0 %v2930
    %3981 = vmatprep.subr.bf16.mxu0 %v2941
    %3982 = vmatpush1.bf16.msra.mxu0 %v2940
    %3983 = vmatprep.mubr.bf16.mxu0 %v697
    %3984 = vmatmul.mubr.bf16.gmra.mrb[0].mxu0 %v696
    %v3985 = vpop.f32.mrb[0].mxu0
    %v3986 = vadd.f32 %v3945, %v3985
    %v3987 = vpop.f32.mrb[0].mxu0
    %v3988 = vadd.f32 %v3947, %v3987
    %v3989 = vpop.f32.mrb[0].mxu0
    %v3990 = vpop.f32.mrb[0].mxu0
    %3991 = vdwg.mxu0
    %3992 = vmatprep.subr.bf16.mxu0 %v2951
    %3993 = vmatpush1.bf16.msra.mxu0 %v2950
    %3994 = vmatprep.subr.bf16.mxu0 %v2961
    %3995 = vmatpush1.bf16.msra.mxu0 %v2960
    %3996 = vmatprep.subr.bf16.mxu0 %v2971
    %3997 = vmatpush1.bf16.msra.mxu0 %v2970
    %3998 = vmatprep.subr.bf16.mxu0 %v2981
    %3999 = vmatpush1.bf16.msra.mxu0 %v2980
    %4000 = vmatprep.subr.bf16.mxu0 %v2991
    %4001 = vmatpush1.bf16.msra.mxu0 %v2990
    %4002 = vmatprep.subr.bf16.mxu0 %v3001
    %4003 = vmatpush1.bf16.msra.mxu0 %v3000
    %4004 = vmatprep.subr.bf16.mxu0 %v3011
    %4005 = vmatpush1.bf16.msra.mxu0 %v3010
    %4006 = vmatprep.subr.bf16.mxu0 %v3021
    %4007 = vmatpush1.bf16.msra.mxu0 %v3020
    %4008 = vmatprep.subr.bf16.mxu0 %v3031
    %4009 = vmatpush1.bf16.msra.mxu0 %v3030
    %4010 = vmatprep.subr.bf16.mxu0 %v3041
    %4011 = vmatpush1.bf16.msra.mxu0 %v3040
    %4012 = vmatprep.subr.bf16.mxu0 %v3051
    %4013 = vmatpush1.bf16.msra.mxu0 %v3050
    %4014 = vmatprep.subr.bf16.mxu0 %v3061
    %4015 = vmatpush1.bf16.msra.mxu0 %v3060
    %4016 = vmatprep.subr.bf16.mxu0 %v3071
    %4017 = vmatpush1.bf16.msra.mxu0 %v3070
    %4018 = vmatprep.subr.bf16.mxu0 %v3081
    %4019 = vmatpush1.bf16.msra.mxu0 %v3080
    %4020 = vmatprep.subr.bf16.mxu0 %v3091
    %4021 = vmatpush1.bf16.msra.mxu0 %v3090
    %4022 = vmatprep.subr.bf16.mxu0 %v3101
    %4023 = vmatpush1.bf16.msra.mxu0 %v3100
    %4024 = vmatprep.mubr.bf16.mxu0 %v699
    %4025 = vmatmul.mubr.bf16.gmra.mrb[0].mxu0 %v698
    %v4026 = vpop.f32.mrb[0].mxu0
    %v4027 = vadd.f32 %v3986, %v4026
    %v4028 = vpop.f32.mrb[0].mxu0
    %v4029 = vadd.f32 %v3988, %v4028
    %v4030 = vpop.f32.mrb[0].mxu0
    %v4031 = vpop.f32.mrb[0].mxu0
    %4032 = vdwg.mxu0
    %4033 = vmatprep.subr.bf16.mxu0 %v3111
    %4034 = vmatpush1.bf16.msra.mxu0 %v3110
    %4035 = vmatprep.subr.bf16.mxu0 %v3121
    %4036 = vmatpush1.bf16.msra.mxu0 %v3120
    %4037 = vmatprep.subr.bf16.mxu0 %v3131
    %4038 = vmatpush1.bf16.msra.mxu0 %v3130
    %4039 = vmatprep.subr.bf16.mxu0 %v3141
    %4040 = vmatpush1.bf16.msra.mxu0 %v3140
    %4041 = vmatprep.subr.bf16.mxu0 %v3151
    %4042 = vmatpush1.bf16.msra.mxu0 %v3150
    %4043 = vmatprep.subr.bf16.mxu0 %v3161
    %4044 = vmatpush1.bf16.msra.mxu0 %v3160
    %4045 = vmatprep.subr.bf16.mxu0 %v3171
    %4046 = vmatpush1.bf16.msra.mxu0 %v3170
    %4047 = vmatprep.subr.bf16.mxu0 %v3181
    %4048 = vmatpush1.bf16.msra.mxu0 %v3180
    %4049 = vmatprep.subr.bf16.mxu0 %v3191
    %4050 = vmatpush1.bf16.msra.mxu0 %v3190
    %4051 = vmatprep.subr.bf16.mxu0 %v3201
    %4052 = vmatpush1.bf16.msra.mxu0 %v3200
    %4053 = vmatprep.subr.bf16.mxu0 %v3211
    %4054 = vmatpush1.bf16.msra.mxu0 %v3210
    %4055 = vmatprep.subr.bf16.mxu0 %v3221
    %4056 = vmatpush1.bf16.msra.mxu0 %v3220
    %4057 = vmatprep.subr.bf16.mxu0 %v3231
    %4058 = vmatpush1.bf16.msra.mxu0 %v3230
    %4059 = vmatprep.subr.bf16.mxu0 %v3241
    %4060 = vmatpush1.bf16.msra.mxu0 %v3240
    %4061 = vmatprep.subr.bf16.mxu0 %v3251
    %4062 = vmatpush1.bf16.msra.mxu0 %v3250
    %4063 = vmatprep.subr.bf16.mxu0 %v3261
    %4064 = vmatpush1.bf16.msra.mxu0 %v3260
    %4065 = vmatprep.mubr.bf16.mxu0 %v701
    %4066 = vmatmul.mubr.bf16.gmra.mrb[0].mxu0 %v700
    %v4067 = vpop.f32.mrb[0].mxu0
    %v4068 = vadd.f32 %v4027, %v4067
    %v4069 = vpop.f32.mrb[0].mxu0
    %v4070 = vadd.f32 %v4029, %v4069
    %v4071 = vpop.f32.mrb[0].mxu0
    %v4072 = vpop.f32.mrb[0].mxu0
    %4073 = vdwg.mxu0
    %4074 = vmatprep.subr.bf16.mxu0 %v2633
    %4075 = vmatpush1.bf16.msra.mxu0 %v2632
    %4076 = vmatprep.subr.bf16.mxu0 %v2643
    %4077 = vmatpush1.bf16.msra.mxu0 %v2642
    %4078 = vmatprep.subr.bf16.mxu0 %v2653
    %4079 = vmatpush1.bf16.msra.mxu0 %v2652
    %4080 = vmatprep.subr.bf16.mxu0 %v2663
    %4081 = vmatpush1.bf16.msra.mxu0 %v2662
    %4082 = vmatprep.subr.bf16.mxu0 %v2673
    %4083 = vmatpush1.bf16.msra.mxu0 %v2672
    %4084 = vmatprep.subr.bf16.mxu0 %v2683
    %4085 = vmatpush1.bf16.msra.mxu0 %v2682
    %4086 = vmatprep.subr.bf16.mxu0 %v2693
    %4087 = vmatpush1.bf16.msra.mxu0 %v2692
    %4088 = vmatprep.subr.bf16.mxu0 %v2703
    %4089 = vmatpush1.bf16.msra.mxu0 %v2702
    %4090 = vmatprep.subr.bf16.mxu0 %v2713
    %4091 = vmatpush1.bf16.msra.mxu0 %v2712
    %4092 = vmatprep.subr.bf16.mxu0 %v2723
    %4093 = vmatpush1.bf16.msra.mxu0 %v2722
    %4094 = vmatprep.subr.bf16.mxu0 %v2733
    %4095 = vmatpush1.bf16.msra.mxu0 %v2732
    %4096 = vmatprep.subr.bf16.mxu0 %v2743
    %4097 = vmatpush1.bf16.msra.mxu0 %v2742
    %4098 = vmatprep.subr.bf16.mxu0 %v2753
    %4099 = vmatpush1.bf16.msra.mxu0 %v2752
    %4100 = vmatprep.subr.bf16.mxu0 %v2763
    %4101 = vmatpush1.bf16.msra.mxu0 %v2762
    %4102 = vmatprep.subr.bf16.mxu0 %v2773
    %4103 = vmatpush1.bf16.msra.mxu0 %v2772
    %4104 = vmatprep.subr.bf16.mxu0 %v2783
    %4105 = vmatpush1.bf16.msra.mxu0 %v2782
    %4106 = vmatprep.mubr.bf16.mxu0 %v695
    %4107 = vmatmul.mubr.bf16.gmra.mrb[0].mxu0 %v694
    %v4108 = vpop.f32.mrb[0].mxu0
    %v4109 = vadd.f32 0.0, %v4108
    %v4110 = vpop.f32.mrb[0].mxu0
    %v4111 = vadd.f32 0.0, %v4110
    %v4112 = vpop.f32.mrb[0].mxu0
    %v4113 = vpop.f32.mrb[0].mxu0
    %4114 = vdwg.mxu0
    %4115 = vmatprep.subr.bf16.mxu0 %v2793
    %4116 = vmatpush1.bf16.msra.mxu0 %v2792
    %4117 = vmatprep.subr.bf16.mxu0 %v2803
    %4118 = vmatpush1.bf16.msra.mxu0 %v2802
    %4119 = vmatprep.subr.bf16.mxu0 %v2813
    %4120 = vmatpush1.bf16.msra.mxu0 %v2812
    %4121 = vmatprep.subr.bf16.mxu0 %v2823
    %4122 = vmatpush1.bf16.msra.mxu0 %v2822
    %4123 = vmatprep.subr.bf16.mxu0 %v2833
    %4124 = vmatpush1.bf16.msra.mxu0 %v2832
    %4125 = vmatprep.subr.bf16.mxu0 %v2843
    %4126 = vmatpush1.bf16.msra.mxu0 %v2842
    %4127 = vmatprep.subr.bf16.mxu0 %v2853
    %4128 = vmatpush1.bf16.msra.mxu0 %v2852
    %4129 = vmatprep.subr.bf16.mxu0 %v2863
    %4130 = vmatpush1.bf16.msra.mxu0 %v2862
    %4131 = vmatprep.subr.bf16.mxu0 %v2873
    %4132 = vmatpush1.bf16.msra.mxu0 %v2872
    %4133 = vmatprep.subr.bf16.mxu0 %v2883
    %4134 = vmatpush1.bf16.msra.mxu0 %v2882
    %4135 = vmatprep.subr.bf16.mxu0 %v2893
    %4136 = vmatpush1.bf16.msra.mxu0 %v2892
    %4137 = vmatprep.subr.bf16.mxu0 %v2903
    %4138 = vmatpush1.bf16.msra.mxu0 %v2902
    %4139 = vmatprep.subr.bf16.mxu0 %v2913
    %4140 = vmatpush1.bf16.msra.mxu0 %v2912
    %4141 = vmatprep.subr.bf16.mxu0 %v2923
    %4142 = vmatpush1.bf16.msra.mxu0 %v2922
    %4143 = vmatprep.subr.bf16.mxu0 %v2933
    %4144 = vmatpush1.bf16.msra.mxu0 %v2932
    %4145 = vmatprep.subr.bf16.mxu0 %v2943
    %4146 = vmatpush1.bf16.msra.mxu0 %v2942
    %4147 = vmatprep.mubr.bf16.mxu0 %v697
    %4148 = vmatmul.mubr.bf16.gmra.mrb[0].mxu0 %v696
    %v4149 = vpop.f32.mrb[0].mxu0
    %v4150 = vadd.f32 %v4109, %v4149
    %v4151 = vpop.f32.mrb[0].mxu0
    %v4152 = vadd.f32 %v4111, %v4151
    %v4153 = vpop.f32.mrb[0].mxu0
    %v4154 = vpop.f32.mrb[0].mxu0
    %4155 = vdwg.mxu0
    %4156 = vmatprep.subr.bf16.mxu0 %v2953
    %4157 = vmatpush1.bf16.msra.mxu0 %v2952
    %4158 = vmatprep.subr.bf16.mxu0 %v2963
    %4159 = vmatpush1.bf16.msra.mxu0 %v2962
    %4160 = vmatprep.subr.bf16.mxu0 %v2973
    %4161 = vmatpush1.bf16.msra.mxu0 %v2972
    %4162 = vmatprep.subr.bf16.mxu0 %v2983
    %4163 = vmatpush1.bf16.msra.mxu0 %v2982
    %4164 = vmatprep.subr.bf16.mxu0 %v2993
    %4165 = vmatpush1.bf16.msra.mxu0 %v2992
    %4166 = vmatprep.subr.bf16.mxu0 %v3003
    %4167 = vmatpush1.bf16.msra.mxu0 %v3002
    %4168 = vmatprep.subr.bf16.mxu0 %v3013
    %4169 = vmatpush1.bf16.msra.mxu0 %v3012
    %4170 = vmatprep.subr.bf16.mxu0 %v3023
    %4171 = vmatpush1.bf16.msra.mxu0 %v3022
    %4172 = vmatprep.subr.bf16.mxu0 %v3033
    %4173 = vmatpush1.bf16.msra.mxu0 %v3032
    %4174 = vmatprep.subr.bf16.mxu0 %v3043
    %4175 = vmatpush1.bf16.msra.mxu0 %v3042
    %4176 = vmatprep.subr.bf16.mxu0 %v3053
    %4177 = vmatpush1.bf16.msra.mxu0 %v3052
    %4178 = vmatprep.subr.bf16.mxu0 %v3063
    %4179 = vmatpush1.bf16.msra.mxu0 %v3062
    %4180 = vmatprep.subr.bf16.mxu0 %v3073
    %4181 = vmatpush1.bf16.msra.mxu0 %v3072
    %4182 = vmatprep.subr.bf16.mxu0 %v3083
    %4183 = vmatpush1.bf16.msra.mxu0 %v3082
    %4184 = vmatprep.subr.bf16.mxu0 %v3093
    %4185 = vmatpush1.bf16.msra.mxu0 %v3092
    %4186 = vmatprep.subr.bf16.mxu0 %v3103
    %4187 = vmatpush1.bf16.msra.mxu0 %v3102
    %4188 = vmatprep.mubr.bf16.mxu0 %v699
    %4189 = vmatmul.mubr.bf16.gmra.mrb[0].mxu0 %v698
    %v4190 = vpop.f32.mrb[0].mxu0
    %v4191 = vadd.f32 %v4150, %v4190
    %v4192 = vpop.f32.mrb[0].mxu0
    %v4193 = vadd.f32 %v4152, %v4192
    %v4194 = vpop.f32.mrb[0].mxu0
    %v4195 = vpop.f32.mrb[0].mxu0
    %4196 = vdwg.mxu0
    %4197 = vmatprep.subr.bf16.mxu0 %v3113
    %4198 = vmatpush1.bf16.msra.mxu0 %v3112
    %4199 = vmatprep.subr.bf16.mxu0 %v3123
    %4200 = vmatpush1.bf16.msra.mxu0 %v3122
    %4201 = vmatprep.subr.bf16.mxu0 %v3133
    %4202 = vmatpush1.bf16.msra.mxu0 %v3132
    %4203 = vmatprep.subr.bf16.mxu0 %v3143
    %4204 = vmatpush1.bf16.msra.mxu0 %v3142
    %4205 = vmatprep.subr.bf16.mxu0 %v3153
    %4206 = vmatpush1.bf16.msra.mxu0 %v3152
    %4207 = vmatprep.subr.bf16.mxu0 %v3163
    %4208 = vmatpush1.bf16.msra.mxu0 %v3162
    %4209 = vmatprep.subr.bf16.mxu0 %v3173
    %4210 = vmatpush1.bf16.msra.mxu0 %v3172
    %4211 = vmatprep.subr.bf16.mxu0 %v3183
    %4212 = vmatpush1.bf16.msra.mxu0 %v3182
    %4213 = vmatprep.subr.bf16.mxu0 %v3193
    %4214 = vmatpush1.bf16.msra.mxu0 %v3192
    %4215 = vmatprep.subr.bf16.mxu0 %v3203
    %4216 = vmatpush1.bf16.msra.mxu0 %v3202
    %4217 = vmatprep.subr.bf16.mxu0 %v3213
    %4218 = vmatpush1.bf16.msra.mxu0 %v3212
    %4219 = vmatprep.subr.bf16.mxu0 %v3223
    %4220 = vmatpush1.bf16.msra.mxu0 %v3222
    %4221 = vmatprep.subr.bf16.mxu0 %v3233
    %4222 = vmatpush1.bf16.msra.mxu0 %v3232
    %4223 = vmatprep.subr.bf16.mxu0 %v3243
    %4224 = vmatpush1.bf16.msra.mxu0 %v3242
    %4225 = vmatprep.subr.bf16.mxu0 %v3253
    %4226 = vmatpush1.bf16.msra.mxu0 %v3252
    %4227 = vmatprep.subr.bf16.mxu0 %v3263
    %4228 = vmatpush1.bf16.msra.mxu0 %v3262
    %4229 = vmatprep.mubr.bf16.mxu0 %v701
    %4230 = vmatmul.mubr.bf16.gmra.mrb[0].mxu0 %v700
    %v4231 = vpop.f32.mrb[0].mxu0
    %v4232 = vadd.f32 %v4191, %v4231
    %v4233 = vpop.f32.mrb[0].mxu0
    %v4234 = vadd.f32 %v4193, %v4233
    %v4235 = vpop.f32.mrb[0].mxu0
    %v4236 = vpop.f32.mrb[0].mxu0
    %4237 = vdwg.mxu0
    %4238 = vmatprep.subr.bf16.mxu0 %v2635
    %4239 = vmatpush1.bf16.msra.mxu0 %v2634
    %4240 = vmatprep.subr.bf16.mxu0 %v2645
    %4241 = vmatpush1.bf16.msra.mxu0 %v2644
    %4242 = vmatprep.subr.bf16.mxu0 %v2655
    %4243 = vmatpush1.bf16.msra.mxu0 %v2654
    %4244 = vmatprep.subr.bf16.mxu0 %v2665
    %4245 = vmatpush1.bf16.msra.mxu0 %v2664
    %4246 = vmatprep.subr.bf16.mxu0 %v2675
    %4247 = vmatpush1.bf16.msra.mxu0 %v2674
    %4248 = vmatprep.subr.bf16.mxu0 %v2685
    %4249 = vmatpush1.bf16.msra.mxu0 %v2684
    %4250 = vmatprep.subr.bf16.mxu0 %v2695
    %4251 = vmatpush1.bf16.msra.mxu0 %v2694
    %4252 = vmatprep.subr.bf16.mxu0 %v2705
    %4253 = vmatpush1.bf16.msra.mxu0 %v2704
    %4254 = vmatprep.subr.bf16.mxu0 %v2715
    %4255 = vmatpush1.bf16.msra.mxu0 %v2714
    %4256 = vmatprep.subr.bf16.mxu0 %v2725
    %4257 = vmatpush1.bf16.msra.mxu0 %v2724
    %4258 = vmatprep.subr.bf16.mxu0 %v2735
    %4259 = vmatpush1.bf16.msra.mxu0 %v2734
    %4260 = vmatprep.subr.bf16.mxu0 %v2745
    %4261 = vmatpush1.bf16.msra.mxu0 %v2744
    %4262 = vmatprep.subr.bf16.mxu0 %v2755
    %4263 = vmatpush1.bf16.msra.mxu0 %v2754
    %4264 = vmatprep.subr.bf16.mxu0 %v2765
    %4265 = vmatpush1.bf16.msra.mxu0 %v2764
    %4266 = vmatprep.subr.bf16.mxu0 %v2775
    %4267 = vmatpush1.bf16.msra.mxu0 %v2774
    %4268 = vmatprep.subr.bf16.mxu0 %v2785
    %4269 = vmatpush1.bf16.msra.mxu0 %v2784
    %4270 = vmatprep.mubr.bf16.mxu0 %v695
    %4271 = vmatmul.mubr.bf16.gmra.mrb[0].mxu0 %v694
    %v4272 = vpop.f32.mrb[0].mxu0
    %v4273 = vadd.f32 0.0, %v4272
    %v4274 = vpop.f32.mrb[0].mxu0
    %v4275 = vadd.f32 0.0, %v4274
    %v4276 = vpop.f32.mrb[0].mxu0
    %v4277 = vpop.f32.mrb[0].mxu0
    %4278 = vdwg.mxu0
    %4279 = vmatprep.subr.bf16.mxu0 %v2795
    %4280 = vmatpush1.bf16.msra.mxu0 %v2794
    %4281 = vmatprep.subr.bf16.mxu0 %v2805
    %4282 = vmatpush1.bf16.msra.mxu0 %v2804
    %4283 = vmatprep.subr.bf16.mxu0 %v2815
    %4284 = vmatpush1.bf16.msra.mxu0 %v2814
    %4285 = vmatprep.subr.bf16.mxu0 %v2825
    %4286 = vmatpush1.bf16.msra.mxu0 %v2824
    %4287 = vmatprep.subr.bf16.mxu0 %v2835
    %4288 = vmatpush1.bf16.msra.mxu0 %v2834
    %4289 = vmatprep.subr.bf16.mxu0 %v2845
    %4290 = vmatpush1.bf16.msra.mxu0 %v2844
    %4291 = vmatprep.subr.bf16.mxu0 %v2855
    %4292 = vmatpush1.bf16.msra.mxu0 %v2854
    %4293 = vmatprep.subr.bf16.mxu0 %v2865
    %4294 = vmatpush1.bf16.msra.mxu0 %v2864
    %4295 = vmatprep.subr.bf16.mxu0 %v2875
    %4296 = vmatpush1.bf16.msra.mxu0 %v2874
    %4297 = vmatprep.subr.bf16.mxu0 %v2885
    %4298 = vmatpush1.bf16.msra.mxu0 %v2884
    %4299 = vmatprep.subr.bf16.mxu0 %v2895
    %4300 = vmatpush1.bf16.msra.mxu0 %v2894
    %4301 = vmatprep.subr.bf16.mxu0 %v2905
    %4302 = vmatpush1.bf16.msra.mxu0 %v2904
    %4303 = vmatprep.subr.bf16.mxu0 %v2915
    %4304 = vmatpush1.bf16.msra.mxu0 %v2914
    %4305 = vmatprep.subr.bf16.mxu0 %v2925
    %4306 = vmatpush1.bf16.msra.mxu0 %v2924
    %4307 = vmatprep.subr.bf16.mxu0 %v2935
    %4308 = vmatpush1.bf16.msra.mxu0 %v2934
    %4309 = vmatprep.subr.bf16.mxu0 %v2945
    %4310 = vmatpush1.bf16.msra.mxu0 %v2944
    %4311 = vmatprep.mubr.bf16.mxu0 %v697
    %4312 = vmatmul.mubr.bf16.gmra.mrb[0].mxu0 %v696
    %v4313 = vpop.f32.mrb[0].mxu0
    %v4314 = vadd.f32 %v4273, %v4313
    %v4315 = vpop.f32.mrb[0].mxu0
    %v4316 = vadd.f32 %v4275, %v4315
    %v4317 = vpop.f32.mrb[0].mxu0
    %v4318 = vpop.f32.mrb[0].mxu0
    %4319 = vdwg.mxu0
    %4320 = vmatprep.subr.bf16.mxu0 %v2955
    %4321 = vmatpush1.bf16.msra.mxu0 %v2954
    %4322 = vmatprep.subr.bf16.mxu0 %v2965
    %4323 = vmatpush1.bf16.msra.mxu0 %v2964
    %4324 = vmatprep.subr.bf16.mxu0 %v2975
    %4325 = vmatpush1.bf16.msra.mxu0 %v2974
    %4326 = vmatprep.subr.bf16.mxu0 %v2985
    %4327 = vmatpush1.bf16.msra.mxu0 %v2984
    %4328 = vmatprep.subr.bf16.mxu0 %v2995
    %4329 = vmatpush1.bf16.msra.mxu0 %v2994
    %4330 = vmatprep.subr.bf16.mxu0 %v3005
    %4331 = vmatpush1.bf16.msra.mxu0 %v3004
    %4332 = vmatprep.subr.bf16.mxu0 %v3015
    %4333 = vmatpush1.bf16.msra.mxu0 %v3014
    %4334 = vmatprep.subr.bf16.mxu0 %v3025
    %4335 = vmatpush1.bf16.msra.mxu0 %v3024
    %4336 = vmatprep.subr.bf16.mxu0 %v3035
    %4337 = vmatpush1.bf16.msra.mxu0 %v3034
    %4338 = vmatprep.subr.bf16.mxu0 %v3045
    %4339 = vmatpush1.bf16.msra.mxu0 %v3044
    %4340 = vmatprep.subr.bf16.mxu0 %v3055
    %4341 = vmatpush1.bf16.msra.mxu0 %v3054
    %4342 = vmatprep.subr.bf16.mxu0 %v3065
    %4343 = vmatpush1.bf16.msra.mxu0 %v3064
    %4344 = vmatprep.subr.bf16.mxu0 %v3075
    %4345 = vmatpush1.bf16.msra.mxu0 %v3074
    %4346 = vmatprep.subr.bf16.mxu0 %v3085
    %4347 = vmatpush1.bf16.msra.mxu0 %v3084
    %4348 = vmatprep.subr.bf16.mxu0 %v3095
    %4349 = vmatpush1.bf16.msra.mxu0 %v3094
    %4350 = vmatprep.subr.bf16.mxu0 %v3105
    %4351 = vmatpush1.bf16.msra.mxu0 %v3104
    %4352 = vmatprep.mubr.bf16.mxu0 %v699
    %4353 = vmatmul.mubr.bf16.gmra.mrb[0].mxu0 %v698
    %v4354 = vpop.f32.mrb[0].mxu0
    %v4355 = vadd.f32 %v4314, %v4354
    %v4356 = vpop.f32.mrb[0].mxu0
    %v4357 = vadd.f32 %v4316, %v4356
    %v4358 = vpop.f32.mrb[0].mxu0
    %v4359 = vpop.f32.mrb[0].mxu0
    %4360 = vdwg.mxu0
    %4361 = vmatprep.subr.bf16.mxu0 %v3115
    %4362 = vmatpush1.bf16.msra.mxu0 %v3114
    %4363 = vmatprep.subr.bf16.mxu0 %v3125
    %4364 = vmatpush1.bf16.msra.mxu0 %v3124
    %4365 = vmatprep.subr.bf16.mxu0 %v3135
    %4366 = vmatpush1.bf16.msra.mxu0 %v3134
    %4367 = vmatprep.subr.bf16.mxu0 %v3145
    %4368 = vmatpush1.bf16.msra.mxu0 %v3144
    %4369 = vmatprep.subr.bf16.mxu0 %v3155
    %4370 = vmatpush1.bf16.msra.mxu0 %v3154
    %4371 = vmatprep.subr.bf16.mxu0 %v3165
    %4372 = vmatpush1.bf16.msra.mxu0 %v3164
    %4373 = vmatprep.subr.bf16.mxu0 %v3175
    %4374 = vmatpush1.bf16.msra.mxu0 %v3174
    %4375 = vmatprep.subr.bf16.mxu0 %v3185
    %4376 = vmatpush1.bf16.msra.mxu0 %v3184
    %4377 = vmatprep.subr.bf16.mxu0 %v3195
    %4378 = vmatpush1.bf16.msra.mxu0 %v3194
    %4379 = vmatprep.subr.bf16.mxu0 %v3205
    %4380 = vmatpush1.bf16.msra.mxu0 %v3204
    %4381 = vmatprep.subr.bf16.mxu0 %v3215
    %4382 = vmatpush1.bf16.msra.mxu0 %v3214
    %4383 = vmatprep.subr.bf16.mxu0 %v3225
    %4384 = vmatpush1.bf16.msra.mxu0 %v3224
    %4385 = vmatprep.subr.bf16.mxu0 %v3235
    %4386 = vmatpush1.bf16.msra.mxu0 %v3234
    %4387 = vmatprep.subr.bf16.mxu0 %v3245
    %4388 = vmatpush1.bf16.msra.mxu0 %v3244
    %4389 = vmatprep.subr.bf16.mxu0 %v3255
    %4390 = vmatpush1.bf16.msra.mxu0 %v3254
    %4391 = vmatprep.subr.bf16.mxu0 %v3265
    %4392 = vmatpush1.bf16.msra.mxu0 %v3264
    %4393 = vmatprep.mubr.bf16.mxu0 %v701
    %4394 = vmatmul.mubr.bf16.gmra.mrb[0].mxu0 %v700
    %v4395 = vpop.f32.mrb[0].mxu0
    %v4396 = vadd.f32 %v4355, %v4395
    %v4397 = vpop.f32.mrb[0].mxu0
    %v4398 = vadd.f32 %v4357, %v4397
    %v4399 = vpop.f32.mrb[0].mxu0
    %v4400 = vpop.f32.mrb[0].mxu0
    %4401 = vdwg.mxu0
    %4402 = vmatprep.subr.bf16.mxu0 %v2637
    %4403 = vmatpush1.bf16.msra.mxu0 %v2636
    %4404 = vmatprep.subr.bf16.mxu0 %v2647
    %4405 = vmatpush1.bf16.msra.mxu0 %v2646
    %4406 = vmatprep.subr.bf16.mxu0 %v2657
    %4407 = vmatpush1.bf16.msra.mxu0 %v2656
    %4408 = vmatprep.subr.bf16.mxu0 %v2667
    %4409 = vmatpush1.bf16.msra.mxu0 %v2666
    %4410 = vmatprep.subr.bf16.mxu0 %v2677
    %4411 = vmatpush1.bf16.msra.mxu0 %v2676
    %4412 = vmatprep.subr.bf16.mxu0 %v2687
    %4413 = vmatpush1.bf16.msra.mxu0 %v2686
    %4414 = vmatprep.subr.bf16.mxu0 %v2697
    %4415 = vmatpush1.bf16.msra.mxu0 %v2696
    %4416 = vmatprep.subr.bf16.mxu0 %v2707
    %4417 = vmatpush1.bf16.msra.mxu0 %v2706
    %4418 = vmatprep.subr.bf16.mxu0 %v2717
    %4419 = vmatpush1.bf16.msra.mxu0 %v2716
    %4420 = vmatprep.subr.bf16.mxu0 %v2727
    %4421 = vmatpush1.bf16.msra.mxu0 %v2726
    %4422 = vmatprep.subr.bf16.mxu0 %v2737
    %4423 = vmatpush1.bf16.msra.mxu0 %v2736
    %4424 = vmatprep.subr.bf16.mxu0 %v2747
    %4425 = vmatpush1.bf16.msra.mxu0 %v2746
    %4426 = vmatprep.subr.bf16.mxu0 %v2757
    %4427 = vmatpush1.bf16.msra.mxu0 %v2756
    %4428 = vmatprep.subr.bf16.mxu0 %v2767
    %4429 = vmatpush1.bf16.msra.mxu0 %v2766
    %4430 = vmatprep.subr.bf16.mxu0 %v2777
    %4431 = vmatpush1.bf16.msra.mxu0 %v2776
    %4432 = vmatprep.subr.bf16.mxu0 %v2787
    %4433 = vmatpush1.bf16.msra.mxu0 %v2786
    %4434 = vmatprep.mubr.bf16.mxu0 %v695
    %4435 = vmatmul.mubr.bf16.gmra.mrb[0].mxu0 %v694
    %v4436 = vpop.f32.mrb[0].mxu0
    %v4437 = vadd.f32 0.0, %v4436
    %v4438 = vpop.f32.mrb[0].mxu0
    %v4439 = vadd.f32 0.0, %v4438
    %v4440 = vpop.f32.mrb[0].mxu0
    %v4441 = vpop.f32.mrb[0].mxu0
    %4442 = vdwg.mxu0
    %4443 = vmatprep.subr.bf16.mxu0 %v2797
    %4444 = vmatpush1.bf16.msra.mxu0 %v2796
    %4445 = vmatprep.subr.bf16.mxu0 %v2807
    %4446 = vmatpush1.bf16.msra.mxu0 %v2806
    %4447 = vmatprep.subr.bf16.mxu0 %v2817
    %4448 = vmatpush1.bf16.msra.mxu0 %v2816
    %4449 = vmatprep.subr.bf16.mxu0 %v2827
    %4450 = vmatpush1.bf16.msra.mxu0 %v2826
    %4451 = vmatprep.subr.bf16.mxu0 %v2837
    %4452 = vmatpush1.bf16.msra.mxu0 %v2836
    %4453 = vmatprep.subr.bf16.mxu0 %v2847
    %4454 = vmatpush1.bf16.msra.mxu0 %v2846
    %4455 = vmatprep.subr.bf16.mxu0 %v2857
    %4456 = vmatpush1.bf16.msra.mxu0 %v2856
    %4457 = vmatprep.subr.bf16.mxu0 %v2867
    %4458 = vmatpush1.bf16.msra.mxu0 %v2866
    %4459 = vmatprep.subr.bf16.mxu0 %v2877
    %4460 = vmatpush1.bf16.msra.mxu0 %v2876
    %4461 = vmatprep.subr.bf16.mxu0 %v2887
    %4462 = vmatpush1.bf16.msra.mxu0 %v2886
    %4463 = vmatprep.subr.bf16.mxu0 %v2897
    %4464 = vmatpush1.bf16.msra.mxu0 %v2896
    %4465 = vmatprep.subr.bf16.mxu0 %v2907
    %4466 = vmatpush1.bf16.msra.mxu0 %v2906
    %4467 = vmatprep.subr.bf16.mxu0 %v2917
    %4468 = vmatpush1.bf16.msra.mxu0 %v2916
    %4469 = vmatprep.subr.bf16.mxu0 %v2927
    %4470 = vmatpush1.bf16.msra.mxu0 %v2926
    %4471 = vmatprep.subr.bf16.mxu0 %v2937
    %4472 = vmatpush1.bf16.msra.mxu0 %v2936
    %4473 = vmatprep.subr.bf16.mxu0 %v2947
    %4474 = vmatpush1.bf16.msra.mxu0 %v2946
    %4475 = vmatprep.mubr.bf16.mxu0 %v697
    %4476 = vmatmul.mubr.bf16.gmra.mrb[0].mxu0 %v696
    %v4477 = vpop.f32.mrb[0].mxu0
    %v4478 = vadd.f32 %v4437, %v4477
    %v4479 = vpop.f32.mrb[0].mxu0
    %v4480 = vadd.f32 %v4439, %v4479
    %v4481 = vpop.f32.mrb[0].mxu0
    %v4482 = vpop.f32.mrb[0].mxu0
    %4483 = vdwg.mxu0
    %4484 = vmatprep.subr.bf16.mxu0 %v2957
    %4485 = vmatpush1.bf16.msra.mxu0 %v2956
    %4486 = vmatprep.subr.bf16.mxu0 %v2967
    %4487 = vmatpush1.bf16.msra.mxu0 %v2966
    %4488 = vmatprep.subr.bf16.mxu0 %v2977
    %4489 = vmatpush1.bf16.msra.mxu0 %v2976
    %4490 = vmatprep.subr.bf16.mxu0 %v2987
    %4491 = vmatpush1.bf16.msra.mxu0 %v2986
    %4492 = vmatprep.subr.bf16.mxu0 %v2997
    %4493 = vmatpush1.bf16.msra.mxu0 %v2996
    %4494 = vmatprep.subr.bf16.mxu0 %v3007
    %4495 = vmatpush1.bf16.msra.mxu0 %v3006
    %4496 = vmatprep.subr.bf16.mxu0 %v3017
    %4497 = vmatpush1.bf16.msra.mxu0 %v3016
    %4498 = vmatprep.subr.bf16.mxu0 %v3027
    %4499 = vmatpush1.bf16.msra.mxu0 %v3026
    %4500 = vmatprep.subr.bf16.mxu0 %v3037
    %4501 = vmatpush1.bf16.msra.mxu0 %v3036
    %4502 = vmatprep.subr.bf16.mxu0 %v3047
    %4503 = vmatpush1.bf16.msra.mxu0 %v3046
    %4504 = vmatprep.subr.bf16.mxu0 %v3057
    %4505 = vmatpush1.bf16.msra.mxu0 %v3056
    %4506 = vmatprep.subr.bf16.mxu0 %v3067
    %4507 = vmatpush1.bf16.msra.mxu0 %v3066
    %4508 = vmatprep.subr.bf16.mxu0 %v3077
    %4509 = vmatpush1.bf16.msra.mxu0 %v3076
    %4510 = vmatprep.subr.bf16.mxu0 %v3087
    %4511 = vmatpush1.bf16.msra.mxu0 %v3086
    %4512 = vmatprep.subr.bf16.mxu0 %v3097
    %4513 = vmatpush1.bf16.msra.mxu0 %v3096
    %4514 = vmatprep.subr.bf16.mxu0 %v3107
    %4515 = vmatpush1.bf16.msra.mxu0 %v3106
    %4516 = vmatprep.mubr.bf16.mxu0 %v699
    %4517 = vmatmul.mubr.bf16.gmra.mrb[0].mxu0 %v698
    %v4518 = vpop.f32.mrb[0].mxu0
    %v4519 = vadd.f32 %v4478, %v4518
    %v4520 = vpop.f32.mrb[0].mxu0
    %v4521 = vadd.f32 %v4480, %v4520
    %v4522 = vpop.f32.mrb[0].mxu0
    %v4523 = vpop.f32.mrb[0].mxu0
    %4524 = vdwg.mxu0
    %4525 = vmatprep.subr.bf16.mxu0 %v3117
    %4526 = vmatpush1.bf16.msra.mxu0 %v3116
    %4527 = vmatprep.subr.bf16.mxu0 %v3127
    %4528 = vmatpush1.bf16.msra.mxu0 %v3126
    %4529 = vmatprep.subr.bf16.mxu0 %v3137
    %4530 = vmatpush1.bf16.msra.mxu0 %v3136
    %4531 = vmatprep.subr.bf16.mxu0 %v3147
    %4532 = vmatpush1.bf16.msra.mxu0 %v3146
    %4533 = vmatprep.subr.bf16.mxu0 %v3157
    %4534 = vmatpush1.bf16.msra.mxu0 %v3156
    %4535 = vmatprep.subr.bf16.mxu0 %v3167
    %4536 = vmatpush1.bf16.msra.mxu0 %v3166
    %4537 = vmatprep.subr.bf16.mxu0 %v3177
    %4538 = vmatpush1.bf16.msra.mxu0 %v3176
    %4539 = vmatprep.subr.bf16.mxu0 %v3187
    %4540 = vmatpush1.bf16.msra.mxu0 %v3186
    %4541 = vmatprep.subr.bf16.mxu0 %v3197
    %4542 = vmatpush1.bf16.msra.mxu0 %v3196
    %4543 = vmatprep.subr.bf16.mxu0 %v3207
    %4544 = vmatpush1.bf16.msra.mxu0 %v3206
    %4545 = vmatprep.subr.bf16.mxu0 %v3217
    %4546 = vmatpush1.bf16.msra.mxu0 %v3216
    %4547 = vmatprep.subr.bf16.mxu0 %v3227
    %4548 = vmatpush1.bf16.msra.mxu0 %v3226
    %4549 = vmatprep.subr.bf16.mxu0 %v3237
    %4550 = vmatpush1.bf16.msra.mxu0 %v3236
    %4551 = vmatprep.subr.bf16.mxu0 %v3247
    %4552 = vmatpush1.bf16.msra.mxu0 %v3246
    %4553 = vmatprep.subr.bf16.mxu0 %v3257
    %4554 = vmatpush1.bf16.msra.mxu0 %v3256
    %4555 = vmatprep.subr.bf16.mxu0 %v3267
    %4556 = vmatpush1.bf16.msra.mxu0 %v3266
    %4557 = vmatprep.mubr.bf16.mxu0 %v701
    %4558 = vmatmul.mubr.bf16.gmra.mrb[0].mxu0 %v700
    %v4559 = vpop.f32.mrb[0].mxu0
    %v4560 = vadd.f32 %v4519, %v4559
    %v4561 = vpop.f32.mrb[0].mxu0
    %v4562 = vadd.f32 %v4521, %v4561
    %v4563 = vpop.f32.mrb[0].mxu0
    %v4564 = vpop.f32.mrb[0].mxu0
    %4565 = vdwg.mxu0
    %4566 = vmatprep.subr.bf16.mxu0 %v2639
    %4567 = vmatpush1.bf16.msra.mxu0 %v2638
    %4568 = vmatprep.subr.bf16.mxu0 %v2649
    %4569 = vmatpush1.bf16.msra.mxu0 %v2648
    %4570 = vmatprep.subr.bf16.mxu0 %v2659
    %4571 = vmatpush1.bf16.msra.mxu0 %v2658
    %4572 = vmatprep.subr.bf16.mxu0 %v2669
    %4573 = vmatpush1.bf16.msra.mxu0 %v2668
    %4574 = vmatprep.subr.bf16.mxu0 %v2679
    %4575 = vmatpush1.bf16.msra.mxu0 %v2678
    %4576 = vmatprep.subr.bf16.mxu0 %v2689
    %4577 = vmatpush1.bf16.msra.mxu0 %v2688
    %4578 = vmatprep.subr.bf16.mxu0 %v2699
    %4579 = vmatpush1.bf16.msra.mxu0 %v2698
    %4580 = vmatprep.subr.bf16.mxu0 %v2709
    %4581 = vmatpush1.bf16.msra.mxu0 %v2708
    %4582 = vmatprep.subr.bf16.mxu0 %v2719
    %4583 = vmatpush1.bf16.msra.mxu0 %v2718
    %4584 = vmatprep.subr.bf16.mxu0 %v2729
    %4585 = vmatpush1.bf16.msra.mxu0 %v2728
    %4586 = vmatprep.subr.bf16.mxu0 %v2739
    %4587 = vmatpush1.bf16.msra.mxu0 %v2738
    %4588 = vmatprep.subr.bf16.mxu0 %v2749
    %4589 = vmatpush1.bf16.msra.mxu0 %v2748
    %4590 = vmatprep.subr.bf16.mxu0 %v2759
    %4591 = vmatpush1.bf16.msra.mxu0 %v2758
    %4592 = vmatprep.subr.bf16.mxu0 %v2769
    %4593 = vmatpush1.bf16.msra.mxu0 %v2768
    %4594 = vmatprep.subr.bf16.mxu0 %v2779
    %4595 = vmatpush1.bf16.msra.mxu0 %v2778
    %4596 = vmatprep.subr.bf16.mxu0 %v2789
    %4597 = vmatpush1.bf16.msra.mxu0 %v2788
    %4598 = vmatprep.mubr.bf16.mxu0 %v695
    %4599 = vmatmul.mubr.bf16.gmra.mrb[0].mxu0 %v694
    %v4600 = vpop.f32.mrb[0].mxu0
    %v4601 = vadd.f32 0.0, %v4600
    %v4602 = vpop.f32.mrb[0].mxu0
    %v4603 = vadd.f32 0.0, %v4602
    %v4604 = vpop.f32.mrb[0].mxu0
    %v4605 = vpop.f32.mrb[0].mxu0
    %4606 = vdwg.mxu0
    %4607 = vmatprep.subr.bf16.mxu0 %v2799
    %4608 = vmatpush1.bf16.msra.mxu0 %v2798
    %4609 = vmatprep.subr.bf16.mxu0 %v2809
    %4610 = vmatpush1.bf16.msra.mxu0 %v2808
    %4611 = vmatprep.subr.bf16.mxu0 %v2819
    %4612 = vmatpush1.bf16.msra.mxu0 %v2818
    %4613 = vmatprep.subr.bf16.mxu0 %v2829
    %4614 = vmatpush1.bf16.msra.mxu0 %v2828
    %4615 = vmatprep.subr.bf16.mxu0 %v2839
    %4616 = vmatpush1.bf16.msra.mxu0 %v2838
    %4617 = vmatprep.subr.bf16.mxu0 %v2849
    %4618 = vmatpush1.bf16.msra.mxu0 %v2848
    %4619 = vmatprep.subr.bf16.mxu0 %v2859
    %4620 = vmatpush1.bf16.msra.mxu0 %v2858
    %4621 = vmatprep.subr.bf16.mxu0 %v2869
    %4622 = vmatpush1.bf16.msra.mxu0 %v2868
    %4623 = vmatprep.subr.bf16.mxu0 %v2879
    %4624 = vmatpush1.bf16.msra.mxu0 %v2878
    %4625 = vmatprep.subr.bf16.mxu0 %v2889
    %4626 = vmatpush1.bf16.msra.mxu0 %v2888
    %4627 = vmatprep.subr.bf16.mxu0 %v2899
    %4628 = vmatpush1.bf16.msra.mxu0 %v2898
    %4629 = vmatprep.subr.bf16.mxu0 %v2909
    %4630 = vmatpush1.bf16.msra.mxu0 %v2908
    %4631 = vmatprep.subr.bf16.mxu0 %v2919
    %4632 = vmatpush1.bf16.msra.mxu0 %v2918
    %4633 = vmatprep.subr.bf16.mxu0 %v2929
    %4634 = vmatpush1.bf16.msra.mxu0 %v2928
    %4635 = vmatprep.subr.bf16.mxu0 %v2939
    %4636 = vmatpush1.bf16.msra.mxu0 %v2938
    %4637 = vmatprep.subr.bf16.mxu0 %v2949
    %4638 = vmatpush1.bf16.msra.mxu0 %v2948
    %4639 = vmatprep.mubr.bf16.mxu0 %v697
    %4640 = vmatmul.mubr.bf16.gmra.mrb[0].mxu0 %v696
    %v4641 = vpop.f32.mrb[0].mxu0
    %v4642 = vadd.f32 %v4601, %v4641
    %v4643 = vpop.f32.mrb[0].mxu0
    %v4644 = vadd.f32 %v4603, %v4643
    %v4645 = vpop.f32.mrb[0].mxu0
    %v4646 = vpop.f32.mrb[0].mxu0
    %4647 = vdwg.mxu0
    %4648 = vmatprep.subr.bf16.mxu0 %v2959
    %4649 = vmatpush1.bf16.msra.mxu0 %v2958
    %4650 = vmatprep.subr.bf16.mxu0 %v2969
    %4651 = vmatpush1.bf16.msra.mxu0 %v2968
    %4652 = vmatprep.subr.bf16.mxu0 %v2979
    %4653 = vmatpush1.bf16.msra.mxu0 %v2978
    %4654 = vmatprep.subr.bf16.mxu0 %v2989
    %4655 = vmatpush1.bf16.msra.mxu0 %v2988
    %4656 = vmatprep.subr.bf16.mxu0 %v2999
    %4657 = vmatpush1.bf16.msra.mxu0 %v2998
    %4658 = vmatprep.subr.bf16.mxu0 %v3009
    %4659 = vmatpush1.bf16.msra.mxu0 %v3008
    %4660 = vmatprep.subr.bf16.mxu0 %v3019
    %4661 = vmatpush1.bf16.msra.mxu0 %v3018
    %4662 = vmatprep.subr.bf16.mxu0 %v3029
    %4663 = vmatpush1.bf16.msra.mxu0 %v3028
    %4664 = vmatprep.subr.bf16.mxu0 %v3039
    %4665 = vmatpush1.bf16.msra.mxu0 %v3038
    %4666 = vmatprep.subr.bf16.mxu0 %v3049
    %4667 = vmatpush1.bf16.msra.mxu0 %v3048
    %4668 = vmatprep.subr.bf16.mxu0 %v3059
    %4669 = vmatpush1.bf16.msra.mxu0 %v3058
    %4670 = vmatprep.subr.bf16.mxu0 %v3069
    %4671 = vmatpush1.bf16.msra.mxu0 %v3068
    %4672 = vmatprep.subr.bf16.mxu0 %v3079
    %4673 = vmatpush1.bf16.msra.mxu0 %v3078
    %4674 = vmatprep.subr.bf16.mxu0 %v3089
    %4675 = vmatpush1.bf16.msra.mxu0 %v3088
    %4676 = vmatprep.subr.bf16.mxu0 %v3099
    %4677 = vmatpush1.bf16.msra.mxu0 %v3098
    %4678 = vmatprep.subr.bf16.mxu0 %v3109
    %4679 = vmatpush1.bf16.msra.mxu0 %v3108
    %4680 = vmatprep.mubr.bf16.mxu0 %v699
    %4681 = vmatmul.mubr.bf16.gmra.mrb[0].mxu0 %v698
    %v4682 = vpop.f32.mrb[0].mxu0
    %v4683 = vadd.f32 %v4642, %v4682
    %v4684 = vpop.f32.mrb[0].mxu0
    %v4685 = vadd.f32 %v4644, %v4684
    %v4686 = vpop.f32.mrb[0].mxu0
    %v4687 = vpop.f32.mrb[0].mxu0
    %4688 = vdwg.mxu0
    %4689 = vmatprep.subr.bf16.mxu0 %v3119
    %4690 = vmatpush1.bf16.msra.mxu0 %v3118
    %4691 = vmatprep.subr.bf16.mxu0 %v3129
    %4692 = vmatpush1.bf16.msra.mxu0 %v3128
    %4693 = vmatprep.subr.bf16.mxu0 %v3139
    %4694 = vmatpush1.bf16.msra.mxu0 %v3138
    %4695 = vmatprep.subr.bf16.mxu0 %v3149
    %4696 = vmatpush1.bf16.msra.mxu0 %v3148
    %4697 = vmatprep.subr.bf16.mxu0 %v3159
    %4698 = vmatpush1.bf16.msra.mxu0 %v3158
    %4699 = vmatprep.subr.bf16.mxu0 %v3169
    %4700 = vmatpush1.bf16.msra.mxu0 %v3168
    %4701 = vmatprep.subr.bf16.mxu0 %v3179
    %4702 = vmatpush1.bf16.msra.mxu0 %v3178
    %4703 = vmatprep.subr.bf16.mxu0 %v3189
    %4704 = vmatpush1.bf16.msra.mxu0 %v3188
    %4705 = vmatprep.subr.bf16.mxu0 %v3199
    %4706 = vmatpush1.bf16.msra.mxu0 %v3198
    %4707 = vmatprep.subr.bf16.mxu0 %v3209
    %4708 = vmatpush1.bf16.msra.mxu0 %v3208
    %4709 = vmatprep.subr.bf16.mxu0 %v3219
    %4710 = vmatpush1.bf16.msra.mxu0 %v3218
    %4711 = vmatprep.subr.bf16.mxu0 %v3229
    %4712 = vmatpush1.bf16.msra.mxu0 %v3228
    %4713 = vmatprep.subr.bf16.mxu0 %v3239
    %4714 = vmatpush1.bf16.msra.mxu0 %v3238
    %4715 = vmatprep.subr.bf16.mxu0 %v3249
    %4716 = vmatpush1.bf16.msra.mxu0 %v3248
    %4717 = vmatprep.subr.bf16.mxu0 %v3259
    %4718 = vmatpush1.bf16.msra.mxu0 %v3258
    %4719 = vmatprep.subr.bf16.mxu0 %v3269
    %4720 = vmatpush1.bf16.msra.mxu0 %v3268
    %4721 = vmatprep.mubr.bf16.mxu0 %v701
    %4722 = vmatmul.mubr.bf16.gmra.mrb[0].mxu0 %v700
    %v4723 = vpop.f32.mrb[0].mxu0
    %v4724 = vadd.f32 %v4683, %v4723
    %v4725 = vpop.f32.mrb[0].mxu0
    %v4726 = vadd.f32 %v4685, %v4725
    %v4727 = vpop.f32.mrb[0].mxu0
    %v4728 = vpop.f32.mrb[0].mxu0
    %4729 = vdwg.mxu0
    %4730 = vst [vmem:[#allocation7] sm:$0xff] %v4068
    %4731 = vst [vmem:[#allocation7 + $0x8] sm:$0xff] %v4070
    %4732 = vst [vmem:[#allocation7 + $0x10] sm:$0xff] %v4232
    %4733 = vst [vmem:[#allocation7 + $0x18] sm:$0xff] %v4234
    %4734 = vst [vmem:[#allocation7 + $0x20] sm:$0xff] %v4396
    %4735 = vst [vmem:[#allocation7 + $0x28] sm:$0xff] %v4398
    %4736 = vst [vmem:[#allocation7 + $0x30] sm:$0xff] %v4560
    %4737 = vst [vmem:[#allocation7 + $0x38] sm:$0xff] %v4562
    %4738 = vst [vmem:[#allocation7 + $0x40] sm:$0xff] %v4724
    %4739 = vst [vmem:[#allocation7 + $0x48] sm:$0xff] %v4726
    // Predicated region
    $region18: #{tpu_custom_call.1} parent=1 // pred_check
      _
    $region19: #{tpu_custom_call.1} parent=1 // pred_check_branch
      %4741 = sbr.rel (0) target = $region21
    $region20: #{tpu_custom_call.1} parent=1 // pred_region
      %s4743 = ssub.s32 1280, 1280
      %4744 = vsyncadd [#allocation4], %s4743
      %s4746 = sshll.u32 [#allocation7], 4
      %s4747 = int_to_ptr.vmem [resolvable:$true] %s4746
      %4749 = dma.vmem_to_hbm [thread:$0]  %s4747, 1280, %s2, [#allocation4]
    $region21: #{tpu_custom_call.1} parent=1 // pred_fallthru
      _
    // Predicated region
    $region22: #{tpu_custom_call.1} parent=1 // pred_check
      _
    $region23: #{tpu_custom_call.1} parent=1 // pred_check_branch
      %4751 = sbr.rel (0) target = $region25
    $region24: #{tpu_custom_call.1} parent=1 // pred_region
      %4752 = dma.done [#allocation4], 1280
    $region25: #{tpu_custom_call.1} parent=1 // pred_fallthru
      _
    %4753 = vsyncpa [#allocation3], 1
    %4754 = vsyncpa [#allocation6], 1
    %4755 = vsyncpa [#allocation4], 1

</llo_original>
